<compile_context>
chip_gen: v5e
topology: v5e:2x2
jax: 0.10.0
libtpu: 0.0.40
codegen_flags: <defaults>
</compile_context>

<pallas_src>
import math
import functools

import jax
import jax.numpy as jnp
from jax import lax
from jax.experimental import pallas as pl
from jax.experimental.pallas import tpu as pltpu

EPS = 1e-6
NEG_INF = -1.0e9


# ----------------------------------------------------------------------------
# In-kernel helpers
# ----------------------------------------------------------------------------
def _layernorm(x, alpha, beta):
    # Reproduces the PyTorch LayerNormalization module exactly:
    #   mean over last dim, *unbiased* std (torch.std default), and division by
    #   sqrt(std + eps)  (std, not variance -- as written in the reference).
    n = x.shape[-1]
    mean = jnp.mean(x, axis=-1, keepdims=True)
    var = jnp.sum((x - mean) ** 2, axis=-1, keepdims=True) * (1.0 / (n - 1))
    std = jnp.sqrt(var)
    # rsqrt keeps the division on the EUP slot instead of the VALU.
    return alpha * (x - mean) * lax.rsqrt(std + EPS) + beta


# ----------------------------------------------------------------------------
# Fused encoder-layer kernel:
#   x1  = x + W_o(MHA(LN1(x), LN1(x), LN1(x), mask))
#   x2  = x1 + W2(W1(LN2(x1)))
#   out = LN_final(x2)            (only on the last layer, static flag)
# Grid = (batch, query-tiles).  LN1(x), K, V cached in VMEM scratch at q == 0.
# ----------------------------------------------------------------------------
def _encoder_layer_kernel(
        x_ref, bias_ref,
        ln1a_ref, ln1b_ref,
        wq_ref, wk_ref, wv_ref, wo_ref,
        bq_ref, bk_ref, bv_ref, bo_ref,
        ln2a_ref, ln2b_ref,
        w1_ref, b1_ref, w2_ref, b2_ref,
        flna_ref, flnb_ref,
        out_ref,
        ln1_scr, k_scr, v_scr, acc_scr,
        *, n_heads, q_tile, apply_final_norm):
    S = x_ref.shape[1]
    TQ = q_tile
    qi = pl.program_id(1)

    # ---- once per batch element (first query tile): full-sequence LayerNorm
    #      and per-head K / V projections, cached in VMEM for all query tiles.
    @pl.when(qi == 0)
    def _():
        x_full = x_ref[0].astype(jnp.float32)                       # (S, D)
        ln_kv = _layernorm(x_full, ln1a_ref[...], ln1b_ref[...])
        ln16 = ln_kv.astype(jnp.bfloat16)
        ln1_scr[...] = ln16

        def proj(h, carry):
            k_h = jnp.dot(ln16, wk_ref[h],
                          preferred_element_type=jnp.float32) + bk_ref[h]
            v_h = jnp.dot(ln16, wv_ref[h],
                          preferred_element_type=jnp.float32) + bv_ref[h]
            k_scr[h] = k_h.astype(jnp.bfloat16)
            v_scr[h] = v_h.astype(jnp.bfloat16)
            return carry
        lax.fori_loop(0, n_heads, proj, 0, unroll=True)

    # ---- per query tile ----
    qstart = pl.multiple_of(qi * TQ, TQ)
    xq = x_ref[0, pl.ds(qstart, TQ), :].astype(jnp.float32)         # (TQ, D) residual
    ln_q16 = ln1_scr[pl.ds(qstart, TQ), :]                          # cached LN1(x) rows
    bias = bias_ref[...].astype(jnp.float32)                        # (TQ, S) additive mask

    acc_scr[...] = jnp.zeros_like(acc_scr)                          # (TQ, D) f32

    def head(h, carry):
        # 1/sqrt(dk) is folded into wq / bq by the wrapper.
        q_h = (jnp.dot(ln_q16, wq_ref[h], preferred_element_type=jnp.float32)
               + bq_ref[h]).astype(jnp.bfloat16)                    # (TQ, dk)
        # q @ k^T without materializing a transpose (NT matmul on the MXU).
        s = lax.dot_general(q_h, k_scr[h], (((1,), (1,)), ((), ())),
                            preferred_element_type=jnp.float32)     # (TQ, S)
        s = s + bias
        m = jnp.max(s, axis=-1, keepdims=True)
        e = jnp.exp(s - m)
        p = e * pl.reciprocal(jnp.sum(e, axis=-1, keepdims=True))   # exact, EUP slot
        ctx = jnp.dot(p.astype(jnp.bfloat16), v_scr[h],
                      preferred_element_type=jnp.float32)           # (TQ, dk)
        # Accumulate the output projection per head (wo pre-split (H, dk, D)).
        acc_scr[...] += jnp.dot(ctx.astype(jnp.bfloat16), wo_ref[h],
                                preferred_element_type=jnp.float32)
        return carry
    lax.fori_loop(0, n_heads, head, 0, unroll=True)

    x1 = xq + acc_scr[...] + bo_ref[...]                            # residual 1

    # Feed-forward residual.
    # TODO(synk): the EncoderBlock / FeedForwardBlock internals are not part of
    # the provided spec (Encoder.layers is a generic nn.ModuleList); this mirrors
    # the same codebase's pre-norm blocks (two linears, dropout == identity).
    ln2 = _layernorm(x1, ln2a_ref[...], ln2b_ref[...]).astype(jnp.bfloat16)
    h1 = (jnp.dot(ln2, w1_ref[...], preferred_element_type=jnp.float32)
          + b1_ref[...]).astype(jnp.bfloat16)
    y2 = jnp.dot(h1, w2_ref[...], preferred_element_type=jnp.float32) + b2_ref[...]
    x2 = x1 + y2

    if apply_final_norm:                       # Encoder.norm fused into last layer
        x2 = _layernorm(x2, flna_ref[...], flnb_ref[...])

    out_ref[0] = x2.astype(out_ref.dtype)


# ----------------------------------------------------------------------------
# Pallas wrappers
# ----------------------------------------------------------------------------
def _const_spec(shape):
    nd = len(shape)
    return pl.BlockSpec(shape, lambda b, q: (0,) * nd)


def _default_max_q_tile():
    try:
        kind = jax.devices()[0].device_kind.lower()
    except Exception:
        return 128
    if "v6" in kind or "v7" in kind:
        return 256          # 256-wide MXU: fill the M dimension
    return 128               # v5e and older: 128x128 MXU


def _pick_q_tile(s, max_tile=None):
    if max_tile is None:
        max_tile = _default_max_q_tile()
    if s <= max_tile:
        return s
    for t in range(max_tile, 7, -8):
        if t % 8 == 0 and s % t == 0:
            return t
    return s  # fall back: whole sequence per grid step


def _encoder_layer(x, mask_bias, lp, final_ln, *, n_heads, q_tile,
                   apply_final_norm, out_dtype):
    B, S, D = x.shape
    TQ = q_tile
    assert S % TQ == 0 and (TQ % 8 == 0 or TQ == S)
    assert D % n_heads == 0
    n_q = S // TQ
    dk = D // n_heads
    H = n_heads
    F = lp["w1"].shape[1]

    kernel = functools.partial(_encoder_layer_kernel, n_heads=H, q_tile=TQ,
                               apply_final_norm=apply_final_norm)
    return pl.pallas_call(
        kernel,
        out_shape=jax.ShapeDtypeStruct((B, S, D), out_dtype),
        grid=(B, n_q),
        in_specs=[
            pl.BlockSpec((1, S, D), lambda b, q: (b, 0, 0)),     # x (full seq, one DMA / batch)
            pl.BlockSpec((TQ, S), lambda b, q: (q, 0)),          # additive mask bias (bf16)
            _const_spec((1, D)), _const_spec((1, D)),            # ln1 alpha / beta
            _const_spec((H, D, dk)),                             # wq (head-split, scale folded)
            _const_spec((H, D, dk)),                             # wk
            _const_spec((H, D, dk)),                             # wv
            _const_spec((H, dk, D)),                             # wo (head-split)
            _const_spec((H, 1, dk)), _const_spec((H, 1, dk)),    # bq bk
            _const_spec((H, 1, dk)), _const_spec((1, D)),        # bv bo
            _const_spec((1, D)), _const_spec((1, D)),            # ln2 alpha / beta
            _const_spec((D, F)), _const_spec((1, F)),            # w1 b1
            _const_spec((F, D)), _const_spec((1, D)),            # w2 b2
            _const_spec((1, D)), _const_spec((1, D)),            # final norm alpha / beta
        ],
        out_specs=pl.BlockSpec((1, TQ, D), lambda b, q: (b, q, 0)),
        scratch_shapes=[
            pltpu.VMEM((S, D), jnp.bfloat16),        # cached LN1(x)
            pltpu.VMEM((H, S, dk), jnp.bfloat16),    # cached K per head
            pltpu.VMEM((H, S, dk), jnp.bfloat16),    # cached V per head
            pltpu.VMEM((TQ, D), jnp.float32),        # attention-output accumulator
        ],
        compiler_params=pltpu.CompilerParams(
            dimension_semantics=("parallel", "arbitrary"),
            vmem_limit_bytes=48 * 1024 * 1024),
    )(x, mask_bias,
      lp["ln1_a"], lp["ln1_b"],
      lp["wq"], lp["wk"], lp["wv"], lp["wo"],
      lp["bq"], lp["bk"], lp["bv"], lp["bo"],
      lp["ln2_a"], lp["ln2_b"],
      lp["w1"], lp["b1"], lp["w2"], lp["b2"],
      final_ln["alpha"], final_ln["beta"])


def prepare_params(params, n_heads):
    """One-time parameter prep: bf16 cast, per-head split, score scale folded in."""
    def prep_layer(lp):
        D = lp["wq"].shape[0]
        dk = D // n_heads
        scale = 1.0 / math.sqrt(dk)

        def split_w(w):       # (D, D) -> (H, D, dk)
            return jnp.transpose(w.reshape(D, n_heads, dk), (1, 0, 2)).astype(jnp.bfloat16)

        def split_b(b):       # (1, D) -> (H, 1, dk)
            return b.reshape(n_heads, dk)[:, None, :].astype(jnp.float32)

        return dict(
            ln1_a=lp["ln1"]["alpha"], ln1_b=lp["ln1"]["beta"],
            wq=split_w(lp["wq"] * scale), wk=split_w(lp["wk"]), wv=split_w(lp["wv"]),
            wo=lp["wo"].reshape(n_heads, dk, D).astype(jnp.bfloat16),
            bq=split_b(lp["bq"] * scale), bk=split_b(lp["bk"]), bv=split_b(lp["bv"]),
            bo=lp["bo"].astype(jnp.float32),
            ln2_a=lp["ln2"]["alpha"], ln2_b=lp["ln2"]["beta"],
            w1=lp["w1"].astype(jnp.bfloat16), b1=lp["b1"].astype(jnp.float32),
            w2=lp["w2"].astype(jnp.bfloat16), b2=lp["b2"].astype(jnp.float32),
        )

    return dict(layers=[prep_layer(lp) for lp in params["layers"]],
                norm=dict(alpha=params["norm"]["alpha"], beta=params["norm"]["beta"]))


def encoder_forward(x, mask, prepared, *, n_heads, q_tile=None):
    """Encoder.forward: loop over encoder layers, final LayerNormalization."""
    B, S, D = x.shape
    if q_tile is None:
        q_tile = _pick_q_tile(S)
    # Additive mask bias (0 / -1e9) computed once, stored bf16 to halve traffic.
    # Note: a fully-masked row yields a uniform softmax instead of masked_fill
    # semantics; such rows do not occur for padding-style masks.
    mask_bias = jnp.where(mask == 0, NEG_INF, 0.0).astype(jnp.bfloat16)
    layers = prepared["layers"]
    n_layers = len(layers)
    assert n_layers >= 1
    for i, lp in enumerate(layers):
        last = (i == n_layers - 1)
        # bf16 activations between layers (halves HBM writeback / re-read);
        # final layer emits f32.
        x = _encoder_layer(x, mask_bias, lp, prepared["norm"],
                           n_heads=n_heads, q_tile=q_tile,
                           apply_final_norm=last,
                           out_dtype=jnp.float32 if last else jnp.bfloat16)
    return x


# ----------------------------------------------------------------------------
# Deterministic parameter init (weights stored as (in, out): y = x @ W + b)
# ----------------------------------------------------------------------------
def init_params(key, d_model, d_ff, n_layers):
    keys = jax.random.split(key, n_layers)

    def lin(k, din, dout):
        k1, k2 = jax.random.split(k)
        w = jax.random.normal(k1, (din, dout), jnp.float32) / math.sqrt(din)
        b = 0.01 * jax.random.normal(k2, (1, dout), jnp.float32)
        return w, b

    def ln_p():
        return dict(alpha=jnp.ones((1, d_model), jnp.float32),
                    beta=jnp.zeros((1, d_model), jnp.float32))

    layers = []
    for i in range(n_layers):
        ks = jax.random.split(keys[i], 6)
        wq, bq = lin(ks[0], d_model, d_model)
        wk, bk = lin(ks[1], d_model, d_model)
        wv, bv = lin(ks[2], d_model, d_model)
        wo, bo = lin(ks[3], d_model, d_model)
        w1, b1 = lin(ks[4], d_model, d_ff)
        w2, b2 = lin(ks[5], d_ff, d_model)
        layers.append(dict(ln1=ln_p(), wq=wq, bq=bq, wk=wk, bk=bk, wv=wv, bv=bv,
                           wo=wo, bo=bo, ln2=ln_p(), w1=w1, b1=b1, w2=w2, b2=b2))
    return dict(layers=layers, norm=ln_p())


# ----------------------------------------------------------------------------
# Pure-JAX reference (mirrors the PyTorch semantics, full f32) for validation
# ----------------------------------------------------------------------------
def _ref_ln(x, p):
    n = x.shape[-1]
    mean = jnp.mean(x, axis=-1, keepdims=True)
    var = jnp.sum((x - mean) ** 2, axis=-1, keepdims=True) / (n - 1)
    std = jnp.sqrt(var)
    return p["alpha"] * (x - mean) / jnp.sqrt(std + EPS) + p["beta"]


def _ref_mha(q_in, kv_in, mask, lp, n_heads):
    B, Sq, D = q_in.shape
    Sk = kv_in.shape[1]
    dk = D // n_heads
    q = (q_in @ lp["wq"] + lp["bq"]).reshape(B, Sq, n_heads, dk).transpose(0, 2, 1, 3)
    k = (kv_in @ lp["wk"] + lp["bk"]).reshape(B, Sk, n_heads, dk).transpose(0, 2, 1, 3)
    v = (kv_in @ lp["wv"] + lp["bv"]).reshape(B, Sk, n_heads, dk).transpose(0, 2, 1, 3)
    scores = q @ k.transpose(0, 1, 3, 2) / math.sqrt(dk)
    scores = jnp.where(mask[None, None] == 0, NEG_INF, scores)
    probs = jax.nn.softmax(scores, axis=-1)
    out = (probs @ v).transpose(0, 2, 1, 3).reshape(B, Sq, D)
    return out @ lp["wo"] + lp["bo"]


def encoder_reference(x, mask, params, *, n_heads):
    for lp in params["layers"]:
        ln = _ref_ln(x, lp["ln1"])
        x = x + _ref_mha(ln, ln, mask, lp, n_heads)
        ln2 = _ref_ln(x, lp["ln2"])
        x = x + ((ln2 @ lp["w1"] + lp["b1"]) @ lp["w2"] + lp["b2"])
    return _ref_ln(x, params["norm"])


# ----------------------------------------------------------------------------
if __name__ == "__main__":
    B, S, D_MODEL, H, D_FF, N_LAYERS = 2, 16, 32, 4, 64, 2

    key = jax.random.PRNGKey(0)
    k_x, k_par = jax.random.split(key)
    x = jax.random.normal(k_x, (B, S, D_MODEL), jnp.float32)
    # Padding-style source mask: last 4 key positions are masked out.
    mask = jnp.broadcast_to((jnp.arange(S) < S - 4).astype(jnp.int32), (S, S))

    params = init_params(k_par, D_MODEL, D_FF, N_LAYERS)
    prepared = prepare_params(params, n_heads=H)   # one-time bf16 cast / head split

    fwd = jax.jit(functools.partial(encoder_forward, n_heads=H, q_tile=8))
    out = jax.block_until_ready(fwd(x, mask, prepared))

    ref = encoder_reference(x, mask, params, n_heads=H)
    max_err = float(jnp.max(jnp.abs(out - ref)))
    scale = float(jnp.max(jnp.abs(ref))) + 1e-6
    # bf16 matmul operands + bf16 inter-layer activations => loosened tolerance.
    if max_err / scale > 3e-2:
        raise AssertionError(
            f"Pallas output mismatch vs reference: abs={max_err}, rel={max_err / scale}")
    print("KERNEL_OK")
</pallas_src>

<mosaic_0001>
module attributes {stable_mosaic.version = 11 : i64} {
  func.func @_encoder_layer_kernel(%arg0: i32, %arg1: i32, %arg2: memref<1x16x32xf32, #tpu.memory_space<vmem>>, %arg3: memref<8x16xbf16, #tpu.memory_space<vmem>>, %arg4: memref<1x32xf32, #tpu.memory_space<vmem>>, %arg5: memref<1x32xf32, #tpu.memory_space<vmem>>, %arg6: memref<4x32x8xbf16, #tpu.memory_space<vmem>>, %arg7: memref<4x32x8xbf16, #tpu.memory_space<vmem>>, %arg8: memref<4x32x8xbf16, #tpu.memory_space<vmem>>, %arg9: memref<4x8x32xbf16, #tpu.memory_space<vmem>>, %arg10: memref<4x1x8xf32, #tpu.memory_space<vmem>>, %arg11: memref<4x1x8xf32, #tpu.memory_space<vmem>>, %arg12: memref<4x1x8xf32, #tpu.memory_space<vmem>>, %arg13: memref<1x32xf32, #tpu.memory_space<vmem>>, %arg14: memref<1x32xf32, #tpu.memory_space<vmem>>, %arg15: memref<1x32xf32, #tpu.memory_space<vmem>>, %arg16: memref<32x64xbf16, #tpu.memory_space<vmem>>, %arg17: memref<1x64xf32, #tpu.memory_space<vmem>>, %arg18: memref<64x32xbf16, #tpu.memory_space<vmem>>, %arg19: memref<1x32xf32, #tpu.memory_space<vmem>>, %arg20: memref<1x32xf32, #tpu.memory_space<vmem>>, %arg21: memref<1x32xf32, #tpu.memory_space<vmem>>, %arg22: memref<1x8x32xbf16, #tpu.memory_space<vmem>>, %arg23: memref<16x32xbf16, #tpu.memory_space<vmem>>, %arg24: memref<4x16x8xbf16, #tpu.memory_space<vmem>>, %arg25: memref<4x16x8xbf16, #tpu.memory_space<vmem>>, %arg26: memref<8x32xf32, #tpu.memory_space<vmem>>) attributes {dimension_semantics = [#tpu.dimension_semantics<parallel>, #tpu.dimension_semantics<arbitrary>], iteration_bounds = array<i64: 2, 2>, scalar_prefetch = 0 : i64, scratch_operands = 4 : i64, tpu.core_type = #tpu.core_type<tc>, window_params = [{transform_indices = @transform_0, window_bounds = array<i64: 1, 16, 32>}, {transform_indices = @transform_1, window_bounds = array<i64: 8, 16>}, {pipeline_mode = #tpu.pipeline_mode<synchronous>, transform_indices = @transform_2, window_bounds = array<i64: 1, 32>}, {pipeline_mode = #tpu.pipeline_mode<synchronous>, transform_indices = @transform_3, window_bounds = array<i64: 1, 32>}, {pipeline_mode = #tpu.pipeline_mode<synchronous>, transform_indices = @transform_4, window_bounds = array<i64: 4, 32, 8>}, {pipeline_mode = #tpu.pipeline_mode<synchronous>, transform_indices = @transform_5, window_bounds = array<i64: 4, 32, 8>}, {pipeline_mode = #tpu.pipeline_mode<synchronous>, transform_indices = @transform_6, window_bounds = array<i64: 4, 32, 8>}, {pipeline_mode = #tpu.pipeline_mode<synchronous>, transform_indices = @transform_7, window_bounds = array<i64: 4, 8, 32>}, {pipeline_mode = #tpu.pipeline_mode<synchronous>, transform_indices = @transform_8, window_bounds = array<i64: 4, 1, 8>}, {pipeline_mode = #tpu.pipeline_mode<synchronous>, transform_indices = @transform_9, window_bounds = array<i64: 4, 1, 8>}, {pipeline_mode = #tpu.pipeline_mode<synchronous>, transform_indices = @transform_10, window_bounds = array<i64: 4, 1, 8>}, {pipeline_mode = #tpu.pipeline_mode<synchronous>, transform_indices = @transform_11, window_bounds = array<i64: 1, 32>}, {pipeline_mode = #tpu.pipeline_mode<synchronous>, transform_indices = @transform_12, window_bounds = array<i64: 1, 32>}, {pipeline_mode = #tpu.pipeline_mode<synchronous>, transform_indices = @transform_13, window_bounds = array<i64: 1, 32>}, {pipeline_mode = #tpu.pipeline_mode<synchronous>, transform_indices = @transform_14, window_bounds = array<i64: 32, 64>}, {pipeline_mode = #tpu.pipeline_mode<synchronous>, transform_indices = @transform_15, window_bounds = array<i64: 1, 64>}, {pipeline_mode = #tpu.pipeline_mode<synchronous>, transform_indices = @transform_16, window_bounds = array<i64: 64, 32>}, {pipeline_mode = #tpu.pipeline_mode<synchronous>, transform_indices = @transform_17, window_bounds = array<i64: 1, 32>}, {pipeline_mode = #tpu.pipeline_mode<synchronous>, transform_indices = @transform_18, window_bounds = array<i64: 1, 32>}, {pipeline_mode = #tpu.pipeline_mode<synchronous>, transform_indices = @transform_19, window_bounds = array<i64: 1, 32>}, {transform_indices = @transform_20, window_bounds = array<i64: 1, 8, 32>}]} {
    %c0_i32 = arith.constant 0 : i32
    %0 = arith.cmpi eq, %arg1, %c0_i32 : i32
    %1 = arith.extui %0 : i1 to i32
    %c0_i32_0 = arith.constant 0 : i32
    %2 = arith.cmpi ne, %1, %c0_i32_0 : i32
    scf.if %2 {
      %c0_114 = arith.constant 0 : index
      %c0_115 = arith.constant 0 : index
      %c0_116 = arith.constant 0 : index
      %213 = vector.load %arg2[%c0_114, %c0_115, %c0_116] : memref<1x16x32xf32, #tpu.memory_space<vmem>>, vector<1x16x32xf32>
      %214 = vector.shape_cast %213 : vector<1x16x32xf32> to vector<16x32xf32>
      %c0_117 = arith.constant 0 : index
      %c0_118 = arith.constant 0 : index
      %215 = vector.load %arg4[%c0_117, %c0_118] : memref<1x32xf32, #tpu.memory_space<vmem>>, vector<1x32xf32>
      %c0_119 = arith.constant 0 : index
      %c0_120 = arith.constant 0 : index
      %216 = vector.load %arg5[%c0_119, %c0_120] : memref<1x32xf32, #tpu.memory_space<vmem>>, vector<1x32xf32>
      %cst_121 = arith.constant dense<0.000000e+00> : vector<16xf32>
      %217 = vector.multi_reduction <add>, %214, %cst_121 [1] : vector<16x32xf32> to vector<16xf32>
      %218 = vector.shape_cast %217 : vector<16xf32> to vector<16x1xf32>
      %cst_122 = arith.constant 3.200000e+01 : f32
      %219 = vector.broadcast %cst_122 : f32 to vector<16x1xf32>
      %220 = arith.divf %218, %219 : vector<16x1xf32>
      %221 = vector.broadcast %220 : vector<16x1xf32> to vector<16x32xf32>
      %222 = arith.subf %214, %221 : vector<16x32xf32>
      %223 = arith.mulf %222, %222 : vector<16x32xf32>
      %cst_123 = arith.constant dense<0.000000e+00> : vector<16xf32>
      %224 = vector.multi_reduction <add>, %223, %cst_123 [1] : vector<16x32xf32> to vector<16xf32>
      %225 = vector.shape_cast %224 : vector<16xf32> to vector<16x1xf32>
      %cst_124 = arith.constant 0.0322580636 : f32
      %226 = vector.broadcast %cst_124 : f32 to vector<16x1xf32>
      %227 = arith.mulf %225, %226 : vector<16x1xf32>
      %228 = math.sqrt %227 : vector<16x1xf32>
      %229 = vector.broadcast %220 : vector<16x1xf32> to vector<16x32xf32>
      %230 = arith.subf %214, %229 : vector<16x32xf32>
      %231 = vector.broadcast %215 : vector<1x32xf32> to vector<16x32xf32>
      %232 = arith.mulf %231, %230 : vector<16x32xf32>
      %cst_125 = arith.constant 9.99999997E-7 : f32
      %233 = vector.broadcast %cst_125 : f32 to vector<16x1xf32>
      %234 = arith.addf %228, %233 : vector<16x1xf32>
      %235 = math.rsqrt %234 : vector<16x1xf32>
      %236 = vector.broadcast %235 : vector<16x1xf32> to vector<16x32xf32>
      %237 = arith.mulf %232, %236 : vector<16x32xf32>
      %238 = vector.broadcast %216 : vector<1x32xf32> to vector<16x32xf32>
      %239 = arith.addf %237, %238 : vector<16x32xf32>
      %240 = arith.truncf %239 : vector<16x32xf32> to vector<16x32xbf16>
      %c0_126 = arith.constant 0 : index
      %c0_127 = arith.constant 0 : index
      %241 = vector.load %arg23[%c0_126, %c0_127] : memref<16x32xbf16, #tpu.memory_space<vmem>>, vector<16x32xbf16>
      tpu.vector_store %arg23[%c0_126, %c0_127], %240 {strides = array<i32>} : memref<16x32xbf16, #tpu.memory_space<vmem>>, vector<16x32xbf16>,
      %c0_i32_128 = arith.constant 0 : i32
      %242 = arith.index_cast %c0_i32_128 : i32 to index
      %c0_129 = arith.constant 0 : index
      %c0_130 = arith.constant 0 : index
      %243 = vector.load %arg7[%242, %c0_129, %c0_130] : memref<4x32x8xbf16, #tpu.memory_space<vmem>>, vector<1x32x8xbf16>
      %244 = vector.shape_cast %243 : vector<1x32x8xbf16> to vector<32x8xbf16>
      %cst_131 = arith.constant dense<0.000000e+00> : vector<16x8xf32>
      %245 = tpu.matmul %240, %244, %cst_131 {dimension_numbers = #tpu.dot_dimension_numbers<[1], [0], [0], [1], [0, 0, 1, 1], [], []>} : vector<16x32xbf16>, vector<32x8xbf16>, vector<16x8xf32> -> vector<16x8xf32>
      %246 = arith.index_cast %c0_i32_128 : i32 to index
      %c0_132 = arith.constant 0 : index
      %c0_133 = arith.constant 0 : index
      %247 = vector.load %arg11[%246, %c0_132, %c0_133] : memref<4x1x8xf32, #tpu.memory_space<vmem>>, vector<1x1x8xf32>
      %248 = vector.shape_cast %247 : vector<1x1x8xf32> to vector<1x8xf32>
      %249 = vector.broadcast %248 : vector<1x8xf32> to vector<16x8xf32>
      %250 = arith.addf %245, %249 : vector<16x8xf32>
      %251 = arith.index_cast %c0_i32_128 : i32 to index
      %c0_134 = arith.constant 0 : index
      %c0_135 = arith.constant 0 : index
      %252 = vector.load %arg8[%251, %c0_134, %c0_135] : memref<4x32x8xbf16, #tpu.memory_space<vmem>>, vector<1x32x8xbf16>
      %253 = vector.shape_cast %252 : vector<1x32x8xbf16> to vector<32x8xbf16>
      %cst_136 = arith.constant dense<0.000000e+00> : vector<16x8xf32>
      %254 = tpu.matmul %240, %253, %cst_136 {dimension_numbers = #tpu.dot_dimension_numbers<[1], [0], [0], [1], [0, 0, 1, 1], [], []>} : vector<16x32xbf16>, vector<32x8xbf16>, vector<16x8xf32> -> vector<16x8xf32>
      %255 = arith.index_cast %c0_i32_128 : i32 to index
      %c0_137 = arith.constant 0 : index
      %c0_138 = arith.constant 0 : index
      %256 = vector.load %arg12[%255, %c0_137, %c0_138] : memref<4x1x8xf32, #tpu.memory_space<vmem>>, vector<1x1x8xf32>
      %257 = vector.shape_cast %256 : vector<1x1x8xf32> to vector<1x8xf32>
      %258 = vector.broadcast %257 : vector<1x8xf32> to vector<16x8xf32>
      %259 = arith.addf %254, %258 : vector<16x8xf32>
      %260 = arith.truncf %250 : vector<16x8xf32> to vector<16x8xbf16>
      %261 = arith.index_cast %c0_i32_128 : i32 to index
      %c0_139 = arith.constant 0 : index
      %c0_140 = arith.constant 0 : index
      %262 = vector.load %arg24[%261, %c0_139, %c0_140] : memref<4x16x8xbf16, #tpu.memory_space<vmem>>, vector<1x16x8xbf16>
      %263 = vector.shape_cast %262 : vector<1x16x8xbf16> to vector<16x8xbf16>
      %264 = vector.shape_cast %260 : vector<16x8xbf16> to vector<1x16x8xbf16>
      tpu.vector_store %arg24[%261, %c0_139, %c0_140], %264 {strides = array<i32>} : memref<4x16x8xbf16, #tpu.memory_space<vmem>>, vector<1x16x8xbf16>,
      %265 = arith.truncf %259 : vector<16x8xf32> to vector<16x8xbf16>
      %266 = arith.index_cast %c0_i32_128 : i32 to index
      %c0_141 = arith.constant 0 : index
      %c0_142 = arith.constant 0 : index
      %267 = vector.load %arg25[%266, %c0_141, %c0_142] : memref<4x16x8xbf16, #tpu.memory_space<vmem>>, vector<1x16x8xbf16>
      %268 = vector.shape_cast %267 : vector<1x16x8xbf16> to vector<16x8xbf16>
      %269 = vector.shape_cast %265 : vector<16x8xbf16> to vector<1x16x8xbf16>
      tpu.vector_store %arg25[%266, %c0_141, %c0_142], %269 {strides = array<i32>} : memref<4x16x8xbf16, #tpu.memory_space<vmem>>, vector<1x16x8xbf16>,
      %c1_i32_143 = arith.constant 1 : i32
      %270 = arith.index_cast %c1_i32_143 : i32 to index
      %c0_144 = arith.constant 0 : index
      %c0_145 = arith.constant 0 : index
      %271 = vector.load %arg7[%270, %c0_144, %c0_145] : memref<4x32x8xbf16, #tpu.memory_space<vmem>>, vector<1x32x8xbf16>
      %272 = vector.shape_cast %271 : vector<1x32x8xbf16> to vector<32x8xbf16>
      %cst_146 = arith.constant dense<0.000000e+00> : vector<16x8xf32>
      %273 = tpu.matmul %240, %272, %cst_146 {dimension_numbers = #tpu.dot_dimension_numbers<[1], [0], [0], [1], [0, 0, 1, 1], [], []>} : vector<16x32xbf16>, vector<32x8xbf16>, vector<16x8xf32> -> vector<16x8xf32>
      %274 = arith.index_cast %c1_i32_143 : i32 to index
      %c0_147 = arith.constant 0 : index
      %c0_148 = arith.constant 0 : index
      %275 = vector.load %arg11[%274, %c0_147, %c0_148] : memref<4x1x8xf32, #tpu.memory_space<vmem>>, vector<1x1x8xf32>
      %276 = vector.shape_cast %275 : vector<1x1x8xf32> to vector<1x8xf32>
      %277 = vector.broadcast %276 : vector<1x8xf32> to vector<16x8xf32>
      %278 = arith.addf %273, %277 : vector<16x8xf32>
      %279 = arith.index_cast %c1_i32_143 : i32 to index
      %c0_149 = arith.constant 0 : index
      %c0_150 = arith.constant 0 : index
      %280 = vector.load %arg8[%279, %c0_149, %c0_150] : memref<4x32x8xbf16, #tpu.memory_space<vmem>>, vector<1x32x8xbf16>
      %281 = vector.shape_cast %280 : vector<1x32x8xbf16> to vector<32x8xbf16>
      %cst_151 = arith.constant dense<0.000000e+00> : vector<16x8xf32>
      %282 = tpu.matmul %240, %281, %cst_151 {dimension_numbers = #tpu.dot_dimension_numbers<[1], [0], [0], [1], [0, 0, 1, 1], [], []>} : vector<16x32xbf16>, vector<32x8xbf16>, vector<16x8xf32> -> vector<16x8xf32>
      %283 = arith.index_cast %c1_i32_143 : i32 to index
      %c0_152 = arith.constant 0 : index
      %c0_153 = arith.constant 0 : index
      %284 = vector.load %arg12[%283, %c0_152, %c0_153] : memref<4x1x8xf32, #tpu.memory_space<vmem>>, vector<1x1x8xf32>
      %285 = vector.shape_cast %284 : vector<1x1x8xf32> to vector<1x8xf32>
      %286 = vector.broadcast %285 : vector<1x8xf32> to vector<16x8xf32>
      %287 = arith.addf %282, %286 : vector<16x8xf32>
      %288 = arith.truncf %278 : vector<16x8xf32> to vector<16x8xbf16>
      %289 = arith.index_cast %c1_i32_143 : i32 to index
      %c0_154 = arith.constant 0 : index
      %c0_155 = arith.constant 0 : index
      %290 = vector.load %arg24[%289, %c0_154, %c0_155] : memref<4x16x8xbf16, #tpu.memory_space<vmem>>, vector<1x16x8xbf16>
      %291 = vector.shape_cast %290 : vector<1x16x8xbf16> to vector<16x8xbf16>
      %292 = vector.shape_cast %288 : vector<16x8xbf16> to vector<1x16x8xbf16>
      tpu.vector_store %arg24[%289, %c0_154, %c0_155], %292 {strides = array<i32>} : memref<4x16x8xbf16, #tpu.memory_space<vmem>>, vector<1x16x8xbf16>,
      %293 = arith.truncf %287 : vector<16x8xf32> to vector<16x8xbf16>
      %294 = arith.index_cast %c1_i32_143 : i32 to index
      %c0_156 = arith.constant 0 : index
      %c0_157 = arith.constant 0 : index
      %295 = vector.load %arg25[%294, %c0_156, %c0_157] : memref<4x16x8xbf16, #tpu.memory_space<vmem>>, vector<1x16x8xbf16>
      %296 = vector.shape_cast %295 : vector<1x16x8xbf16> to vector<16x8xbf16>
      %297 = vector.shape_cast %293 : vector<16x8xbf16> to vector<1x16x8xbf16>
      tpu.vector_store %arg25[%294, %c0_156, %c0_157], %297 {strides = array<i32>} : memref<4x16x8xbf16, #tpu.memory_space<vmem>>, vector<1x16x8xbf16>,
      %c2_i32_158 = arith.constant 2 : i32
      %298 = arith.index_cast %c2_i32_158 : i32 to index
      %c0_159 = arith.constant 0 : index
      %c0_160 = arith.constant 0 : index
      %299 = vector.load %arg7[%298, %c0_159, %c0_160] : memref<4x32x8xbf16, #tpu.memory_space<vmem>>, vector<1x32x8xbf16>
      %300 = vector.shape_cast %299 : vector<1x32x8xbf16> to vector<32x8xbf16>
      %cst_161 = arith.constant dense<0.000000e+00> : vector<16x8xf32>
      %301 = tpu.matmul %240, %300, %cst_161 {dimension_numbers = #tpu.dot_dimension_numbers<[1], [0], [0], [1], [0, 0, 1, 1], [], []>} : vector<16x32xbf16>, vector<32x8xbf16>, vector<16x8xf32> -> vector<16x8xf32>
      %302 = arith.index_cast %c2_i32_158 : i32 to index
      %c0_162 = arith.constant 0 : index
      %c0_163 = arith.constant 0 : index
      %303 = vector.load %arg11[%302, %c0_162, %c0_163] : memref<4x1x8xf32, #tpu.memory_space<vmem>>, vector<1x1x8xf32>
      %304 = vector.shape_cast %303 : vector<1x1x8xf32> to vector<1x8xf32>
      %305 = vector.broadcast %304 : vector<1x8xf32> to vector<16x8xf32>
      %306 = arith.addf %301, %305 : vector<16x8xf32>
      %307 = arith.index_cast %c2_i32_158 : i32 to index
      %c0_164 = arith.constant 0 : index
      %c0_165 = arith.constant 0 : index
      %308 = vector.load %arg8[%307, %c0_164, %c0_165] : memref<4x32x8xbf16, #tpu.memory_space<vmem>>, vector<1x32x8xbf16>
      %309 = vector.shape_cast %308 : vector<1x32x8xbf16> to vector<32x8xbf16>
      %cst_166 = arith.constant dense<0.000000e+00> : vector<16x8xf32>
      %310 = tpu.matmul %240, %309, %cst_166 {dimension_numbers = #tpu.dot_dimension_numbers<[1], [0], [0], [1], [0, 0, 1, 1], [], []>} : vector<16x32xbf16>, vector<32x8xbf16>, vector<16x8xf32> -> vector<16x8xf32>
      %311 = arith.index_cast %c2_i32_158 : i32 to index
      %c0_167 = arith.constant 0 : index
      %c0_168 = arith.constant 0 : index
      %312 = vector.load %arg12[%311, %c0_167, %c0_168] : memref<4x1x8xf32, #tpu.memory_space<vmem>>, vector<1x1x8xf32>
      %313 = vector.shape_cast %312 : vector<1x1x8xf32> to vector<1x8xf32>
      %314 = vector.broadcast %313 : vector<1x8xf32> to vector<16x8xf32>
      %315 = arith.addf %310, %314 : vector<16x8xf32>
      %316 = arith.truncf %306 : vector<16x8xf32> to vector<16x8xbf16>
      %317 = arith.index_cast %c2_i32_158 : i32 to index
      %c0_169 = arith.constant 0 : index
      %c0_170 = arith.constant 0 : index
      %318 = vector.load %arg24[%317, %c0_169, %c0_170] : memref<4x16x8xbf16, #tpu.memory_space<vmem>>, vector<1x16x8xbf16>
      %319 = vector.shape_cast %318 : vector<1x16x8xbf16> to vector<16x8xbf16>
      %320 = vector.shape_cast %316 : vector<16x8xbf16> to vector<1x16x8xbf16>
      tpu.vector_store %arg24[%317, %c0_169, %c0_170], %320 {strides = array<i32>} : memref<4x16x8xbf16, #tpu.memory_space<vmem>>, vector<1x16x8xbf16>,
      %321 = arith.truncf %315 : vector<16x8xf32> to vector<16x8xbf16>
      %322 = arith.index_cast %c2_i32_158 : i32 to index
      %c0_171 = arith.constant 0 : index
      %c0_172 = arith.constant 0 : index
      %323 = vector.load %arg25[%322, %c0_171, %c0_172] : memref<4x16x8xbf16, #tpu.memory_space<vmem>>, vector<1x16x8xbf16>
      %324 = vector.shape_cast %323 : vector<1x16x8xbf16> to vector<16x8xbf16>
      %325 = vector.shape_cast %321 : vector<16x8xbf16> to vector<1x16x8xbf16>
      tpu.vector_store %arg25[%322, %c0_171, %c0_172], %325 {strides = array<i32>} : memref<4x16x8xbf16, #tpu.memory_space<vmem>>, vector<1x16x8xbf16>,
      %c3_i32_173 = arith.constant 3 : i32
      %326 = arith.index_cast %c3_i32_173 : i32 to index
      %c0_174 = arith.constant 0 : index
      %c0_175 = arith.constant 0 : index
      %327 = vector.load %arg7[%326, %c0_174, %c0_175] : memref<4x32x8xbf16, #tpu.memory_space<vmem>>, vector<1x32x8xbf16>
      %328 = vector.shape_cast %327 : vector<1x32x8xbf16> to vector<32x8xbf16>
      %cst_176 = arith.constant dense<0.000000e+00> : vector<16x8xf32>
      %329 = tpu.matmul %240, %328, %cst_176 {dimension_numbers = #tpu.dot_dimension_numbers<[1], [0], [0], [1], [0, 0, 1, 1], [], []>} : vector<16x32xbf16>, vector<32x8xbf16>, vector<16x8xf32> -> vector<16x8xf32>
      %330 = arith.index_cast %c3_i32_173 : i32 to index
      %c0_177 = arith.constant 0 : index
      %c0_178 = arith.constant 0 : index
      %331 = vector.load %arg11[%330, %c0_177, %c0_178] : memref<4x1x8xf32, #tpu.memory_space<vmem>>, vector<1x1x8xf32>
      %332 = vector.shape_cast %331 : vector<1x1x8xf32> to vector<1x8xf32>
      %333 = vector.broadcast %332 : vector<1x8xf32> to vector<16x8xf32>
      %334 = arith.addf %329, %333 : vector<16x8xf32>
      %335 = arith.index_cast %c3_i32_173 : i32 to index
      %c0_179 = arith.constant 0 : index
      %c0_180 = arith.constant 0 : index
      %336 = vector.load %arg8[%335, %c0_179, %c0_180] : memref<4x32x8xbf16, #tpu.memory_space<vmem>>, vector<1x32x8xbf16>
      %337 = vector.shape_cast %336 : vector<1x32x8xbf16> to vector<32x8xbf16>
      %cst_181 = arith.constant dense<0.000000e+00> : vector<16x8xf32>
      %338 = tpu.matmul %240, %337, %cst_181 {dimension_numbers = #tpu.dot_dimension_numbers<[1], [0], [0], [1], [0, 0, 1, 1], [], []>} : vector<16x32xbf16>, vector<32x8xbf16>, vector<16x8xf32> -> vector<16x8xf32>
      %339 = arith.index_cast %c3_i32_173 : i32 to index
      %c0_182 = arith.constant 0 : index
      %c0_183 = arith.constant 0 : index
      %340 = vector.load %arg12[%339, %c0_182, %c0_183] : memref<4x1x8xf32, #tpu.memory_space<vmem>>, vector<1x1x8xf32>
      %341 = vector.shape_cast %340 : vector<1x1x8xf32> to vector<1x8xf32>
      %342 = vector.broadcast %341 : vector<1x8xf32> to vector<16x8xf32>
      %343 = arith.addf %338, %342 : vector<16x8xf32>
      %344 = arith.truncf %334 : vector<16x8xf32> to vector<16x8xbf16>
      %345 = arith.index_cast %c3_i32_173 : i32 to index
      %c0_184 = arith.constant 0 : index
      %c0_185 = arith.constant 0 : index
      %346 = vector.load %arg24[%345, %c0_184, %c0_185] : memref<4x16x8xbf16, #tpu.memory_space<vmem>>, vector<1x16x8xbf16>
      %347 = vector.shape_cast %346 : vector<1x16x8xbf16> to vector<16x8xbf16>
      %348 = vector.shape_cast %344 : vector<16x8xbf16> to vector<1x16x8xbf16>
      tpu.vector_store %arg24[%345, %c0_184, %c0_185], %348 {strides = array<i32>} : memref<4x16x8xbf16, #tpu.memory_space<vmem>>, vector<1x16x8xbf16>,
      %349 = arith.truncf %343 : vector<16x8xf32> to vector<16x8xbf16>
      %350 = arith.index_cast %c3_i32_173 : i32 to index
      %c0_186 = arith.constant 0 : index
      %c0_187 = arith.constant 0 : index
      %351 = vector.load %arg25[%350, %c0_186, %c0_187] : memref<4x16x8xbf16, #tpu.memory_space<vmem>>, vector<1x16x8xbf16>
      %352 = vector.shape_cast %351 : vector<1x16x8xbf16> to vector<16x8xbf16>
      %353 = vector.shape_cast %349 : vector<16x8xbf16> to vector<1x16x8xbf16>
      tpu.vector_store %arg25[%350, %c0_186, %c0_187], %353 {strides = array<i32>} : memref<4x16x8xbf16, #tpu.memory_space<vmem>>, vector<1x16x8xbf16>,
      %c4_i32_188 = arith.constant 4 : i32
    } else {
    }
    %c8_i32 = arith.constant 8 : i32
    %3 = arith.muli %arg1, %c8_i32 : i32
    %4 = tpu.assume_multiple %3, 8 : i32
    %c0 = arith.constant 0 : index
    %5 = arith.index_cast %4 : i32 to index
    %c0_1 = arith.constant 0 : index
    %6 = vector.load %arg2[%c0, %5, %c0_1] : memref<1x16x32xf32, #tpu.memory_space<vmem>>, vector<1x8x32xf32>
    %7 = vector.shape_cast %6 : vector<1x8x32xf32> to vector<8x32xf32>
    %8 = arith.index_cast %4 : i32 to index
    %c0_2 = arith.constant 0 : index
    %9 = vector.load %arg23[%8, %c0_2] : memref<16x32xbf16, #tpu.memory_space<vmem>>, vector<8x32xbf16>
    %c0_3 = arith.constant 0 : index
    %c0_4 = arith.constant 0 : index
    %10 = vector.load %arg3[%c0_3, %c0_4] : memref<8x16xbf16, #tpu.memory_space<vmem>>, vector<8x16xbf16>
    %11 = arith.extf %10 : vector<8x16xbf16> to vector<8x16xf32>
    %cst = arith.constant 0.000000e+00 : f32
    %12 = vector.broadcast %cst : f32 to vector<8x32xf32>
    %c0_5 = arith.constant 0 : index
    %c0_6 = arith.constant 0 : index
    %13 = vector.load %arg26[%c0_5, %c0_6] : memref<8x32xf32, #tpu.memory_space<vmem>>, vector<8x32xf32>
    tpu.vector_store %arg26[%c0_5, %c0_6], %12 {strides = array<i32>} : memref<8x32xf32, #tpu.memory_space<vmem>>, vector<8x32xf32>,
    %c0_i32_7 = arith.constant 0 : i32
    %14 = arith.index_cast %c0_i32_7 : i32 to index
    %c0_8 = arith.constant 0 : index
    %c0_9 = arith.constant 0 : index
    %15 = vector.load %arg6[%14, %c0_8, %c0_9] : memref<4x32x8xbf16, #tpu.memory_space<vmem>>, vector<1x32x8xbf16>
    %16 = vector.shape_cast %15 : vector<1x32x8xbf16> to vector<32x8xbf16>
    %cst_10 = arith.constant dense<0.000000e+00> : vector<8x8xf32>
    %17 = tpu.matmul %9, %16, %cst_10 {dimension_numbers = #tpu.dot_dimension_numbers<[1], [0], [0], [1], [0, 0, 1, 1], [], []>} : vector<8x32xbf16>, vector<32x8xbf16>, vector<8x8xf32> -> vector<8x8xf32>
    %18 = arith.index_cast %c0_i32_7 : i32 to index
    %c0_11 = arith.constant 0 : index
    %c0_12 = arith.constant 0 : index
    %19 = vector.load %arg10[%18, %c0_11, %c0_12] : memref<4x1x8xf32, #tpu.memory_space<vmem>>, vector<1x1x8xf32>
    %20 = vector.shape_cast %19 : vector<1x1x8xf32> to vector<1x8xf32>
    %21 = vector.broadcast %20 : vector<1x8xf32> to vector<8x8xf32>
    %22 = arith.addf %17, %21 : vector<8x8xf32>
    %23 = arith.truncf %22 : vector<8x8xf32> to vector<8x8xbf16>
    %24 = arith.index_cast %c0_i32_7 : i32 to index
    %c0_13 = arith.constant 0 : index
    %c0_14 = arith.constant 0 : index
    %25 = vector.load %arg24[%24, %c0_13, %c0_14] : memref<4x16x8xbf16, #tpu.memory_space<vmem>>, vector<1x16x8xbf16>
    %26 = vector.shape_cast %25 : vector<1x16x8xbf16> to vector<16x8xbf16>
    %cst_15 = arith.constant dense<0.000000e+00> : vector<8x16xf32>
    %27 = tpu.matmul %23, %26, %cst_15 {dimension_numbers = #tpu.dot_dimension_numbers<[1], [1], [0], [0], [0, 0, 1, 0], [], []>} : vector<8x8xbf16>, vector<16x8xbf16>, vector<8x16xf32> -> vector<8x16xf32>
    %28 = arith.addf %27, %11 : vector<8x16xf32>
    %cst_16 = arith.constant dense<0xFF800000> : vector<8xf32>
    %29 = vector.multi_reduction <maximumf>, %28, %cst_16 [1] : vector<8x16xf32> to vector<8xf32>
    %30 = vector.shape_cast %29 : vector<8xf32> to vector<8x1xf32>
    %31 = vector.broadcast %30 : vector<8x1xf32> to vector<8x16xf32>
    %32 = arith.subf %28, %31 : vector<8x16xf32>
    %33 = math.exp %32 : vector<8x16xf32>
    %cst_17 = arith.constant dense<0.000000e+00> : vector<8xf32>
    %34 = vector.multi_reduction <add>, %33, %cst_17 [1] : vector<8x16xf32> to vector<8xf32>
    %35 = vector.shape_cast %34 : vector<8xf32> to vector<8x1xf32>
    %36 = tpu.reciprocal %35 : vector<8x1xf32> -> vector<8x1xf32>
    %37 = vector.broadcast %36 : vector<8x1xf32> to vector<8x16xf32>
    %38 = arith.mulf %33, %37 : vector<8x16xf32>
    %39 = arith.truncf %38 : vector<8x16xf32> to vector<8x16xbf16>
    %40 = arith.index_cast %c0_i32_7 : i32 to index
    %c0_18 = arith.constant 0 : index
    %c0_19 = arith.constant 0 : index
    %41 = vector.load %arg25[%40, %c0_18, %c0_19] : memref<4x16x8xbf16, #tpu.memory_space<vmem>>, vector<1x16x8xbf16>
    %42 = vector.shape_cast %41 : vector<1x16x8xbf16> to vector<16x8xbf16>
    %cst_20 = arith.constant dense<0.000000e+00> : vector<8x8xf32>
    %43 = tpu.matmul %39, %42, %cst_20 {dimension_numbers = #tpu.dot_dimension_numbers<[1], [0], [0], [1], [0, 0, 1, 1], [], []>} : vector<8x16xbf16>, vector<16x8xbf16>, vector<8x8xf32> -> vector<8x8xf32>
    %c0_21 = arith.constant 0 : index
    %c0_22 = arith.constant 0 : index
    %44 = vector.load %arg26[%c0_21, %c0_22] : memref<8x32xf32, #tpu.memory_space<vmem>>, vector<8x32xf32>
    %45 = arith.truncf %43 : vector<8x8xf32> to vector<8x8xbf16>
    %46 = arith.index_cast %c0_i32_7 : i32 to index
    %c0_23 = arith.constant 0 : index
    %c0_24 = arith.constant 0 : index
    %47 = vector.load %arg9[%46, %c0_23, %c0_24] : memref<4x8x32xbf16, #tpu.memory_space<vmem>>, vector<1x8x32xbf16>
    %48 = vector.shape_cast %47 : vector<1x8x32xbf16> to vector<8x32xbf16>
    %cst_25 = arith.constant dense<0.000000e+00> : vector<8x32xf32>
    %49 = tpu.matmul %45, %48, %cst_25 {dimension_numbers = #tpu.dot_dimension_numbers<[1], [0], [0], [1], [0, 0, 1, 1], [], []>} : vector<8x8xbf16>, vector<8x32xbf16>, vector<8x32xf32> -> vector<8x32xf32>
    %50 = arith.addf %44, %49 : vector<8x32xf32>
    %c0_26 = arith.constant 0 : index
    %c0_27 = arith.constant 0 : index
    %51 = vector.load %arg26[%c0_26, %c0_27] : memref<8x32xf32, #tpu.memory_space<vmem>>, vector<8x32xf32>
    tpu.vector_store %arg26[%c0_26, %c0_27], %50 {strides = array<i32>} : memref<8x32xf32, #tpu.memory_space<vmem>>, vector<8x32xf32>,
    %c1_i32 = arith.constant 1 : i32
    %52 = arith.index_cast %c1_i32 : i32 to index
    %c0_28 = arith.constant 0 : index
    %c0_29 = arith.constant 0 : index
    %53 = vector.load %arg6[%52, %c0_28, %c0_29] : memref<4x32x8xbf16, #tpu.memory_space<vmem>>, vector<1x32x8xbf16>
    %54 = vector.shape_cast %53 : vector<1x32x8xbf16> to vector<32x8xbf16>
    %cst_30 = arith.constant dense<0.000000e+00> : vector<8x8xf32>
    %55 = tpu.matmul %9, %54, %cst_30 {dimension_numbers = #tpu.dot_dimension_numbers<[1], [0], [0], [1], [0, 0, 1, 1], [], []>} : vector<8x32xbf16>, vector<32x8xbf16>, vector<8x8xf32> -> vector<8x8xf32>
    %56 = arith.index_cast %c1_i32 : i32 to index
    %c0_31 = arith.constant 0 : index
    %c0_32 = arith.constant 0 : index
    %57 = vector.load %arg10[%56, %c0_31, %c0_32] : memref<4x1x8xf32, #tpu.memory_space<vmem>>, vector<1x1x8xf32>
    %58 = vector.shape_cast %57 : vector<1x1x8xf32> to vector<1x8xf32>
    %59 = vector.broadcast %58 : vector<1x8xf32> to vector<8x8xf32>
    %60 = arith.addf %55, %59 : vector<8x8xf32>
    %61 = arith.truncf %60 : vector<8x8xf32> to vector<8x8xbf16>
    %62 = arith.index_cast %c1_i32 : i32 to index
    %c0_33 = arith.constant 0 : index
    %c0_34 = arith.constant 0 : index
    %63 = vector.load %arg24[%62, %c0_33, %c0_34] : memref<4x16x8xbf16, #tpu.memory_space<vmem>>, vector<1x16x8xbf16>
    %64 = vector.shape_cast %63 : vector<1x16x8xbf16> to vector<16x8xbf16>
    %cst_35 = arith.constant dense<0.000000e+00> : vector<8x16xf32>
    %65 = tpu.matmul %61, %64, %cst_35 {dimension_numbers = #tpu.dot_dimension_numbers<[1], [1], [0], [0], [0, 0, 1, 0], [], []>} : vector<8x8xbf16>, vector<16x8xbf16>, vector<8x16xf32> -> vector<8x16xf32>
    %66 = arith.addf %65, %11 : vector<8x16xf32>
    %cst_36 = arith.constant dense<0xFF800000> : vector<8xf32>
    %67 = vector.multi_reduction <maximumf>, %66, %cst_36 [1] : vector<8x16xf32> to vector<8xf32>
    %68 = vector.shape_cast %67 : vector<8xf32> to vector<8x1xf32>
    %69 = vector.broadcast %68 : vector<8x1xf32> to vector<8x16xf32>
    %70 = arith.subf %66, %69 : vector<8x16xf32>
    %71 = math.exp %70 : vector<8x16xf32>
    %cst_37 = arith.constant dense<0.000000e+00> : vector<8xf32>
    %72 = vector.multi_reduction <add>, %71, %cst_37 [1] : vector<8x16xf32> to vector<8xf32>
    %73 = vector.shape_cast %72 : vector<8xf32> to vector<8x1xf32>
    %74 = tpu.reciprocal %73 : vector<8x1xf32> -> vector<8x1xf32>
    %75 = vector.broadcast %74 : vector<8x1xf32> to vector<8x16xf32>
    %76 = arith.mulf %71, %75 : vector<8x16xf32>
    %77 = arith.truncf %76 : vector<8x16xf32> to vector<8x16xbf16>
    %78 = arith.index_cast %c1_i32 : i32 to index
    %c0_38 = arith.constant 0 : index
    %c0_39 = arith.constant 0 : index
    %79 = vector.load %arg25[%78, %c0_38, %c0_39] : memref<4x16x8xbf16, #tpu.memory_space<vmem>>, vector<1x16x8xbf16>
    %80 = vector.shape_cast %79 : vector<1x16x8xbf16> to vector<16x8xbf16>
    %cst_40 = arith.constant dense<0.000000e+00> : vector<8x8xf32>
    %81 = tpu.matmul %77, %80, %cst_40 {dimension_numbers = #tpu.dot_dimension_numbers<[1], [0], [0], [1], [0, 0, 1, 1], [], []>} : vector<8x16xbf16>, vector<16x8xbf16>, vector<8x8xf32> -> vector<8x8xf32>
    %c0_41 = arith.constant 0 : index
    %c0_42 = arith.constant 0 : index
    %82 = vector.load %arg26[%c0_41, %c0_42] : memref<8x32xf32, #tpu.memory_space<vmem>>, vector<8x32xf32>
    %83 = arith.truncf %81 : vector<8x8xf32> to vector<8x8xbf16>
    %84 = arith.index_cast %c1_i32 : i32 to index
    %c0_43 = arith.constant 0 : index
    %c0_44 = arith.constant 0 : index
    %85 = vector.load %arg9[%84, %c0_43, %c0_44] : memref<4x8x32xbf16, #tpu.memory_space<vmem>>, vector<1x8x32xbf16>
    %86 = vector.shape_cast %85 : vector<1x8x32xbf16> to vector<8x32xbf16>
    %cst_45 = arith.constant dense<0.000000e+00> : vector<8x32xf32>
    %87 = tpu.matmul %83, %86, %cst_45 {dimension_numbers = #tpu.dot_dimension_numbers<[1], [0], [0], [1], [0, 0, 1, 1], [], []>} : vector<8x8xbf16>, vector<8x32xbf16>, vector<8x32xf32> -> vector<8x32xf32>
    %88 = arith.addf %82, %87 : vector<8x32xf32>
    %c0_46 = arith.constant 0 : index
    %c0_47 = arith.constant 0 : index
    %89 = vector.load %arg26[%c0_46, %c0_47] : memref<8x32xf32, #tpu.memory_space<vmem>>, vector<8x32xf32>
    tpu.vector_store %arg26[%c0_46, %c0_47], %88 {strides = array<i32>} : memref<8x32xf32, #tpu.memory_space<vmem>>, vector<8x32xf32>,
    %c2_i32 = arith.constant 2 : i32
    %90 = arith.index_cast %c2_i32 : i32 to index
    %c0_48 = arith.constant 0 : index
    %c0_49 = arith.constant 0 : index
    %91 = vector.load %arg6[%90, %c0_48, %c0_49] : memref<4x32x8xbf16, #tpu.memory_space<vmem>>, vector<1x32x8xbf16>
    %92 = vector.shape_cast %91 : vector<1x32x8xbf16> to vector<32x8xbf16>
    %cst_50 = arith.constant dense<0.000000e+00> : vector<8x8xf32>
    %93 = tpu.matmul %9, %92, %cst_50 {dimension_numbers = #tpu.dot_dimension_numbers<[1], [0], [0], [1], [0, 0, 1, 1], [], []>} : vector<8x32xbf16>, vector<32x8xbf16>, vector<8x8xf32> -> vector<8x8xf32>
    %94 = arith.index_cast %c2_i32 : i32 to index
    %c0_51 = arith.constant 0 : index
    %c0_52 = arith.constant 0 : index
    %95 = vector.load %arg10[%94, %c0_51, %c0_52] : memref<4x1x8xf32, #tpu.memory_space<vmem>>, vector<1x1x8xf32>
    %96 = vector.shape_cast %95 : vector<1x1x8xf32> to vector<1x8xf32>
    %97 = vector.broadcast %96 : vector<1x8xf32> to vector<8x8xf32>
    %98 = arith.addf %93, %97 : vector<8x8xf32>
    %99 = arith.truncf %98 : vector<8x8xf32> to vector<8x8xbf16>
    %100 = arith.index_cast %c2_i32 : i32 to index
    %c0_53 = arith.constant 0 : index
    %c0_54 = arith.constant 0 : index
    %101 = vector.load %arg24[%100, %c0_53, %c0_54] : memref<4x16x8xbf16, #tpu.memory_space<vmem>>, vector<1x16x8xbf16>
    %102 = vector.shape_cast %101 : vector<1x16x8xbf16> to vector<16x8xbf16>
    %cst_55 = arith.constant dense<0.000000e+00> : vector<8x16xf32>
    %103 = tpu.matmul %99, %102, %cst_55 {dimension_numbers = #tpu.dot_dimension_numbers<[1], [1], [0], [0], [0, 0, 1, 0], [], []>} : vector<8x8xbf16>, vector<16x8xbf16>, vector<8x16xf32> -> vector<8x16xf32>
    %104 = arith.addf %103, %11 : vector<8x16xf32>
    %cst_56 = arith.constant dense<0xFF800000> : vector<8xf32>
    %105 = vector.multi_reduction <maximumf>, %104, %cst_56 [1] : vector<8x16xf32> to vector<8xf32>
    %106 = vector.shape_cast %105 : vector<8xf32> to vector<8x1xf32>
    %107 = vector.broadcast %106 : vector<8x1xf32> to vector<8x16xf32>
    %108 = arith.subf %104, %107 : vector<8x16xf32>
    %109 = math.exp %108 : vector<8x16xf32>
    %cst_57 = arith.constant dense<0.000000e+00> : vector<8xf32>
    %110 = vector.multi_reduction <add>, %109, %cst_57 [1] : vector<8x16xf32> to vector<8xf32>
    %111 = vector.shape_cast %110 : vector<8xf32> to vector<8x1xf32>
    %112 = tpu.reciprocal %111 : vector<8x1xf32> -> vector<8x1xf32>
    %113 = vector.broadcast %112 : vector<8x1xf32> to vector<8x16xf32>
    %114 = arith.mulf %109, %113 : vector<8x16xf32>
    %115 = arith.truncf %114 : vector<8x16xf32> to vector<8x16xbf16>
    %116 = arith.index_cast %c2_i32 : i32 to index
    %c0_58 = arith.constant 0 : index
    %c0_59 = arith.constant 0 : index
    %117 = vector.load %arg25[%116, %c0_58, %c0_59] : memref<4x16x8xbf16, #tpu.memory_space<vmem>>, vector<1x16x8xbf16>
    %118 = vector.shape_cast %117 : vector<1x16x8xbf16> to vector<16x8xbf16>
    %cst_60 = arith.constant dense<0.000000e+00> : vector<8x8xf32>
    %119 = tpu.matmul %115, %118, %cst_60 {dimension_numbers = #tpu.dot_dimension_numbers<[1], [0], [0], [1], [0, 0, 1, 1], [], []>} : vector<8x16xbf16>, vector<16x8xbf16>, vector<8x8xf32> -> vector<8x8xf32>
    %c0_61 = arith.constant 0 : index
    %c0_62 = arith.constant 0 : index
    %120 = vector.load %arg26[%c0_61, %c0_62] : memref<8x32xf32, #tpu.memory_space<vmem>>, vector<8x32xf32>
    %121 = arith.truncf %119 : vector<8x8xf32> to vector<8x8xbf16>
    %122 = arith.index_cast %c2_i32 : i32 to index
    %c0_63 = arith.constant 0 : index
    %c0_64 = arith.constant 0 : index
    %123 = vector.load %arg9[%122, %c0_63, %c0_64] : memref<4x8x32xbf16, #tpu.memory_space<vmem>>, vector<1x8x32xbf16>
    %124 = vector.shape_cast %123 : vector<1x8x32xbf16> to vector<8x32xbf16>
    %cst_65 = arith.constant dense<0.000000e+00> : vector<8x32xf32>
    %125 = tpu.matmul %121, %124, %cst_65 {dimension_numbers = #tpu.dot_dimension_numbers<[1], [0], [0], [1], [0, 0, 1, 1], [], []>} : vector<8x8xbf16>, vector<8x32xbf16>, vector<8x32xf32> -> vector<8x32xf32>
    %126 = arith.addf %120, %125 : vector<8x32xf32>
    %c0_66 = arith.constant 0 : index
    %c0_67 = arith.constant 0 : index
    %127 = vector.load %arg26[%c0_66, %c0_67] : memref<8x32xf32, #tpu.memory_space<vmem>>, vector<8x32xf32>
    tpu.vector_store %arg26[%c0_66, %c0_67], %126 {strides = array<i32>} : memref<8x32xf32, #tpu.memory_space<vmem>>, vector<8x32xf32>,
    %c3_i32 = arith.constant 3 : i32
    %128 = arith.index_cast %c3_i32 : i32 to index
    %c0_68 = arith.constant 0 : index
    %c0_69 = arith.constant 0 : index
    %129 = vector.load %arg6[%128, %c0_68, %c0_69] : memref<4x32x8xbf16, #tpu.memory_space<vmem>>, vector<1x32x8xbf16>
    %130 = vector.shape_cast %129 : vector<1x32x8xbf16> to vector<32x8xbf16>
    %cst_70 = arith.constant dense<0.000000e+00> : vector<8x8xf32>
    %131 = tpu.matmul %9, %130, %cst_70 {dimension_numbers = #tpu.dot_dimension_numbers<[1], [0], [0], [1], [0, 0, 1, 1], [], []>} : vector<8x32xbf16>, vector<32x8xbf16>, vector<8x8xf32> -> vector<8x8xf32>
    %132 = arith.index_cast %c3_i32 : i32 to index
    %c0_71 = arith.constant 0 : index
    %c0_72 = arith.constant 0 : index
    %133 = vector.load %arg10[%132, %c0_71, %c0_72] : memref<4x1x8xf32, #tpu.memory_space<vmem>>, vector<1x1x8xf32>
    %134 = vector.shape_cast %133 : vector<1x1x8xf32> to vector<1x8xf32>
    %135 = vector.broadcast %134 : vector<1x8xf32> to vector<8x8xf32>
    %136 = arith.addf %131, %135 : vector<8x8xf32>
    %137 = arith.truncf %136 : vector<8x8xf32> to vector<8x8xbf16>
    %138 = arith.index_cast %c3_i32 : i32 to index
    %c0_73 = arith.constant 0 : index
    %c0_74 = arith.constant 0 : index
    %139 = vector.load %arg24[%138, %c0_73, %c0_74] : memref<4x16x8xbf16, #tpu.memory_space<vmem>>, vector<1x16x8xbf16>
    %140 = vector.shape_cast %139 : vector<1x16x8xbf16> to vector<16x8xbf16>
    %cst_75 = arith.constant dense<0.000000e+00> : vector<8x16xf32>
    %141 = tpu.matmul %137, %140, %cst_75 {dimension_numbers = #tpu.dot_dimension_numbers<[1], [1], [0], [0], [0, 0, 1, 0], [], []>} : vector<8x8xbf16>, vector<16x8xbf16>, vector<8x16xf32> -> vector<8x16xf32>
    %142 = arith.addf %141, %11 : vector<8x16xf32>
    %cst_76 = arith.constant dense<0xFF800000> : vector<8xf32>
    %143 = vector.multi_reduction <maximumf>, %142, %cst_76 [1] : vector<8x16xf32> to vector<8xf32>
    %144 = vector.shape_cast %143 : vector<8xf32> to vector<8x1xf32>
    %145 = vector.broadcast %144 : vector<8x1xf32> to vector<8x16xf32>
    %146 = arith.subf %142, %145 : vector<8x16xf32>
    %147 = math.exp %146 : vector<8x16xf32>
    %cst_77 = arith.constant dense<0.000000e+00> : vector<8xf32>
    %148 = vector.multi_reduction <add>, %147, %cst_77 [1] : vector<8x16xf32> to vector<8xf32>
    %149 = vector.shape_cast %148 : vector<8xf32> to vector<8x1xf32>
    %150 = tpu.reciprocal %149 : vector<8x1xf32> -> vector<8x1xf32>
    %151 = vector.broadcast %150 : vector<8x1xf32> to vector<8x16xf32>
    %152 = arith.mulf %147, %151 : vector<8x16xf32>
    %153 = arith.truncf %152 : vector<8x16xf32> to vector<8x16xbf16>
    %154 = arith.index_cast %c3_i32 : i32 to index
    %c0_78 = arith.constant 0 : index
    %c0_79 = arith.constant 0 : index
    %155 = vector.load %arg25[%154, %c0_78, %c0_79] : memref<4x16x8xbf16, #tpu.memory_space<vmem>>, vector<1x16x8xbf16>
    %156 = vector.shape_cast %155 : vector<1x16x8xbf16> to vector<16x8xbf16>
    %cst_80 = arith.constant dense<0.000000e+00> : vector<8x8xf32>
    %157 = tpu.matmul %153, %156, %cst_80 {dimension_numbers = #tpu.dot_dimension_numbers<[1], [0], [0], [1], [0, 0, 1, 1], [], []>} : vector<8x16xbf16>, vector<16x8xbf16>, vector<8x8xf32> -> vector<8x8xf32>
    %c0_81 = arith.constant 0 : index
    %c0_82 = arith.constant 0 : index
    %158 = vector.load %arg26[%c0_81, %c0_82] : memref<8x32xf32, #tpu.memory_space<vmem>>, vector<8x32xf32>
    %159 = arith.truncf %157 : vector<8x8xf32> to vector<8x8xbf16>
    %160 = arith.index_cast %c3_i32 : i32 to index
    %c0_83 = arith.constant 0 : index
    %c0_84 = arith.constant 0 : index
    %161 = vector.load %arg9[%160, %c0_83, %c0_84] : memref<4x8x32xbf16, #tpu.memory_space<vmem>>, vector<1x8x32xbf16>
    %162 = vector.shape_cast %161 : vector<1x8x32xbf16> to vector<8x32xbf16>
    %cst_85 = arith.constant dense<0.000000e+00> : vector<8x32xf32>
    %163 = tpu.matmul %159, %162, %cst_85 {dimension_numbers = #tpu.dot_dimension_numbers<[1], [0], [0], [1], [0, 0, 1, 1], [], []>} : vector<8x8xbf16>, vector<8x32xbf16>, vector<8x32xf32> -> vector<8x32xf32>
    %164 = arith.addf %158, %163 : vector<8x32xf32>
    %c0_86 = arith.constant 0 : index
    %c0_87 = arith.constant 0 : index
    %165 = vector.load %arg26[%c0_86, %c0_87] : memref<8x32xf32, #tpu.memory_space<vmem>>, vector<8x32xf32>
    tpu.vector_store %arg26[%c0_86, %c0_87], %164 {strides = array<i32>} : memref<8x32xf32, #tpu.memory_space<vmem>>, vector<8x32xf32>,
    %c4_i32 = arith.constant 4 : i32
    %c0_88 = arith.constant 0 : index
    %c0_89 = arith.constant 0 : index
    %166 = vector.load %arg26[%c0_88, %c0_89] : memref<8x32xf32, #tpu.memory_space<vmem>>, vector<8x32xf32>
    %167 = arith.addf %7, %166 : vector<8x32xf32>
    %c0_90 = arith.constant 0 : index
    %c0_91 = arith.constant 0 : index
    %168 = vector.load %arg13[%c0_90, %c0_91] : memref<1x32xf32, #tpu.memory_space<vmem>>, vector<1x32xf32>
    %169 = vector.broadcast %168 : vector<1x32xf32> to vector<8x32xf32>
    %170 = arith.addf %167, %169 : vector<8x32xf32>
    %c0_92 = arith.constant 0 : index
    %c0_93 = arith.constant 0 : index
    %171 = vector.load %arg14[%c0_92, %c0_93] : memref<1x32xf32, #tpu.memory_space<vmem>>, vector<1x32xf32>
    %c0_94 = arith.constant 0 : index
    %c0_95 = arith.constant 0 : index
    %172 = vector.load %arg15[%c0_94, %c0_95] : memref<1x32xf32, #tpu.memory_space<vmem>>, vector<1x32xf32>
    %cst_96 = arith.constant dense<0.000000e+00> : vector<8xf32>
    %173 = vector.multi_reduction <add>, %170, %cst_96 [1] : vector<8x32xf32> to vector<8xf32>
    %174 = vector.shape_cast %173 : vector<8xf32> to vector<8x1xf32>
    %cst_97 = arith.constant 3.200000e+01 : f32
    %175 = vector.broadcast %cst_97 : f32 to vector<8x1xf32>
    %176 = arith.divf %174, %175 : vector<8x1xf32>
    %177 = vector.broadcast %176 : vector<8x1xf32> to vector<8x32xf32>
    %178 = arith.subf %170, %177 : vector<8x32xf32>
    %179 = arith.mulf %178, %178 : vector<8x32xf32>
    %cst_98 = arith.constant dense<0.000000e+00> : vector<8xf32>
    %180 = vector.multi_reduction <add>, %179, %cst_98 [1] : vector<8x32xf32> to vector<8xf32>
    %181 = vector.shape_cast %180 : vector<8xf32> to vector<8x1xf32>
    %cst_99 = arith.constant 0.0322580636 : f32
    %182 = vector.broadcast %cst_99 : f32 to vector<8x1xf32>
    %183 = arith.mulf %181, %182 : vector<8x1xf32>
    %184 = math.sqrt %183 : vector<8x1xf32>
    %185 = vector.broadcast %176 : vector<8x1xf32> to vector<8x32xf32>
    %186 = arith.subf %170, %185 : vector<8x32xf32>
    %187 = vector.broadcast %171 : vector<1x32xf32> to vector<8x32xf32>
    %188 = arith.mulf %187, %186 : vector<8x32xf32>
    %cst_100 = arith.constant 9.99999997E-7 : f32
    %189 = vector.broadcast %cst_100 : f32 to vector<8x1xf32>
    %190 = arith.addf %184, %189 : vector<8x1xf32>
    %191 = math.rsqrt %190 : vector<8x1xf32>
    %192 = vector.broadcast %191 : vector<8x1xf32> to vector<8x32xf32>
    %193 = arith.mulf %188, %192 : vector<8x32xf32>
    %194 = vector.broadcast %172 : vector<1x32xf32> to vector<8x32xf32>
    %195 = arith.addf %193, %194 : vector<8x32xf32>
    %196 = arith.truncf %195 : vector<8x32xf32> to vector<8x32xbf16>
    %c0_101 = arith.constant 0 : index
    %c0_102 = arith.constant 0 : index
    %197 = vector.load %arg16[%c0_101, %c0_102] : memref<32x64xbf16, #tpu.memory_space<vmem>>, vector<32x64xbf16>
    %cst_103 = arith.constant dense<0.000000e+00> : vector<8x64xf32>
    %198 = tpu.matmul %196, %197, %cst_103 {dimension_numbers = #tpu.dot_dimension_numbers<[1], [0], [0], [1], [0, 0, 1, 1], [], []>} : vector<8x32xbf16>, vector<32x64xbf16>, vector<8x64xf32> -> vector<8x64xf32>
    %c0_104 = arith.constant 0 : index
    %c0_105 = arith.constant 0 : index
    %199 = vector.load %arg17[%c0_104, %c0_105] : memref<1x64xf32, #tpu.memory_space<vmem>>, vector<1x64xf32>
    %200 = vector.broadcast %199 : vector<1x64xf32> to vector<8x64xf32>
    %201 = arith.addf %198, %200 : vector<8x64xf32>
    %202 = arith.truncf %201 : vector<8x64xf32> to vector<8x64xbf16>
    %c0_106 = arith.constant 0 : index
    %c0_107 = arith.constant 0 : index
    %203 = vector.load %arg18[%c0_106, %c0_107] : memref<64x32xbf16, #tpu.memory_space<vmem>>, vector<64x32xbf16>
    %cst_108 = arith.constant dense<0.000000e+00> : vector<8x32xf32>
    %204 = tpu.matmul %202, %203, %cst_108 {dimension_numbers = #tpu.dot_dimension_numbers<[1], [0], [0], [1], [0, 0, 1, 1], [], []>} : vector<8x64xbf16>, vector<64x32xbf16>, vector<8x32xf32> -> vector<8x32xf32>
    %c0_109 = arith.constant 0 : index
    %c0_110 = arith.constant 0 : index
    %205 = vector.load %arg19[%c0_109, %c0_110] : memref<1x32xf32, #tpu.memory_space<vmem>>, vector<1x32xf32>
    %206 = vector.broadcast %205 : vector<1x32xf32> to vector<8x32xf32>
    %207 = arith.addf %204, %206 : vector<8x32xf32>
    %208 = arith.addf %170, %207 : vector<8x32xf32>
    %209 = arith.truncf %208 : vector<8x32xf32> to vector<8x32xbf16>
    %c0_111 = arith.constant 0 : index
    %c0_112 = arith.constant 0 : index
    %c0_113 = arith.constant 0 : index
    %210 = vector.load %arg22[%c0_111, %c0_112, %c0_113] : memref<1x8x32xbf16, #tpu.memory_space<vmem>>, vector<1x8x32xbf16>
    %211 = vector.shape_cast %210 : vector<1x8x32xbf16> to vector<8x32xbf16>
    %212 = vector.shape_cast %209 : vector<8x32xbf16> to vector<1x8x32xbf16>
    tpu.vector_store %arg22[%c0_111, %c0_112, %c0_113], %212 {strides = array<i32>} : memref<1x8x32xbf16, #tpu.memory_space<vmem>>, vector<1x8x32xbf16>,
    return
  }
  func.func @transform_0(%arg0: i32, %arg1: i32) -> (i32, i32, i32) {
    %c0_i32 = arith.constant 0 : i32
    %c0_i32_0 = arith.constant 0 : i32
    %c0_i32_1 = arith.constant 0 : i32
    return %arg0, %c0_i32, %c0_i32_0 : i32, i32, i32
  }
  func.func @transform_1(%arg0: i32, %arg1: i32) -> (i32, i32) {
    %c0_i32 = arith.constant 0 : i32
    %c0_i32_0 = arith.constant 0 : i32
    return %arg1, %c0_i32 : i32, i32
  }
  func.func @transform_2(%arg0: i32, %arg1: i32) -> (i32, i32) {
    %c0_i32 = arith.constant 0 : i32
    %c0_i32_0 = arith.constant 0 : i32
    %c0_i32_1 = arith.constant 0 : i32
    return %c0_i32, %c0_i32_0 : i32, i32
  }
  func.func @transform_3(%arg0: i32, %arg1: i32) -> (i32, i32) {
    %c0_i32 = arith.constant 0 : i32
    %c0_i32_0 = arith.constant 0 : i32
    %c0_i32_1 = arith.constant 0 : i32
    return %c0_i32, %c0_i32_0 : i32, i32
  }
  func.func @transform_4(%arg0: i32, %arg1: i32) -> (i32, i32, i32) {
    %c0_i32 = arith.constant 0 : i32
    %c0_i32_0 = arith.constant 0 : i32
    %c0_i32_1 = arith.constant 0 : i32
    %c0_i32_2 = arith.constant 0 : i32
    return %c0_i32, %c0_i32_0, %c0_i32_1 : i32, i32, i32
  }
  func.func @transform_5(%arg0: i32, %arg1: i32) -> (i32, i32, i32) {
    %c0_i32 = arith.constant 0 : i32
    %c0_i32_0 = arith.constant 0 : i32
    %c0_i32_1 = arith.constant 0 : i32
    %c0_i32_2 = arith.constant 0 : i32
    return %c0_i32, %c0_i32_0, %c0_i32_1 : i32, i32, i32
  }
  func.func @transform_6(%arg0: i32, %arg1: i32) -> (i32, i32, i32) {
    %c0_i32 = arith.constant 0 : i32
    %c0_i32_0 = arith.constant 0 : i32
    %c0_i32_1 = arith.constant 0 : i32
    %c0_i32_2 = arith.constant 0 : i32
    return %c0_i32, %c0_i32_0, %c0_i32_1 : i32, i32, i32
  }
  func.func @transform_7(%arg0: i32, %arg1: i32) -> (i32, i32, i32) {
    %c0_i32 = arith.constant 0 : i32
    %c0_i32_0 = arith.constant 0 : i32
    %c0_i32_1 = arith.constant 0 : i32
    %c0_i32_2 = arith.constant 0 : i32
    return %c0_i32, %c0_i32_0, %c0_i32_1 : i32, i32, i32
  }
  func.func @transform_8(%arg0: i32, %arg1: i32) -> (i32, i32, i32) {
    %c0_i32 = arith.constant 0 : i32
    %c0_i32_0 = arith.constant 0 : i32
    %c0_i32_1 = arith.constant 0 : i32
    %c0_i32_2 = arith.constant 0 : i32
    return %c0_i32, %c0_i32_0, %c0_i32_1 : i32, i32, i32
  }
  func.func @transform_9(%arg0: i32, %arg1: i32) -> (i32, i32, i32) {
    %c0_i32 = arith.constant 0 : i32
    %c0_i32_0 = arith.constant 0 : i32
    %c0_i32_1 = arith.constant 0 : i32
    %c0_i32_2 = arith.constant 0 : i32
    return %c0_i32, %c0_i32_0, %c0_i32_1 : i32, i32, i32
  }
  func.func @transform_10(%arg0: i32, %arg1: i32) -> (i32, i32, i32) {
    %c0_i32 = arith.constant 0 : i32
    %c0_i32_0 = arith.constant 0 : i32
    %c0_i32_1 = arith.constant 0 : i32
    %c0_i32_2 = arith.constant 0 : i32
    return %c0_i32, %c0_i32_0, %c0_i32_1 : i32, i32, i32
  }
  func.func @transform_11(%arg0: i32, %arg1: i32) -> (i32, i32) {
    %c0_i32 = arith.constant 0 : i32
    %c0_i32_0 = arith.constant 0 : i32
    %c0_i32_1 = arith.constant 0 : i32
    return %c0_i32, %c0_i32_0 : i32, i32
  }
  func.func @transform_12(%arg0: i32, %arg1: i32) -> (i32, i32) {
    %c0_i32 = arith.constant 0 : i32
    %c0_i32_0 = arith.constant 0 : i32
    %c0_i32_1 = arith.constant 0 : i32
    return %c0_i32, %c0_i32_0 : i32, i32
  }
  func.func @transform_13(%arg0: i32, %arg1: i32) -> (i32, i32) {
    %c0_i32 = arith.constant 0 : i32
    %c0_i32_0 = arith.constant 0 : i32
    %c0_i32_1 = arith.constant 0 : i32
    return %c0_i32, %c0_i32_0 : i32, i32
  }
  func.func @transform_14(%arg0: i32, %arg1: i32) -> (i32, i32) {
    %c0_i32 = arith.constant 0 : i32
    %c0_i32_0 = arith.constant 0 : i32
    %c0_i32_1 = arith.constant 0 : i32
    return %c0_i32, %c0_i32_0 : i32, i32
  }
  func.func @transform_15(%arg0: i32, %arg1: i32) -> (i32, i32) {
    %c0_i32 = arith.constant 0 : i32
    %c0_i32_0 = arith.constant 0 : i32
    %c0_i32_1 = arith.constant 0 : i32
    return %c0_i32, %c0_i32_0 : i32, i32
  }
  func.func @transform_16(%arg0: i32, %arg1: i32) -> (i32, i32) {
    %c0_i32 = arith.constant 0 : i32
    %c0_i32_0 = arith.constant 0 : i32
    %c0_i32_1 = arith.constant 0 : i32
    return %c0_i32, %c0_i32_0 : i32, i32
  }
  func.func @transform_17(%arg0: i32, %arg1: i32) -> (i32, i32) {
    %c0_i32 = arith.constant 0 : i32
    %c0_i32_0 = arith.constant 0 : i32
    %c0_i32_1 = arith.constant 0 : i32
    return %c0_i32, %c0_i32_0 : i32, i32
  }
  func.func @transform_18(%arg0: i32, %arg1: i32) -> (i32, i32) {
    %c0_i32 = arith.constant 0 : i32
    %c0_i32_0 = arith.constant 0 : i32
    %c0_i32_1 = arith.constant 0 : i32
    return %c0_i32, %c0_i32_0 : i32, i32
  }
  func.func @transform_19(%arg0: i32, %arg1: i32) -> (i32, i32) {
    %c0_i32 = arith.constant 0 : i32
    %c0_i32_0 = arith.constant 0 : i32
    %c0_i32_1 = arith.constant 0 : i32
    return %c0_i32, %c0_i32_0 : i32, i32
  }
  func.func @transform_20(%arg0: i32, %arg1: i32) -> (i32, i32, i32) {
    %c0_i32 = arith.constant 0 : i32
    %c0_i32_0 = arith.constant 0 : i32
    return %arg0, %arg1, %c0_i32 : i32, i32, i32
  }
}

module attributes {stable_mosaic.version = 11 : i64} {
  func.func @_encoder_layer_kernel(%arg0: i32, %arg1: i32, %arg2: memref<1x16x32xbf16, #tpu.memory_space<vmem>>, %arg3: memref<8x16xbf16, #tpu.memory_space<vmem>>, %arg4: memref<1x32xf32, #tpu.memory_space<vmem>>, %arg5: memref<1x32xf32, #tpu.memory_space<vmem>>, %arg6: memref<4x32x8xbf16, #tpu.memory_space<vmem>>, %arg7: memref<4x32x8xbf16, #tpu.memory_space<vmem>>, %arg8: memref<4x32x8xbf16, #tpu.memory_space<vmem>>, %arg9: memref<4x8x32xbf16, #tpu.memory_space<vmem>>, %arg10: memref<4x1x8xf32, #tpu.memory_space<vmem>>, %arg11: memref<4x1x8xf32, #tpu.memory_space<vmem>>, %arg12: memref<4x1x8xf32, #tpu.memory_space<vmem>>, %arg13: memref<1x32xf32, #tpu.memory_space<vmem>>, %arg14: memref<1x32xf32, #tpu.memory_space<vmem>>, %arg15: memref<1x32xf32, #tpu.memory_space<vmem>>, %arg16: memref<32x64xbf16, #tpu.memory_space<vmem>>, %arg17: memref<1x64xf32, #tpu.memory_space<vmem>>, %arg18: memref<64x32xbf16, #tpu.memory_space<vmem>>, %arg19: memref<1x32xf32, #tpu.memory_space<vmem>>, %arg20: memref<1x32xf32, #tpu.memory_space<vmem>>, %arg21: memref<1x32xf32, #tpu.memory_space<vmem>>, %arg22: memref<1x8x32xf32, #tpu.memory_space<vmem>>, %arg23: memref<16x32xbf16, #tpu.memory_space<vmem>>, %arg24: memref<4x16x8xbf16, #tpu.memory_space<vmem>>, %arg25: memref<4x16x8xbf16, #tpu.memory_space<vmem>>, %arg26: memref<8x32xf32, #tpu.memory_space<vmem>>) attributes {dimension_semantics = [#tpu.dimension_semantics<parallel>, #tpu.dimension_semantics<arbitrary>], iteration_bounds = array<i64: 2, 2>, scalar_prefetch = 0 : i64, scratch_operands = 4 : i64, tpu.core_type = #tpu.core_type<tc>, window_params = [{transform_indices = @transform_0, window_bounds = array<i64: 1, 16, 32>}, {transform_indices = @transform_1, window_bounds = array<i64: 8, 16>}, {pipeline_mode = #tpu.pipeline_mode<synchronous>, transform_indices = @transform_2, window_bounds = array<i64: 1, 32>}, {pipeline_mode = #tpu.pipeline_mode<synchronous>, transform_indices = @transform_3, window_bounds = array<i64: 1, 32>}, {pipeline_mode = #tpu.pipeline_mode<synchronous>, transform_indices = @transform_4, window_bounds = array<i64: 4, 32, 8>}, {pipeline_mode = #tpu.pipeline_mode<synchronous>, transform_indices = @transform_5, window_bounds = array<i64: 4, 32, 8>}, {pipeline_mode = #tpu.pipeline_mode<synchronous>, transform_indices = @transform_6, window_bounds = array<i64: 4, 32, 8>}, {pipeline_mode = #tpu.pipeline_mode<synchronous>, transform_indices = @transform_7, window_bounds = array<i64: 4, 8, 32>}, {pipeline_mode = #tpu.pipeline_mode<synchronous>, transform_indices = @transform_8, window_bounds = array<i64: 4, 1, 8>}, {pipeline_mode = #tpu.pipeline_mode<synchronous>, transform_indices = @transform_9, window_bounds = array<i64: 4, 1, 8>}, {pipeline_mode = #tpu.pipeline_mode<synchronous>, transform_indices = @transform_10, window_bounds = array<i64: 4, 1, 8>}, {pipeline_mode = #tpu.pipeline_mode<synchronous>, transform_indices = @transform_11, window_bounds = array<i64: 1, 32>}, {pipeline_mode = #tpu.pipeline_mode<synchronous>, transform_indices = @transform_12, window_bounds = array<i64: 1, 32>}, {pipeline_mode = #tpu.pipeline_mode<synchronous>, transform_indices = @transform_13, window_bounds = array<i64: 1, 32>}, {pipeline_mode = #tpu.pipeline_mode<synchronous>, transform_indices = @transform_14, window_bounds = array<i64: 32, 64>}, {pipeline_mode = #tpu.pipeline_mode<synchronous>, transform_indices = @transform_15, window_bounds = array<i64: 1, 64>}, {pipeline_mode = #tpu.pipeline_mode<synchronous>, transform_indices = @transform_16, window_bounds = array<i64: 64, 32>}, {pipeline_mode = #tpu.pipeline_mode<synchronous>, transform_indices = @transform_17, window_bounds = array<i64: 1, 32>}, {pipeline_mode = #tpu.pipeline_mode<synchronous>, transform_indices = @transform_18, window_bounds = array<i64: 1, 32>}, {pipeline_mode = #tpu.pipeline_mode<synchronous>, transform_indices = @transform_19, window_bounds = array<i64: 1, 32>}, {transform_indices = @transform_20, window_bounds = array<i64: 1, 8, 32>}]} {
    %c0_i32 = arith.constant 0 : i32
    %0 = arith.cmpi eq, %arg1, %c0_i32 : i32
    %1 = arith.extui %0 : i1 to i32
    %c0_i32_0 = arith.constant 0 : i32
    %2 = arith.cmpi ne, %1, %c0_i32_0 : i32
    scf.if %2 {
      %c0_123 = arith.constant 0 : index
      %c0_124 = arith.constant 0 : index
      %c0_125 = arith.constant 0 : index
      %238 = vector.load %arg2[%c0_123, %c0_124, %c0_125] : memref<1x16x32xbf16, #tpu.memory_space<vmem>>, vector<1x16x32xbf16>
      %239 = vector.shape_cast %238 : vector<1x16x32xbf16> to vector<16x32xbf16>
      %240 = arith.extf %239 : vector<16x32xbf16> to vector<16x32xf32>
      %c0_126 = arith.constant 0 : index
      %c0_127 = arith.constant 0 : index
      %241 = vector.load %arg4[%c0_126, %c0_127] : memref<1x32xf32, #tpu.memory_space<vmem>>, vector<1x32xf32>
      %c0_128 = arith.constant 0 : index
      %c0_129 = arith.constant 0 : index
      %242 = vector.load %arg5[%c0_128, %c0_129] : memref<1x32xf32, #tpu.memory_space<vmem>>, vector<1x32xf32>
      %cst_130 = arith.constant dense<0.000000e+00> : vector<16xf32>
      %243 = vector.multi_reduction <add>, %240, %cst_130 [1] : vector<16x32xf32> to vector<16xf32>
      %244 = vector.shape_cast %243 : vector<16xf32> to vector<16x1xf32>
      %cst_131 = arith.constant 3.200000e+01 : f32
      %245 = vector.broadcast %cst_131 : f32 to vector<16x1xf32>
      %246 = arith.divf %244, %245 : vector<16x1xf32>
      %247 = vector.broadcast %246 : vector<16x1xf32> to vector<16x32xf32>
      %248 = arith.subf %240, %247 : vector<16x32xf32>
      %249 = arith.mulf %248, %248 : vector<16x32xf32>
      %cst_132 = arith.constant dense<0.000000e+00> : vector<16xf32>
      %250 = vector.multi_reduction <add>, %249, %cst_132 [1] : vector<16x32xf32> to vector<16xf32>
      %251 = vector.shape_cast %250 : vector<16xf32> to vector<16x1xf32>
      %cst_133 = arith.constant 0.0322580636 : f32
      %252 = vector.broadcast %cst_133 : f32 to vector<16x1xf32>
      %253 = arith.mulf %251, %252 : vector<16x1xf32>
      %254 = math.sqrt %253 : vector<16x1xf32>
      %255 = vector.broadcast %246 : vector<16x1xf32> to vector<16x32xf32>
      %256 = arith.subf %240, %255 : vector<16x32xf32>
      %257 = vector.broadcast %241 : vector<1x32xf32> to vector<16x32xf32>
      %258 = arith.mulf %257, %256 : vector<16x32xf32>
      %cst_134 = arith.constant 9.99999997E-7 : f32
      %259 = vector.broadcast %cst_134 : f32 to vector<16x1xf32>
      %260 = arith.addf %254, %259 : vector<16x1xf32>
      %261 = math.rsqrt %260 : vector<16x1xf32>
      %262 = vector.broadcast %261 : vector<16x1xf32> to vector<16x32xf32>
      %263 = arith.mulf %258, %262 : vector<16x32xf32>
      %264 = vector.broadcast %242 : vector<1x32xf32> to vector<16x32xf32>
      %265 = arith.addf %263, %264 : vector<16x32xf32>
      %266 = arith.truncf %265 : vector<16x32xf32> to vector<16x32xbf16>
      %c0_135 = arith.constant 0 : index
      %c0_136 = arith.constant 0 : index
      %267 = vector.load %arg23[%c0_135, %c0_136] : memref<16x32xbf16, #tpu.memory_space<vmem>>, vector<16x32xbf16>
      tpu.vector_store %arg23[%c0_135, %c0_136], %266 {strides = array<i32>} : memref<16x32xbf16, #tpu.memory_space<vmem>>, vector<16x32xbf16>,
      %c0_i32_137 = arith.constant 0 : i32
      %268 = arith.index_cast %c0_i32_137 : i32 to index
      %c0_138 = arith.constant 0 : index
      %c0_139 = arith.constant 0 : index
      %269 = vector.load %arg7[%268, %c0_138, %c0_139] : memref<4x32x8xbf16, #tpu.memory_space<vmem>>, vector<1x32x8xbf16>
      %270 = vector.shape_cast %269 : vector<1x32x8xbf16> to vector<32x8xbf16>
      %cst_140 = arith.constant dense<0.000000e+00> : vector<16x8xf32>
      %271 = tpu.matmul %266, %270, %cst_140 {dimension_numbers = #tpu.dot_dimension_numbers<[1], [0], [0], [1], [0, 0, 1, 1], [], []>} : vector<16x32xbf16>, vector<32x8xbf16>, vector<16x8xf32> -> vector<16x8xf32>
      %272 = arith.index_cast %c0_i32_137 : i32 to index
      %c0_141 = arith.constant 0 : index
      %c0_142 = arith.constant 0 : index
      %273 = vector.load %arg11[%272, %c0_141, %c0_142] : memref<4x1x8xf32, #tpu.memory_space<vmem>>, vector<1x1x8xf32>
      %274 = vector.shape_cast %273 : vector<1x1x8xf32> to vector<1x8xf32>
      %275 = vector.broadcast %274 : vector<1x8xf32> to vector<16x8xf32>
      %276 = arith.addf %271, %275 : vector<16x8xf32>
      %277 = arith.index_cast %c0_i32_137 : i32 to index
      %c0_143 = arith.constant 0 : index
      %c0_144 = arith.constant 0 : index
      %278 = vector.load %arg8[%277, %c0_143, %c0_144] : memref<4x32x8xbf16, #tpu.memory_space<vmem>>, vector<1x32x8xbf16>
      %279 = vector.shape_cast %278 : vector<1x32x8xbf16> to vector<32x8xbf16>
      %cst_145 = arith.constant dense<0.000000e+00> : vector<16x8xf32>
      %280 = tpu.matmul %266, %279, %cst_145 {dimension_numbers = #tpu.dot_dimension_numbers<[1], [0], [0], [1], [0, 0, 1, 1], [], []>} : vector<16x32xbf16>, vector<32x8xbf16>, vector<16x8xf32> -> vector<16x8xf32>
      %281 = arith.index_cast %c0_i32_137 : i32 to index
      %c0_146 = arith.constant 0 : index
      %c0_147 = arith.constant 0 : index
      %282 = vector.load %arg12[%281, %c0_146, %c0_147] : memref<4x1x8xf32, #tpu.memory_space<vmem>>, vector<1x1x8xf32>
      %283 = vector.shape_cast %282 : vector<1x1x8xf32> to vector<1x8xf32>
      %284 = vector.broadcast %283 : vector<1x8xf32> to vector<16x8xf32>
      %285 = arith.addf %280, %284 : vector<16x8xf32>
      %286 = arith.truncf %276 : vector<16x8xf32> to vector<16x8xbf16>
      %287 = arith.index_cast %c0_i32_137 : i32 to index
      %c0_148 = arith.constant 0 : index
      %c0_149 = arith.constant 0 : index
      %288 = vector.load %arg24[%287, %c0_148, %c0_149] : memref<4x16x8xbf16, #tpu.memory_space<vmem>>, vector<1x16x8xbf16>
      %289 = vector.shape_cast %288 : vector<1x16x8xbf16> to vector<16x8xbf16>
      %290 = vector.shape_cast %286 : vector<16x8xbf16> to vector<1x16x8xbf16>
      tpu.vector_store %arg24[%287, %c0_148, %c0_149], %290 {strides = array<i32>} : memref<4x16x8xbf16, #tpu.memory_space<vmem>>, vector<1x16x8xbf16>,
      %291 = arith.truncf %285 : vector<16x8xf32> to vector<16x8xbf16>
      %292 = arith.index_cast %c0_i32_137 : i32 to index
      %c0_150 = arith.constant 0 : index
      %c0_151 = arith.constant 0 : index
      %293 = vector.load %arg25[%292, %c0_150, %c0_151] : memref<4x16x8xbf16, #tpu.memory_space<vmem>>, vector<1x16x8xbf16>
      %294 = vector.shape_cast %293 : vector<1x16x8xbf16> to vector<16x8xbf16>
      %295 = vector.shape_cast %291 : vector<16x8xbf16> to vector<1x16x8xbf16>
      tpu.vector_store %arg25[%292, %c0_150, %c0_151], %295 {strides = array<i32>} : memref<4x16x8xbf16, #tpu.memory_space<vmem>>, vector<1x16x8xbf16>,
      %c1_i32_152 = arith.constant 1 : i32
      %296 = arith.index_cast %c1_i32_152 : i32 to index
      %c0_153 = arith.constant 0 : index
      %c0_154 = arith.constant 0 : index
      %297 = vector.load %arg7[%296, %c0_153, %c0_154] : memref<4x32x8xbf16, #tpu.memory_space<vmem>>, vector<1x32x8xbf16>
      %298 = vector.shape_cast %297 : vector<1x32x8xbf16> to vector<32x8xbf16>
      %cst_155 = arith.constant dense<0.000000e+00> : vector<16x8xf32>
      %299 = tpu.matmul %266, %298, %cst_155 {dimension_numbers = #tpu.dot_dimension_numbers<[1], [0], [0], [1], [0, 0, 1, 1], [], []>} : vector<16x32xbf16>, vector<32x8xbf16>, vector<16x8xf32> -> vector<16x8xf32>
      %300 = arith.index_cast %c1_i32_152 : i32 to index
      %c0_156 = arith.constant 0 : index
      %c0_157 = arith.constant 0 : index
      %301 = vector.load %arg11[%300, %c0_156, %c0_157] : memref<4x1x8xf32, #tpu.memory_space<vmem>>, vector<1x1x8xf32>
      %302 = vector.shape_cast %301 : vector<1x1x8xf32> to vector<1x8xf32>
      %303 = vector.broadcast %302 : vector<1x8xf32> to vector<16x8xf32>
      %304 = arith.addf %299, %303 : vector<16x8xf32>
      %305 = arith.index_cast %c1_i32_152 : i32 to index
      %c0_158 = arith.constant 0 : index
      %c0_159 = arith.constant 0 : index
      %306 = vector.load %arg8[%305, %c0_158, %c0_159] : memref<4x32x8xbf16, #tpu.memory_space<vmem>>, vector<1x32x8xbf16>
      %307 = vector.shape_cast %306 : vector<1x32x8xbf16> to vector<32x8xbf16>
      %cst_160 = arith.constant dense<0.000000e+00> : vector<16x8xf32>
      %308 = tpu.matmul %266, %307, %cst_160 {dimension_numbers = #tpu.dot_dimension_numbers<[1], [0], [0], [1], [0, 0, 1, 1], [], []>} : vector<16x32xbf16>, vector<32x8xbf16>, vector<16x8xf32> -> vector<16x8xf32>
      %309 = arith.index_cast %c1_i32_152 : i32 to index
      %c0_161 = arith.constant 0 : index
      %c0_162 = arith.constant 0 : index
      %310 = vector.load %arg12[%309, %c0_161, %c0_162] : memref<4x1x8xf32, #tpu.memory_space<vmem>>, vector<1x1x8xf32>
      %311 = vector.shape_cast %310 : vector<1x1x8xf32> to vector<1x8xf32>
      %312 = vector.broadcast %311 : vector<1x8xf32> to vector<16x8xf32>
      %313 = arith.addf %308, %312 : vector<16x8xf32>
      %314 = arith.truncf %304 : vector<16x8xf32> to vector<16x8xbf16>
      %315 = arith.index_cast %c1_i32_152 : i32 to index
      %c0_163 = arith.constant 0 : index
      %c0_164 = arith.constant 0 : index
      %316 = vector.load %arg24[%315, %c0_163, %c0_164] : memref<4x16x8xbf16, #tpu.memory_space<vmem>>, vector<1x16x8xbf16>
      %317 = vector.shape_cast %316 : vector<1x16x8xbf16> to vector<16x8xbf16>
      %318 = vector.shape_cast %314 : vector<16x8xbf16> to vector<1x16x8xbf16>
      tpu.vector_store %arg24[%315, %c0_163, %c0_164], %318 {strides = array<i32>} : memref<4x16x8xbf16, #tpu.memory_space<vmem>>, vector<1x16x8xbf16>,
      %319 = arith.truncf %313 : vector<16x8xf32> to vector<16x8xbf16>
      %320 = arith.index_cast %c1_i32_152 : i32 to index
      %c0_165 = arith.constant 0 : index
      %c0_166 = arith.constant 0 : index
      %321 = vector.load %arg25[%320, %c0_165, %c0_166] : memref<4x16x8xbf16, #tpu.memory_space<vmem>>, vector<1x16x8xbf16>
      %322 = vector.shape_cast %321 : vector<1x16x8xbf16> to vector<16x8xbf16>
      %323 = vector.shape_cast %319 : vector<16x8xbf16> to vector<1x16x8xbf16>
      tpu.vector_store %arg25[%320, %c0_165, %c0_166], %323 {strides = array<i32>} : memref<4x16x8xbf16, #tpu.memory_space<vmem>>, vector<1x16x8xbf16>,
      %c2_i32_167 = arith.constant 2 : i32
      %324 = arith.index_cast %c2_i32_167 : i32 to index
      %c0_168 = arith.constant 0 : index
      %c0_169 = arith.constant 0 : index
      %325 = vector.load %arg7[%324, %c0_168, %c0_169] : memref<4x32x8xbf16, #tpu.memory_space<vmem>>, vector<1x32x8xbf16>
      %326 = vector.shape_cast %325 : vector<1x32x8xbf16> to vector<32x8xbf16>
      %cst_170 = arith.constant dense<0.000000e+00> : vector<16x8xf32>
      %327 = tpu.matmul %266, %326, %cst_170 {dimension_numbers = #tpu.dot_dimension_numbers<[1], [0], [0], [1], [0, 0, 1, 1], [], []>} : vector<16x32xbf16>, vector<32x8xbf16>, vector<16x8xf32> -> vector<16x8xf32>
      %328 = arith.index_cast %c2_i32_167 : i32 to index
      %c0_171 = arith.constant 0 : index
      %c0_172 = arith.constant 0 : index
      %329 = vector.load %arg11[%328, %c0_171, %c0_172] : memref<4x1x8xf32, #tpu.memory_space<vmem>>, vector<1x1x8xf32>
      %330 = vector.shape_cast %329 : vector<1x1x8xf32> to vector<1x8xf32>
      %331 = vector.broadcast %330 : vector<1x8xf32> to vector<16x8xf32>
      %332 = arith.addf %327, %331 : vector<16x8xf32>
      %333 = arith.index_cast %c2_i32_167 : i32 to index
      %c0_173 = arith.constant 0 : index
      %c0_174 = arith.constant 0 : index
      %334 = vector.load %arg8[%333, %c0_173, %c0_174] : memref<4x32x8xbf16, #tpu.memory_space<vmem>>, vector<1x32x8xbf16>
      %335 = vector.shape_cast %334 : vector<1x32x8xbf16> to vector<32x8xbf16>
      %cst_175 = arith.constant dense<0.000000e+00> : vector<16x8xf32>
      %336 = tpu.matmul %266, %335, %cst_175 {dimension_numbers = #tpu.dot_dimension_numbers<[1], [0], [0], [1], [0, 0, 1, 1], [], []>} : vector<16x32xbf16>, vector<32x8xbf16>, vector<16x8xf32> -> vector<16x8xf32>
      %337 = arith.index_cast %c2_i32_167 : i32 to index
      %c0_176 = arith.constant 0 : index
      %c0_177 = arith.constant 0 : index
      %338 = vector.load %arg12[%337, %c0_176, %c0_177] : memref<4x1x8xf32, #tpu.memory_space<vmem>>, vector<1x1x8xf32>
      %339 = vector.shape_cast %338 : vector<1x1x8xf32> to vector<1x8xf32>
      %340 = vector.broadcast %339 : vector<1x8xf32> to vector<16x8xf32>
      %341 = arith.addf %336, %340 : vector<16x8xf32>
      %342 = arith.truncf %332 : vector<16x8xf32> to vector<16x8xbf16>
      %343 = arith.index_cast %c2_i32_167 : i32 to index
      %c0_178 = arith.constant 0 : index
      %c0_179 = arith.constant 0 : index
      %344 = vector.load %arg24[%343, %c0_178, %c0_179] : memref<4x16x8xbf16, #tpu.memory_space<vmem>>, vector<1x16x8xbf16>
      %345 = vector.shape_cast %344 : vector<1x16x8xbf16> to vector<16x8xbf16>
      %346 = vector.shape_cast %342 : vector<16x8xbf16> to vector<1x16x8xbf16>
      tpu.vector_store %arg24[%343, %c0_178, %c0_179], %346 {strides = array<i32>} : memref<4x16x8xbf16, #tpu.memory_space<vmem>>, vector<1x16x8xbf16>,
      %347 = arith.truncf %341 : vector<16x8xf32> to vector<16x8xbf16>
      %348 = arith.index_cast %c2_i32_167 : i32 to index
      %c0_180 = arith.constant 0 : index
      %c0_181 = arith.constant 0 : index
      %349 = vector.load %arg25[%348, %c0_180, %c0_181] : memref<4x16x8xbf16, #tpu.memory_space<vmem>>, vector<1x16x8xbf16>
      %350 = vector.shape_cast %349 : vector<1x16x8xbf16> to vector<16x8xbf16>
      %351 = vector.shape_cast %347 : vector<16x8xbf16> to vector<1x16x8xbf16>
      tpu.vector_store %arg25[%348, %c0_180, %c0_181], %351 {strides = array<i32>} : memref<4x16x8xbf16, #tpu.memory_space<vmem>>, vector<1x16x8xbf16>,
      %c3_i32_182 = arith.constant 3 : i32
      %352 = arith.index_cast %c3_i32_182 : i32 to index
      %c0_183 = arith.constant 0 : index
      %c0_184 = arith.constant 0 : index
      %353 = vector.load %arg7[%352, %c0_183, %c0_184] : memref<4x32x8xbf16, #tpu.memory_space<vmem>>, vector<1x32x8xbf16>
      %354 = vector.shape_cast %353 : vector<1x32x8xbf16> to vector<32x8xbf16>
      %cst_185 = arith.constant dense<0.000000e+00> : vector<16x8xf32>
      %355 = tpu.matmul %266, %354, %cst_185 {dimension_numbers = #tpu.dot_dimension_numbers<[1], [0], [0], [1], [0, 0, 1, 1], [], []>} : vector<16x32xbf16>, vector<32x8xbf16>, vector<16x8xf32> -> vector<16x8xf32>
      %356 = arith.index_cast %c3_i32_182 : i32 to index
      %c0_186 = arith.constant 0 : index
      %c0_187 = arith.constant 0 : index
      %357 = vector.load %arg11[%356, %c0_186, %c0_187] : memref<4x1x8xf32, #tpu.memory_space<vmem>>, vector<1x1x8xf32>
      %358 = vector.shape_cast %357 : vector<1x1x8xf32> to vector<1x8xf32>
      %359 = vector.broadcast %358 : vector<1x8xf32> to vector<16x8xf32>
      %360 = arith.addf %355, %359 : vector<16x8xf32>
      %361 = arith.index_cast %c3_i32_182 : i32 to index
      %c0_188 = arith.constant 0 : index
      %c0_189 = arith.constant 0 : index
      %362 = vector.load %arg8[%361, %c0_188, %c0_189] : memref<4x32x8xbf16, #tpu.memory_space<vmem>>, vector<1x32x8xbf16>
      %363 = vector.shape_cast %362 : vector<1x32x8xbf16> to vector<32x8xbf16>
      %cst_190 = arith.constant dense<0.000000e+00> : vector<16x8xf32>
      %364 = tpu.matmul %266, %363, %cst_190 {dimension_numbers = #tpu.dot_dimension_numbers<[1], [0], [0], [1], [0, 0, 1, 1], [], []>} : vector<16x32xbf16>, vector<32x8xbf16>, vector<16x8xf32> -> vector<16x8xf32>
      %365 = arith.index_cast %c3_i32_182 : i32 to index
      %c0_191 = arith.constant 0 : index
      %c0_192 = arith.constant 0 : index
      %366 = vector.load %arg12[%365, %c0_191, %c0_192] : memref<4x1x8xf32, #tpu.memory_space<vmem>>, vector<1x1x8xf32>
      %367 = vector.shape_cast %366 : vector<1x1x8xf32> to vector<1x8xf32>
      %368 = vector.broadcast %367 : vector<1x8xf32> to vector<16x8xf32>
      %369 = arith.addf %364, %368 : vector<16x8xf32>
      %370 = arith.truncf %360 : vector<16x8xf32> to vector<16x8xbf16>
      %371 = arith.index_cast %c3_i32_182 : i32 to index
      %c0_193 = arith.constant 0 : index
      %c0_194 = arith.constant 0 : index
      %372 = vector.load %arg24[%371, %c0_193, %c0_194] : memref<4x16x8xbf16, #tpu.memory_space<vmem>>, vector<1x16x8xbf16>
      %373 = vector.shape_cast %372 : vector<1x16x8xbf16> to vector<16x8xbf16>
      %374 = vector.shape_cast %370 : vector<16x8xbf16> to vector<1x16x8xbf16>
      tpu.vector_store %arg24[%371, %c0_193, %c0_194], %374 {strides = array<i32>} : memref<4x16x8xbf16, #tpu.memory_space<vmem>>, vector<1x16x8xbf16>,
      %375 = arith.truncf %369 : vector<16x8xf32> to vector<16x8xbf16>
      %376 = arith.index_cast %c3_i32_182 : i32 to index
      %c0_195 = arith.constant 0 : index
      %c0_196 = arith.constant 0 : index
      %377 = vector.load %arg25[%376, %c0_195, %c0_196] : memref<4x16x8xbf16, #tpu.memory_space<vmem>>, vector<1x16x8xbf16>
      %378 = vector.shape_cast %377 : vector<1x16x8xbf16> to vector<16x8xbf16>
      %379 = vector.shape_cast %375 : vector<16x8xbf16> to vector<1x16x8xbf16>
      tpu.vector_store %arg25[%376, %c0_195, %c0_196], %379 {strides = array<i32>} : memref<4x16x8xbf16, #tpu.memory_space<vmem>>, vector<1x16x8xbf16>,
      %c4_i32_197 = arith.constant 4 : i32
    } else {
    }
    %c8_i32 = arith.constant 8 : i32
    %3 = arith.muli %arg1, %c8_i32 : i32
    %4 = tpu.assume_multiple %3, 8 : i32
    %c0 = arith.constant 0 : index
    %5 = arith.index_cast %4 : i32 to index
    %c0_1 = arith.constant 0 : index
    %6 = vector.load %arg2[%c0, %5, %c0_1] : memref<1x16x32xbf16, #tpu.memory_space<vmem>>, vector<1x8x32xbf16>
    %7 = vector.shape_cast %6 : vector<1x8x32xbf16> to vector<8x32xbf16>
    %8 = arith.extf %7 : vector<8x32xbf16> to vector<8x32xf32>
    %9 = arith.index_cast %4 : i32 to index
    %c0_2 = arith.constant 0 : index
    %10 = vector.load %arg23[%9, %c0_2] : memref<16x32xbf16, #tpu.memory_space<vmem>>, vector<8x32xbf16>
    %c0_3 = arith.constant 0 : index
    %c0_4 = arith.constant 0 : index
    %11 = vector.load %arg3[%c0_3, %c0_4] : memref<8x16xbf16, #tpu.memory_space<vmem>>, vector<8x16xbf16>
    %12 = arith.extf %11 : vector<8x16xbf16> to vector<8x16xf32>
    %cst = arith.constant 0.000000e+00 : f32
    %13 = vector.broadcast %cst : f32 to vector<8x32xf32>
    %c0_5 = arith.constant 0 : index
    %c0_6 = arith.constant 0 : index
    %14 = vector.load %arg26[%c0_5, %c0_6] : memref<8x32xf32, #tpu.memory_space<vmem>>, vector<8x32xf32>
    tpu.vector_store %arg26[%c0_5, %c0_6], %13 {strides = array<i32>} : memref<8x32xf32, #tpu.memory_space<vmem>>, vector<8x32xf32>,
    %c0_i32_7 = arith.constant 0 : i32
    %15 = arith.index_cast %c0_i32_7 : i32 to index
    %c0_8 = arith.constant 0 : index
    %c0_9 = arith.constant 0 : index
    %16 = vector.load %arg6[%15, %c0_8, %c0_9] : memref<4x32x8xbf16, #tpu.memory_space<vmem>>, vector<1x32x8xbf16>
    %17 = vector.shape_cast %16 : vector<1x32x8xbf16> to vector<32x8xbf16>
    %cst_10 = arith.constant dense<0.000000e+00> : vector<8x8xf32>
    %18 = tpu.matmul %10, %17, %cst_10 {dimension_numbers = #tpu.dot_dimension_numbers<[1], [0], [0], [1], [0, 0, 1, 1], [], []>} : vector<8x32xbf16>, vector<32x8xbf16>, vector<8x8xf32> -> vector<8x8xf32>
    %19 = arith.index_cast %c0_i32_7 : i32 to index
    %c0_11 = arith.constant 0 : index
    %c0_12 = arith.constant 0 : index
    %20 = vector.load %arg10[%19, %c0_11, %c0_12] : memref<4x1x8xf32, #tpu.memory_space<vmem>>, vector<1x1x8xf32>
    %21 = vector.shape_cast %20 : vector<1x1x8xf32> to vector<1x8xf32>
    %22 = vector.broadcast %21 : vector<1x8xf32> to vector<8x8xf32>
    %23 = arith.addf %18, %22 : vector<8x8xf32>
    %24 = arith.truncf %23 : vector<8x8xf32> to vector<8x8xbf16>
    %25 = arith.index_cast %c0_i32_7 : i32 to index
    %c0_13 = arith.constant 0 : index
    %c0_14 = arith.constant 0 : index
    %26 = vector.load %arg24[%25, %c0_13, %c0_14] : memref<4x16x8xbf16, #tpu.memory_space<vmem>>, vector<1x16x8xbf16>
    %27 = vector.shape_cast %26 : vector<1x16x8xbf16> to vector<16x8xbf16>
    %cst_15 = arith.constant dense<0.000000e+00> : vector<8x16xf32>
    %28 = tpu.matmul %24, %27, %cst_15 {dimension_numbers = #tpu.dot_dimension_numbers<[1], [1], [0], [0], [0, 0, 1, 0], [], []>} : vector<8x8xbf16>, vector<16x8xbf16>, vector<8x16xf32> -> vector<8x16xf32>
    %29 = arith.addf %28, %12 : vector<8x16xf32>
    %cst_16 = arith.constant dense<0xFF800000> : vector<8xf32>
    %30 = vector.multi_reduction <maximumf>, %29, %cst_16 [1] : vector<8x16xf32> to vector<8xf32>
    %31 = vector.shape_cast %30 : vector<8xf32> to vector<8x1xf32>
    %32 = vector.broadcast %31 : vector<8x1xf32> to vector<8x16xf32>
    %33 = arith.subf %29, %32 : vector<8x16xf32>
    %34 = math.exp %33 : vector<8x16xf32>
    %cst_17 = arith.constant dense<0.000000e+00> : vector<8xf32>
    %35 = vector.multi_reduction <add>, %34, %cst_17 [1] : vector<8x16xf32> to vector<8xf32>
    %36 = vector.shape_cast %35 : vector<8xf32> to vector<8x1xf32>
    %37 = tpu.reciprocal %36 : vector<8x1xf32> -> vector<8x1xf32>
    %38 = vector.broadcast %37 : vector<8x1xf32> to vector<8x16xf32>
    %39 = arith.mulf %34, %38 : vector<8x16xf32>
    %40 = arith.truncf %39 : vector<8x16xf32> to vector<8x16xbf16>
    %41 = arith.index_cast %c0_i32_7 : i32 to index
    %c0_18 = arith.constant 0 : index
    %c0_19 = arith.constant 0 : index
    %42 = vector.load %arg25[%41, %c0_18, %c0_19] : memref<4x16x8xbf16, #tpu.memory_space<vmem>>, vector<1x16x8xbf16>
    %43 = vector.shape_cast %42 : vector<1x16x8xbf16> to vector<16x8xbf16>
    %cst_20 = arith.constant dense<0.000000e+00> : vector<8x8xf32>
    %44 = tpu.matmul %40, %43, %cst_20 {dimension_numbers = #tpu.dot_dimension_numbers<[1], [0], [0], [1], [0, 0, 1, 1], [], []>} : vector<8x16xbf16>, vector<16x8xbf16>, vector<8x8xf32> -> vector<8x8xf32>
    %c0_21 = arith.constant 0 : index
    %c0_22 = arith.constant 0 : index
    %45 = vector.load %arg26[%c0_21, %c0_22] : memref<8x32xf32, #tpu.memory_space<vmem>>, vector<8x32xf32>
    %46 = arith.truncf %44 : vector<8x8xf32> to vector<8x8xbf16>
    %47 = arith.index_cast %c0_i32_7 : i32 to index
    %c0_23 = arith.constant 0 : index
    %c0_24 = arith.constant 0 : index
    %48 = vector.load %arg9[%47, %c0_23, %c0_24] : memref<4x8x32xbf16, #tpu.memory_space<vmem>>, vector<1x8x32xbf16>
    %49 = vector.shape_cast %48 : vector<1x8x32xbf16> to vector<8x32xbf16>
    %cst_25 = arith.constant dense<0.000000e+00> : vector<8x32xf32>
    %50 = tpu.matmul %46, %49, %cst_25 {dimension_numbers = #tpu.dot_dimension_numbers<[1], [0], [0], [1], [0, 0, 1, 1], [], []>} : vector<8x8xbf16>, vector<8x32xbf16>, vector<8x32xf32> -> vector<8x32xf32>
    %51 = arith.addf %45, %50 : vector<8x32xf32>
    %c0_26 = arith.constant 0 : index
    %c0_27 = arith.constant 0 : index
    %52 = vector.load %arg26[%c0_26, %c0_27] : memref<8x32xf32, #tpu.memory_space<vmem>>, vector<8x32xf32>
    tpu.vector_store %arg26[%c0_26, %c0_27], %51 {strides = array<i32>} : memref<8x32xf32, #tpu.memory_space<vmem>>, vector<8x32xf32>,
    %c1_i32 = arith.constant 1 : i32
    %53 = arith.index_cast %c1_i32 : i32 to index
    %c0_28 = arith.constant 0 : index
    %c0_29 = arith.constant 0 : index
    %54 = vector.load %arg6[%53, %c0_28, %c0_29] : memref<4x32x8xbf16, #tpu.memory_space<vmem>>, vector<1x32x8xbf16>
    %55 = vector.shape_cast %54 : vector<1x32x8xbf16> to vector<32x8xbf16>
    %cst_30 = arith.constant dense<0.000000e+00> : vector<8x8xf32>
    %56 = tpu.matmul %10, %55, %cst_30 {dimension_numbers = #tpu.dot_dimension_numbers<[1], [0], [0], [1], [0, 0, 1, 1], [], []>} : vector<8x32xbf16>, vector<32x8xbf16>, vector<8x8xf32> -> vector<8x8xf32>
    %57 = arith.index_cast %c1_i32 : i32 to index
    %c0_31 = arith.constant 0 : index
    %c0_32 = arith.constant 0 : index
    %58 = vector.load %arg10[%57, %c0_31, %c0_32] : memref<4x1x8xf32, #tpu.memory_space<vmem>>, vector<1x1x8xf32>
    %59 = vector.shape_cast %58 : vector<1x1x8xf32> to vector<1x8xf32>
    %60 = vector.broadcast %59 : vector<1x8xf32> to vector<8x8xf32>
    %61 = arith.addf %56, %60 : vector<8x8xf32>
    %62 = arith.truncf %61 : vector<8x8xf32> to vector<8x8xbf16>
    %63 = arith.index_cast %c1_i32 : i32 to index
    %c0_33 = arith.constant 0 : index
    %c0_34 = arith.constant 0 : index
    %64 = vector.load %arg24[%63, %c0_33, %c0_34] : memref<4x16x8xbf16, #tpu.memory_space<vmem>>, vector<1x16x8xbf16>
    %65 = vector.shape_cast %64 : vector<1x16x8xbf16> to vector<16x8xbf16>
    %cst_35 = arith.constant dense<0.000000e+00> : vector<8x16xf32>
    %66 = tpu.matmul %62, %65, %cst_35 {dimension_numbers = #tpu.dot_dimension_numbers<[1], [1], [0], [0], [0, 0, 1, 0], [], []>} : vector<8x8xbf16>, vector<16x8xbf16>, vector<8x16xf32> -> vector<8x16xf32>
    %67 = arith.addf %66, %12 : vector<8x16xf32>
    %cst_36 = arith.constant dense<0xFF800000> : vector<8xf32>
    %68 = vector.multi_reduction <maximumf>, %67, %cst_36 [1] : vector<8x16xf32> to vector<8xf32>
    %69 = vector.shape_cast %68 : vector<8xf32> to vector<8x1xf32>
    %70 = vector.broadcast %69 : vector<8x1xf32> to vector<8x16xf32>
    %71 = arith.subf %67, %70 : vector<8x16xf32>
    %72 = math.exp %71 : vector<8x16xf32>
    %cst_37 = arith.constant dense<0.000000e+00> : vector<8xf32>
    %73 = vector.multi_reduction <add>, %72, %cst_37 [1] : vector<8x16xf32> to vector<8xf32>
    %74 = vector.shape_cast %73 : vector<8xf32> to vector<8x1xf32>
    %75 = tpu.reciprocal %74 : vector<8x1xf32> -> vector<8x1xf32>
    %76 = vector.broadcast %75 : vector<8x1xf32> to vector<8x16xf32>
    %77 = arith.mulf %72, %76 : vector<8x16xf32>
    %78 = arith.truncf %77 : vector<8x16xf32> to vector<8x16xbf16>
    %79 = arith.index_cast %c1_i32 : i32 to index
    %c0_38 = arith.constant 0 : index
    %c0_39 = arith.constant 0 : index
    %80 = vector.load %arg25[%79, %c0_38, %c0_39] : memref<4x16x8xbf16, #tpu.memory_space<vmem>>, vector<1x16x8xbf16>
    %81 = vector.shape_cast %80 : vector<1x16x8xbf16> to vector<16x8xbf16>
    %cst_40 = arith.constant dense<0.000000e+00> : vector<8x8xf32>
    %82 = tpu.matmul %78, %81, %cst_40 {dimension_numbers = #tpu.dot_dimension_numbers<[1], [0], [0], [1], [0, 0, 1, 1], [], []>} : vector<8x16xbf16>, vector<16x8xbf16>, vector<8x8xf32> -> vector<8x8xf32>
    %c0_41 = arith.constant 0 : index
    %c0_42 = arith.constant 0 : index
    %83 = vector.load %arg26[%c0_41, %c0_42] : memref<8x32xf32, #tpu.memory_space<vmem>>, vector<8x32xf32>
    %84 = arith.truncf %82 : vector<8x8xf32> to vector<8x8xbf16>
    %85 = arith.index_cast %c1_i32 : i32 to index
    %c0_43 = arith.constant 0 : index
    %c0_44 = arith.constant 0 : index
    %86 = vector.load %arg9[%85, %c0_43, %c0_44] : memref<4x8x32xbf16, #tpu.memory_space<vmem>>, vector<1x8x32xbf16>
    %87 = vector.shape_cast %86 : vector<1x8x32xbf16> to vector<8x32xbf16>
    %cst_45 = arith.constant dense<0.000000e+00> : vector<8x32xf32>
    %88 = tpu.matmul %84, %87, %cst_45 {dimension_numbers = #tpu.dot_dimension_numbers<[1], [0], [0], [1], [0, 0, 1, 1], [], []>} : vector<8x8xbf16>, vector<8x32xbf16>, vector<8x32xf32> -> vector<8x32xf32>
    %89 = arith.addf %83, %88 : vector<8x32xf32>
    %c0_46 = arith.constant 0 : index
    %c0_47 = arith.constant 0 : index
    %90 = vector.load %arg26[%c0_46, %c0_47] : memref<8x32xf32, #tpu.memory_space<vmem>>, vector<8x32xf32>
    tpu.vector_store %arg26[%c0_46, %c0_47], %89 {strides = array<i32>} : memref<8x32xf32, #tpu.memory_space<vmem>>, vector<8x32xf32>,
    %c2_i32 = arith.constant 2 : i32
    %91 = arith.index_cast %c2_i32 : i32 to index
    %c0_48 = arith.constant 0 : index
    %c0_49 = arith.constant 0 : index
    %92 = vector.load %arg6[%91, %c0_48, %c0_49] : memref<4x32x8xbf16, #tpu.memory_space<vmem>>, vector<1x32x8xbf16>
    %93 = vector.shape_cast %92 : vector<1x32x8xbf16> to vector<32x8xbf16>
    %cst_50 = arith.constant dense<0.000000e+00> : vector<8x8xf32>
    %94 = tpu.matmul %10, %93, %cst_50 {dimension_numbers = #tpu.dot_dimension_numbers<[1], [0], [0], [1], [0, 0, 1, 1], [], []>} : vector<8x32xbf16>, vector<32x8xbf16>, vector<8x8xf32> -> vector<8x8xf32>
    %95 = arith.index_cast %c2_i32 : i32 to index
    %c0_51 = arith.constant 0 : index
    %c0_52 = arith.constant 0 : index
    %96 = vector.load %arg10[%95, %c0_51, %c0_52] : memref<4x1x8xf32, #tpu.memory_space<vmem>>, vector<1x1x8xf32>
    %97 = vector.shape_cast %96 : vector<1x1x8xf32> to vector<1x8xf32>
    %98 = vector.broadcast %97 : vector<1x8xf32> to vector<8x8xf32>
    %99 = arith.addf %94, %98 : vector<8x8xf32>
    %100 = arith.truncf %99 : vector<8x8xf32> to vector<8x8xbf16>
    %101 = arith.index_cast %c2_i32 : i32 to index
    %c0_53 = arith.constant 0 : index
    %c0_54 = arith.constant 0 : index
    %102 = vector.load %arg24[%101, %c0_53, %c0_54] : memref<4x16x8xbf16, #tpu.memory_space<vmem>>, vector<1x16x8xbf16>
    %103 = vector.shape_cast %102 : vector<1x16x8xbf16> to vector<16x8xbf16>
    %cst_55 = arith.constant dense<0.000000e+00> : vector<8x16xf32>
    %104 = tpu.matmul %100, %103, %cst_55 {dimension_numbers = #tpu.dot_dimension_numbers<[1], [1], [0], [0], [0, 0, 1, 0], [], []>} : vector<8x8xbf16>, vector<16x8xbf16>, vector<8x16xf32> -> vector<8x16xf32>
    %105 = arith.addf %104, %12 : vector<8x16xf32>
    %cst_56 = arith.constant dense<0xFF800000> : vector<8xf32>
    %106 = vector.multi_reduction <maximumf>, %105, %cst_56 [1] : vector<8x16xf32> to vector<8xf32>
    %107 = vector.shape_cast %106 : vector<8xf32> to vector<8x1xf32>
    %108 = vector.broadcast %107 : vector<8x1xf32> to vector<8x16xf32>
    %109 = arith.subf %105, %108 : vector<8x16xf32>
    %110 = math.exp %109 : vector<8x16xf32>
    %cst_57 = arith.constant dense<0.000000e+00> : vector<8xf32>
    %111 = vector.multi_reduction <add>, %110, %cst_57 [1] : vector<8x16xf32> to vector<8xf32>
    %112 = vector.shape_cast %111 : vector<8xf32> to vector<8x1xf32>
    %113 = tpu.reciprocal %112 : vector<8x1xf32> -> vector<8x1xf32>
    %114 = vector.broadcast %113 : vector<8x1xf32> to vector<8x16xf32>
    %115 = arith.mulf %110, %114 : vector<8x16xf32>
    %116 = arith.truncf %115 : vector<8x16xf32> to vector<8x16xbf16>
    %117 = arith.index_cast %c2_i32 : i32 to index
    %c0_58 = arith.constant 0 : index
    %c0_59 = arith.constant 0 : index
    %118 = vector.load %arg25[%117, %c0_58, %c0_59] : memref<4x16x8xbf16, #tpu.memory_space<vmem>>, vector<1x16x8xbf16>
    %119 = vector.shape_cast %118 : vector<1x16x8xbf16> to vector<16x8xbf16>
    %cst_60 = arith.constant dense<0.000000e+00> : vector<8x8xf32>
    %120 = tpu.matmul %116, %119, %cst_60 {dimension_numbers = #tpu.dot_dimension_numbers<[1], [0], [0], [1], [0, 0, 1, 1], [], []>} : vector<8x16xbf16>, vector<16x8xbf16>, vector<8x8xf32> -> vector<8x8xf32>
    %c0_61 = arith.constant 0 : index
    %c0_62 = arith.constant 0 : index
    %121 = vector.load %arg26[%c0_61, %c0_62] : memref<8x32xf32, #tpu.memory_space<vmem>>, vector<8x32xf32>
    %122 = arith.truncf %120 : vector<8x8xf32> to vector<8x8xbf16>
    %123 = arith.index_cast %c2_i32 : i32 to index
    %c0_63 = arith.constant 0 : index
    %c0_64 = arith.constant 0 : index
    %124 = vector.load %arg9[%123, %c0_63, %c0_64] : memref<4x8x32xbf16, #tpu.memory_space<vmem>>, vector<1x8x32xbf16>
    %125 = vector.shape_cast %124 : vector<1x8x32xbf16> to vector<8x32xbf16>
    %cst_65 = arith.constant dense<0.000000e+00> : vector<8x32xf32>
    %126 = tpu.matmul %122, %125, %cst_65 {dimension_numbers = #tpu.dot_dimension_numbers<[1], [0], [0], [1], [0, 0, 1, 1], [], []>} : vector<8x8xbf16>, vector<8x32xbf16>, vector<8x32xf32> -> vector<8x32xf32>
    %127 = arith.addf %121, %126 : vector<8x32xf32>
    %c0_66 = arith.constant 0 : index
    %c0_67 = arith.constant 0 : index
    %128 = vector.load %arg26[%c0_66, %c0_67] : memref<8x32xf32, #tpu.memory_space<vmem>>, vector<8x32xf32>
    tpu.vector_store %arg26[%c0_66, %c0_67], %127 {strides = array<i32>} : memref<8x32xf32, #tpu.memory_space<vmem>>, vector<8x32xf32>,
    %c3_i32 = arith.constant 3 : i32
    %129 = arith.index_cast %c3_i32 : i32 to index
    %c0_68 = arith.constant 0 : index
    %c0_69 = arith.constant 0 : index
    %130 = vector.load %arg6[%129, %c0_68, %c0_69] : memref<4x32x8xbf16, #tpu.memory_space<vmem>>, vector<1x32x8xbf16>
    %131 = vector.shape_cast %130 : vector<1x32x8xbf16> to vector<32x8xbf16>
    %cst_70 = arith.constant dense<0.000000e+00> : vector<8x8xf32>
    %132 = tpu.matmul %10, %131, %cst_70 {dimension_numbers = #tpu.dot_dimension_numbers<[1], [0], [0], [1], [0, 0, 1, 1], [], []>} : vector<8x32xbf16>, vector<32x8xbf16>, vector<8x8xf32> -> vector<8x8xf32>
    %133 = arith.index_cast %c3_i32 : i32 to index
    %c0_71 = arith.constant 0 : index
    %c0_72 = arith.constant 0 : index
    %134 = vector.load %arg10[%133, %c0_71, %c0_72] : memref<4x1x8xf32, #tpu.memory_space<vmem>>, vector<1x1x8xf32>
    %135 = vector.shape_cast %134 : vector<1x1x8xf32> to vector<1x8xf32>
    %136 = vector.broadcast %135 : vector<1x8xf32> to vector<8x8xf32>
    %137 = arith.addf %132, %136 : vector<8x8xf32>
    %138 = arith.truncf %137 : vector<8x8xf32> to vector<8x8xbf16>
    %139 = arith.index_cast %c3_i32 : i32 to index
    %c0_73 = arith.constant 0 : index
    %c0_74 = arith.constant 0 : index
    %140 = vector.load %arg24[%139, %c0_73, %c0_74] : memref<4x16x8xbf16, #tpu.memory_space<vmem>>, vector<1x16x8xbf16>
    %141 = vector.shape_cast %140 : vector<1x16x8xbf16> to vector<16x8xbf16>
    %cst_75 = arith.constant dense<0.000000e+00> : vector<8x16xf32>
    %142 = tpu.matmul %138, %141, %cst_75 {dimension_numbers = #tpu.dot_dimension_numbers<[1], [1], [0], [0], [0, 0, 1, 0], [], []>} : vector<8x8xbf16>, vector<16x8xbf16>, vector<8x16xf32> -> vector<8x16xf32>
    %143 = arith.addf %142, %12 : vector<8x16xf32>
    %cst_76 = arith.constant dense<0xFF800000> : vector<8xf32>
    %144 = vector.multi_reduction <maximumf>, %143, %cst_76 [1] : vector<8x16xf32> to vector<8xf32>
    %145 = vector.shape_cast %144 : vector<8xf32> to vector<8x1xf32>
    %146 = vector.broadcast %145 : vector<8x1xf32> to vector<8x16xf32>
    %147 = arith.subf %143, %146 : vector<8x16xf32>
    %148 = math.exp %147 : vector<8x16xf32>
    %cst_77 = arith.constant dense<0.000000e+00> : vector<8xf32>
    %149 = vector.multi_reduction <add>, %148, %cst_77 [1] : vector<8x16xf32> to vector<8xf32>
    %150 = vector.shape_cast %149 : vector<8xf32> to vector<8x1xf32>
    %151 = tpu.reciprocal %150 : vector<8x1xf32> -> vector<8x1xf32>
    %152 = vector.broadcast %151 : vector<8x1xf32> to vector<8x16xf32>
    %153 = arith.mulf %148, %152 : vector<8x16xf32>
    %154 = arith.truncf %153 : vector<8x16xf32> to vector<8x16xbf16>
    %155 = arith.index_cast %c3_i32 : i32 to index
    %c0_78 = arith.constant 0 : index
    %c0_79 = arith.constant 0 : index
    %156 = vector.load %arg25[%155, %c0_78, %c0_79] : memref<4x16x8xbf16, #tpu.memory_space<vmem>>, vector<1x16x8xbf16>
    %157 = vector.shape_cast %156 : vector<1x16x8xbf16> to vector<16x8xbf16>
    %cst_80 = arith.constant dense<0.000000e+00> : vector<8x8xf32>
    %158 = tpu.matmul %154, %157, %cst_80 {dimension_numbers = #tpu.dot_dimension_numbers<[1], [0], [0], [1], [0, 0, 1, 1], [], []>} : vector<8x16xbf16>, vector<16x8xbf16>, vector<8x8xf32> -> vector<8x8xf32>
    %c0_81 = arith.constant 0 : index
    %c0_82 = arith.constant 0 : index
    %159 = vector.load %arg26[%c0_81, %c0_82] : memref<8x32xf32, #tpu.memory_space<vmem>>, vector<8x32xf32>
    %160 = arith.truncf %158 : vector<8x8xf32> to vector<8x8xbf16>
    %161 = arith.index_cast %c3_i32 : i32 to index
    %c0_83 = arith.constant 0 : index
    %c0_84 = arith.constant 0 : index
    %162 = vector.load %arg9[%161, %c0_83, %c0_84] : memref<4x8x32xbf16, #tpu.memory_space<vmem>>, vector<1x8x32xbf16>
    %163 = vector.shape_cast %162 : vector<1x8x32xbf16> to vector<8x32xbf16>
    %cst_85 = arith.constant dense<0.000000e+00> : vector<8x32xf32>
    %164 = tpu.matmul %160, %163, %cst_85 {dimension_numbers = #tpu.dot_dimension_numbers<[1], [0], [0], [1], [0, 0, 1, 1], [], []>} : vector<8x8xbf16>, vector<8x32xbf16>, vector<8x32xf32> -> vector<8x32xf32>
    %165 = arith.addf %159, %164 : vector<8x32xf32>
    %c0_86 = arith.constant 0 : index
    %c0_87 = arith.constant 0 : index
    %166 = vector.load %arg26[%c0_86, %c0_87] : memref<8x32xf32, #tpu.memory_space<vmem>>, vector<8x32xf32>
    tpu.vector_store %arg26[%c0_86, %c0_87], %165 {strides = array<i32>} : memref<8x32xf32, #tpu.memory_space<vmem>>, vector<8x32xf32>,
    %c4_i32 = arith.constant 4 : i32
    %c0_88 = arith.constant 0 : index
    %c0_89 = arith.constant 0 : index
    %167 = vector.load %arg26[%c0_88, %c0_89] : memref<8x32xf32, #tpu.memory_space<vmem>>, vector<8x32xf32>
    %168 = arith.addf %8, %167 : vector<8x32xf32>
    %c0_90 = arith.constant 0 : index
    %c0_91 = arith.constant 0 : index
    %169 = vector.load %arg13[%c0_90, %c0_91] : memref<1x32xf32, #tpu.memory_space<vmem>>, vector<1x32xf32>
    %170 = vector.broadcast %169 : vector<1x32xf32> to vector<8x32xf32>
    %171 = arith.addf %168, %170 : vector<8x32xf32>
    %c0_92 = arith.constant 0 : index
    %c0_93 = arith.constant 0 : index
    %172 = vector.load %arg14[%c0_92, %c0_93] : memref<1x32xf32, #tpu.memory_space<vmem>>, vector<1x32xf32>
    %c0_94 = arith.constant 0 : index
    %c0_95 = arith.constant 0 : index
    %173 = vector.load %arg15[%c0_94, %c0_95] : memref<1x32xf32, #tpu.memory_space<vmem>>, vector<1x32xf32>
    %cst_96 = arith.constant dense<0.000000e+00> : vector<8xf32>
    %174 = vector.multi_reduction <add>, %171, %cst_96 [1] : vector<8x32xf32> to vector<8xf32>
    %175 = vector.shape_cast %174 : vector<8xf32> to vector<8x1xf32>
    %cst_97 = arith.constant 3.200000e+01 : f32
    %176 = vector.broadcast %cst_97 : f32 to vector<8x1xf32>
    %177 = arith.divf %175, %176 : vector<8x1xf32>
    %178 = vector.broadcast %177 : vector<8x1xf32> to vector<8x32xf32>
    %179 = arith.subf %171, %178 : vector<8x32xf32>
    %180 = arith.mulf %179, %179 : vector<8x32xf32>
    %cst_98 = arith.constant dense<0.000000e+00> : vector<8xf32>
    %181 = vector.multi_reduction <add>, %180, %cst_98 [1] : vector<8x32xf32> to vector<8xf32>
    %182 = vector.shape_cast %181 : vector<8xf32> to vector<8x1xf32>
    %cst_99 = arith.constant 0.0322580636 : f32
    %183 = vector.broadcast %cst_99 : f32 to vector<8x1xf32>
    %184 = arith.mulf %182, %183 : vector<8x1xf32>
    %185 = math.sqrt %184 : vector<8x1xf32>
    %186 = vector.broadcast %177 : vector<8x1xf32> to vector<8x32xf32>
    %187 = arith.subf %171, %186 : vector<8x32xf32>
    %188 = vector.broadcast %172 : vector<1x32xf32> to vector<8x32xf32>
    %189 = arith.mulf %188, %187 : vector<8x32xf32>
    %cst_100 = arith.constant 9.99999997E-7 : f32
    %190 = vector.broadcast %cst_100 : f32 to vector<8x1xf32>
    %191 = arith.addf %185, %190 : vector<8x1xf32>
    %192 = math.rsqrt %191 : vector<8x1xf32>
    %193 = vector.broadcast %192 : vector<8x1xf32> to vector<8x32xf32>
    %194 = arith.mulf %189, %193 : vector<8x32xf32>
    %195 = vector.broadcast %173 : vector<1x32xf32> to vector<8x32xf32>
    %196 = arith.addf %194, %195 : vector<8x32xf32>
    %197 = arith.truncf %196 : vector<8x32xf32> to vector<8x32xbf16>
    %c0_101 = arith.constant 0 : index
    %c0_102 = arith.constant 0 : index
    %198 = vector.load %arg16[%c0_101, %c0_102] : memref<32x64xbf16, #tpu.memory_space<vmem>>, vector<32x64xbf16>
    %cst_103 = arith.constant dense<0.000000e+00> : vector<8x64xf32>
    %199 = tpu.matmul %197, %198, %cst_103 {dimension_numbers = #tpu.dot_dimension_numbers<[1], [0], [0], [1], [0, 0, 1, 1], [], []>} : vector<8x32xbf16>, vector<32x64xbf16>, vector<8x64xf32> -> vector<8x64xf32>
    %c0_104 = arith.constant 0 : index
    %c0_105 = arith.constant 0 : index
    %200 = vector.load %arg17[%c0_104, %c0_105] : memref<1x64xf32, #tpu.memory_space<vmem>>, vector<1x64xf32>
    %201 = vector.broadcast %200 : vector<1x64xf32> to vector<8x64xf32>
    %202 = arith.addf %199, %201 : vector<8x64xf32>
    %203 = arith.truncf %202 : vector<8x64xf32> to vector<8x64xbf16>
    %c0_106 = arith.constant 0 : index
    %c0_107 = arith.constant 0 : index
    %204 = vector.load %arg18[%c0_106, %c0_107] : memref<64x32xbf16, #tpu.memory_space<vmem>>, vector<64x32xbf16>
    %cst_108 = arith.constant dense<0.000000e+00> : vector<8x32xf32>
    %205 = tpu.matmul %203, %204, %cst_108 {dimension_numbers = #tpu.dot_dimension_numbers<[1], [0], [0], [1], [0, 0, 1, 1], [], []>} : vector<8x64xbf16>, vector<64x32xbf16>, vector<8x32xf32> -> vector<8x32xf32>
    %c0_109 = arith.constant 0 : index
    %c0_110 = arith.constant 0 : index
    %206 = vector.load %arg19[%c0_109, %c0_110] : memref<1x32xf32, #tpu.memory_space<vmem>>, vector<1x32xf32>
    %207 = vector.broadcast %206 : vector<1x32xf32> to vector<8x32xf32>
    %208 = arith.addf %205, %207 : vector<8x32xf32>
    %209 = arith.addf %171, %208 : vector<8x32xf32>
    %c0_111 = arith.constant 0 : index
    %c0_112 = arith.constant 0 : index
    %210 = vector.load %arg20[%c0_111, %c0_112] : memref<1x32xf32, #tpu.memory_space<vmem>>, vector<1x32xf32>
    %c0_113 = arith.constant 0 : index
    %c0_114 = arith.constant 0 : index
    %211 = vector.load %arg21[%c0_113, %c0_114] : memref<1x32xf32, #tpu.memory_space<vmem>>, vector<1x32xf32>
    %cst_115 = arith.constant dense<0.000000e+00> : vector<8xf32>
    %212 = vector.multi_reduction <add>, %209, %cst_115 [1] : vector<8x32xf32> to vector<8xf32>
    %213 = vector.shape_cast %212 : vector<8xf32> to vector<8x1xf32>
    %cst_116 = arith.constant 3.200000e+01 : f32
    %214 = vector.broadcast %cst_116 : f32 to vector<8x1xf32>
    %215 = arith.divf %213, %214 : vector<8x1xf32>
    %216 = vector.broadcast %215 : vector<8x1xf32> to vector<8x32xf32>
    %217 = arith.subf %209, %216 : vector<8x32xf32>
    %218 = arith.mulf %217, %217 : vector<8x32xf32>
    %cst_117 = arith.constant dense<0.000000e+00> : vector<8xf32>
    %219 = vector.multi_reduction <add>, %218, %cst_117 [1] : vector<8x32xf32> to vector<8xf32>
    %220 = vector.shape_cast %219 : vector<8xf32> to vector<8x1xf32>
    %cst_118 = arith.constant 0.0322580636 : f32
    %221 = vector.broadcast %cst_118 : f32 to vector<8x1xf32>
    %222 = arith.mulf %220, %221 : vector<8x1xf32>
    %223 = math.sqrt %222 : vector<8x1xf32>
    %224 = vector.broadcast %215 : vector<8x1xf32> to vector<8x32xf32>
    %225 = arith.subf %209, %224 : vector<8x32xf32>
    %226 = vector.broadcast %210 : vector<1x32xf32> to vector<8x32xf32>
    %227 = arith.mulf %226, %225 : vector<8x32xf32>
    %cst_119 = arith.constant 9.99999997E-7 : f32
    %228 = vector.broadcast %cst_119 : f32 to vector<8x1xf32>
    %229 = arith.addf %223, %228 : vector<8x1xf32>
    %230 = math.rsqrt %229 : vector<8x1xf32>
    %231 = vector.broadcast %230 : vector<8x1xf32> to vector<8x32xf32>
    %232 = arith.mulf %227, %231 : vector<8x32xf32>
    %233 = vector.broadcast %211 : vector<1x32xf32> to vector<8x32xf32>
    %234 = arith.addf %232, %233 : vector<8x32xf32>
    %c0_120 = arith.constant 0 : index
    %c0_121 = arith.constant 0 : index
    %c0_122 = arith.constant 0 : index
    %235 = vector.load %arg22[%c0_120, %c0_121, %c0_122] : memref<1x8x32xf32, #tpu.memory_space<vmem>>, vector<1x8x32xf32>
    %236 = vector.shape_cast %235 : vector<1x8x32xf32> to vector<8x32xf32>
    %237 = vector.shape_cast %234 : vector<8x32xf32> to vector<1x8x32xf32>
    tpu.vector_store %arg22[%c0_120, %c0_121, %c0_122], %237 {strides = array<i32>} : memref<1x8x32xf32, #tpu.memory_space<vmem>>, vector<1x8x32xf32>,
    return
  }
  func.func @transform_0(%arg0: i32, %arg1: i32) -> (i32, i32, i32) {
    %c0_i32 = arith.constant 0 : i32
    %c0_i32_0 = arith.constant 0 : i32
    %c0_i32_1 = arith.constant 0 : i32
    return %arg0, %c0_i32, %c0_i32_0 : i32, i32, i32
  }
  func.func @transform_1(%arg0: i32, %arg1: i32) -> (i32, i32) {
    %c0_i32 = arith.constant 0 : i32
    %c0_i32_0 = arith.constant 0 : i32
    return %arg1, %c0_i32 : i32, i32
  }
  func.func @transform_2(%arg0: i32, %arg1: i32) -> (i32, i32) {
    %c0_i32 = arith.constant 0 : i32
    %c0_i32_0 = arith.constant 0 : i32
    %c0_i32_1 = arith.constant 0 : i32
    return %c0_i32, %c0_i32_0 : i32, i32
  }
  func.func @transform_3(%arg0: i32, %arg1: i32) -> (i32, i32) {
    %c0_i32 = arith.constant 0 : i32
    %c0_i32_0 = arith.constant 0 : i32
    %c0_i32_1 = arith.constant 0 : i32
    return %c0_i32, %c0_i32_0 : i32, i32
  }
  func.func @transform_4(%arg0: i32, %arg1: i32) -> (i32, i32, i32) {
    %c0_i32 = arith.constant 0 : i32
    %c0_i32_0 = arith.constant 0 : i32
    %c0_i32_1 = arith.constant 0 : i32
    %c0_i32_2 = arith.constant 0 : i32
    return %c0_i32, %c0_i32_0, %c0_i32_1 : i32, i32, i32
  }
  func.func @transform_5(%arg0: i32, %arg1: i32) -> (i32, i32, i32) {
    %c0_i32 = arith.constant 0 : i32
    %c0_i32_0 = arith.constant 0 : i32
    %c0_i32_1 = arith.constant 0 : i32
    %c0_i32_2 = arith.constant 0 : i32
    return %c0_i32, %c0_i32_0, %c0_i32_1 : i32, i32, i32
  }
  func.func @transform_6(%arg0: i32, %arg1: i32) -> (i32, i32, i32) {
    %c0_i32 = arith.constant 0 : i32
    %c0_i32_0 = arith.constant 0 : i32
    %c0_i32_1 = arith.constant 0 : i32
    %c0_i32_2 = arith.constant 0 : i32
    return %c0_i32, %c0_i32_0, %c0_i32_1 : i32, i32, i32
  }
  func.func @transform_7(%arg0: i32, %arg1: i32) -> (i32, i32, i32) {
    %c0_i32 = arith.constant 0 : i32
    %c0_i32_0 = arith.constant 0 : i32
    %c0_i32_1 = arith.constant 0 : i32
    %c0_i32_2 = arith.constant 0 : i32
    return %c0_i32, %c0_i32_0, %c0_i32_1 : i32, i32, i32
  }
  func.func @transform_8(%arg0: i32, %arg1: i32) -> (i32, i32, i32) {
    %c0_i32 = arith.constant 0 : i32
    %c0_i32_0 = arith.constant 0 : i32
    %c0_i32_1 = arith.constant 0 : i32
    %c0_i32_2 = arith.constant 0 : i32
    return %c0_i32, %c0_i32_0, %c0_i32_1 : i32, i32, i32
  }
  func.func @transform_9(%arg0: i32, %arg1: i32) -> (i32, i32, i32) {
    %c0_i32 = arith.constant 0 : i32
    %c0_i32_0 = arith.constant 0 : i32
    %c0_i32_1 = arith.constant 0 : i32
    %c0_i32_2 = arith.constant 0 : i32
    return %c0_i32, %c0_i32_0, %c0_i32_1 : i32, i32, i32
  }
  func.func @transform_10(%arg0: i32, %arg1: i32) -> (i32, i32, i32) {
    %c0_i32 = arith.constant 0 : i32
    %c0_i32_0 = arith.constant 0 : i32
    %c0_i32_1 = arith.constant 0 : i32
    %c0_i32_2 = arith.constant 0 : i32
    return %c0_i32, %c0_i32_0, %c0_i32_1 : i32, i32, i32
  }
  func.func @transform_11(%arg0: i32, %arg1: i32) -> (i32, i32) {
    %c0_i32 = arith.constant 0 : i32
    %c0_i32_0 = arith.constant 0 : i32
    %c0_i32_1 = arith.constant 0 : i32
    return %c0_i32, %c0_i32_0 : i32, i32
  }
  func.func @transform_12(%arg0: i32, %arg1: i32) -> (i32, i32) {
    %c0_i32 = arith.constant 0 : i32
    %c0_i32_0 = arith.constant 0 : i32
    %c0_i32_1 = arith.constant 0 : i32
    return %c0_i32, %c0_i32_0 : i32, i32
  }
  func.func @transform_13(%arg0: i32, %arg1: i32) -> (i32, i32) {
    %c0_i32 = arith.constant 0 : i32
    %c0_i32_0 = arith.constant 0 : i32
    %c0_i32_1 = arith.constant 0 : i32
    return %c0_i32, %c0_i32_0 : i32, i32
  }
  func.func @transform_14(%arg0: i32, %arg1: i32) -> (i32, i32) {
    %c0_i32 = arith.constant 0 : i32
    %c0_i32_0 = arith.constant 0 : i32
    %c0_i32_1 = arith.constant 0 : i32
    return %c0_i32, %c0_i32_0 : i32, i32
  }
  func.func @transform_15(%arg0: i32, %arg1: i32) -> (i32, i32) {
    %c0_i32 = arith.constant 0 : i32
    %c0_i32_0 = arith.constant 0 : i32
    %c0_i32_1 = arith.constant 0 : i32
    return %c0_i32, %c0_i32_0 : i32, i32
  }
  func.func @transform_16(%arg0: i32, %arg1: i32) -> (i32, i32) {
    %c0_i32 = arith.constant 0 : i32
    %c0_i32_0 = arith.constant 0 : i32
    %c0_i32_1 = arith.constant 0 : i32
    return %c0_i32, %c0_i32_0 : i32, i32
  }
  func.func @transform_17(%arg0: i32, %arg1: i32) -> (i32, i32) {
    %c0_i32 = arith.constant 0 : i32
    %c0_i32_0 = arith.constant 0 : i32
    %c0_i32_1 = arith.constant 0 : i32
    return %c0_i32, %c0_i32_0 : i32, i32
  }
  func.func @transform_18(%arg0: i32, %arg1: i32) -> (i32, i32) {
    %c0_i32 = arith.constant 0 : i32
    %c0_i32_0 = arith.constant 0 : i32
    %c0_i32_1 = arith.constant 0 : i32
    return %c0_i32, %c0_i32_0 : i32, i32
  }
  func.func @transform_19(%arg0: i32, %arg1: i32) -> (i32, i32) {
    %c0_i32 = arith.constant 0 : i32
    %c0_i32_0 = arith.constant 0 : i32
    %c0_i32_1 = arith.constant 0 : i32
    return %c0_i32, %c0_i32_0 : i32, i32
  }
  func.func @transform_20(%arg0: i32, %arg1: i32) -> (i32, i32, i32) {
    %c0_i32 = arith.constant 0 : i32
    %c0_i32_0 = arith.constant 0 : i32
    return %arg0, %arg1, %c0_i32 : i32, i32, i32
  }
}

</mosaic_0001>

<llo_original>
// kernel: encoder_forward.3
$region0: #{encoder_forward.3}
  #allocation0 [shape = 'u32[]', space=smem, size = 0x4, offset = 0x4, fixed_abs, tag = 'smem constant byte address 0x4 - core index']
  #allocation1 [shape = 'u32[72,128]{1,0:T(1,128)}', space=vmem, size = 0x9000, scoped, tag = 'internal scratch']
  #allocation2 [shape = 'bf16[16,32]{1,0:T(8,128)(2,1)}', space=vmem, size = 0x1000, scoped, tag = 'scratch operand']
  #allocation3 [shape = 'bf16[4,16,8]{2,1,0:T(8,128)(2,1)}', space=vmem, size = 0x4000, scoped, tag = 'scratch operand']
  #allocation4 [shape = 'bf16[4,16,8]{2,1,0:T(8,128)(2,1)}', space=vmem, size = 0x4000, scoped, tag = 'scratch operand']
  #allocation5 [shape = 'f32[8,32]{1,0:T(8,128)}', space=vmem, size = 0x1000, scoped, tag = 'scratch operand']
  %s0 = inlined_call_operand.vmem [shape: bf16[2,16,32], index: 0, kind: input, shape index: {}]
  %s1 = inlined_call_operand.vmem [shape: bf16[16,16], index: 1, kind: input, shape index: {}]
  %s2 = inlined_call_operand.vmem [shape: f32[1,32], index: 2, kind: input, shape index: {}]
  %s3 = inlined_call_operand.vmem [shape: f32[1,32], index: 3, kind: input, shape index: {}]
  %s4 = inlined_call_operand.vmem [shape: bf16[4,32,8], index: 4, kind: input, shape index: {}]
  %s5 = inlined_call_operand.vmem [shape: bf16[4,32,8], index: 5, kind: input, shape index: {}]
  %s6 = inlined_call_operand.vmem [shape: bf16[4,32,8], index: 6, kind: input, shape index: {}]
  %s7 = inlined_call_operand.vmem [shape: bf16[4,8,32], index: 7, kind: input, shape index: {}]
  %s8 = inlined_call_operand.vmem [shape: f32[4,1,8], index: 8, kind: input, shape index: {}]
  %s9 = inlined_call_operand.vmem [shape: f32[4,1,8], index: 9, kind: input, shape index: {}]
  %s10 = inlined_call_operand.vmem [shape: f32[4,1,8], index: 10, kind: input, shape index: {}]
  %s11 = inlined_call_operand.vmem [shape: f32[1,32], index: 11, kind: input, shape index: {}]
  %s12 = inlined_call_operand.vmem [shape: f32[1,32], index: 12, kind: input, shape index: {}]
  %s13 = inlined_call_operand.vmem [shape: f32[1,32], index: 13, kind: input, shape index: {}]
  %s14 = inlined_call_operand.vmem [shape: bf16[32,64], index: 14, kind: input, shape index: {}]
  %s15 = inlined_call_operand.vmem [shape: f32[1,64], index: 15, kind: input, shape index: {}]
  %s16 = inlined_call_operand.vmem [shape: bf16[64,32], index: 16, kind: input, shape index: {}]
  %s17 = inlined_call_operand.vmem [shape: f32[1,32], index: 17, kind: input, shape index: {}]
  %s18 = inlined_call_operand.vmem [shape: f32[1,32], index: 18, kind: input, shape index: {}]
  %s19 = inlined_call_operand.vmem [shape: f32[1,32], index: 19, kind: input, shape index: {}]
  %s20 = inlined_call_operand.hbm [shape: f32[2,16,32], index: 20, kind: output, shape index: {}]
  %s21 = sld [smem:[#allocation0]]
  $region117: #{encoder_forward.3} parent=0
    _
  %s23 = ssub.s32 1, %s21
  %s24 = scalar_select 0, %s23, %s21
  $region1: #{encoder_forward.3} parent=0
    #allocation6 [shape = 'u8[8192]{0}', space=vmem, size = 0x2000, scoped, tag = 'output window, operand 0']
    #allocation7 [shape = 's32[2]{0}', space=sflag, size = 0x8, scoped, tag = 'scoped memory for encoder_forward.3']
    %25 = vsyncpa [#allocation7], 0
    %s26 = scalar_lea.sflag [#allocation7], 1
    %27 = vsyncpa %s26, 0
    loop: start=0, step=1, limit=6
    $region2: #{encoder_forward.3} parent=1 // loop_pre_header
      _
    $region3: #{encoder_forward.3} parent=1 // loop_header
      %s29 = sphi 0, %s33
      %p30 = scmp.ge.s32.totalorder %s29, 6
      %s36 = sphi 0, %s48
      %s37 = sphi 0, %s44
      %s38 = sphi 0, %s36
      %s39 = sphi 0, %s37
      %s40 = sphi 0, %s38
      %s41 = sphi 0, %s39
      %s51 = sphi 0, %s53
      %s54 = sphi 0, %s51
      %s55 = sphi 0, %s54
      %s71 = sphi 0, %s55
      %s77 = sphi 0, %s79
      %s80 = sphi 0, %s77
      %s81 = sphi 0, %s80
      %s97 = sphi 0, %s81
      %s101 = sphi 0, %s101
      %s103 = sphi 0, %s101
      %s104 = sphi 0, %s103
      %s118 = sphi 0, %s104
      %s122 = sphi 0, %s122
      %s124 = sphi 0, %s122
      %s125 = sphi 0, %s124
      %s139 = sphi 0, %s125
      %s143 = sphi 0, %s143
      %s145 = sphi 0, %s143
      %s146 = sphi 0, %s145
      %s160 = sphi 0, %s146
      %s164 = sphi 0, %s164
      %s166 = sphi 0, %s164
      %s167 = sphi 0, %s166
      %s181 = sphi 0, %s167
      %s185 = sphi 0, %s185
      %s187 = sphi 0, %s185
      %s188 = sphi 0, %s187
      %s202 = sphi 0, %s188
      %s206 = sphi 0, %s206
      %s208 = sphi 0, %s206
      %s209 = sphi 0, %s208
      %s223 = sphi 0, %s209
      %s227 = sphi 0, %s227
      %s229 = sphi 0, %s227
      %s230 = sphi 0, %s229
      %s244 = sphi 0, %s230
      %s248 = sphi 0, %s248
      %s250 = sphi 0, %s248
      %s251 = sphi 0, %s250
      %s265 = sphi 0, %s251
      %s269 = sphi 0, %s269
      %s271 = sphi 0, %s269
      %s272 = sphi 0, %s271
      %s286 = sphi 0, %s272
      %s290 = sphi 0, %s290
      %s292 = sphi 0, %s290
      %s293 = sphi 0, %s292
      %s307 = sphi 0, %s293
      %s311 = sphi 0, %s311
      %s313 = sphi 0, %s311
      %s314 = sphi 0, %s313
      %s328 = sphi 0, %s314
      %s332 = sphi 0, %s332
      %s334 = sphi 0, %s332
      %s335 = sphi 0, %s334
      %s349 = sphi 0, %s335
      %s353 = sphi 0, %s353
      %s355 = sphi 0, %s353
      %s356 = sphi 0, %s355
      %s370 = sphi 0, %s356
      %s374 = sphi 0, %s374
      %s376 = sphi 0, %s374
      %s377 = sphi 0, %s376
      %s391 = sphi 0, %s377
      %s395 = sphi 0, %s395
      %s397 = sphi 0, %s395
      %s398 = sphi 0, %s397
      %s412 = sphi 0, %s398
      %s416 = sphi 0, %s416
      %s418 = sphi 0, %s416
      %s419 = sphi 0, %s418
      %s433 = sphi 0, %s419
      %s437 = sphi 0, %s437
      %s439 = sphi 0, %s437
      %s440 = sphi 0, %s439
      %s454 = sphi 0, %s440
      %s458 = sphi 0, %s458
      %s460 = sphi 0, %s458
      %s461 = sphi 0, %s460
      %s475 = sphi 0, %s461
      %s483 = sphi 0, %s485
      %s486 = sphi 0, %s483
      %s487 = sphi 0, %s486
      %s503 = sphi 0, %s487
    $region4: #{encoder_forward.3} parent=1 // loop_header_branch
      %32 = sbr.rel (%p30) target = $region8
    $region5: #{encoder_forward.3} parent=1 // loop_body
      %s34 = ssub.s32 %s29, 1
      %s35 = ssub.s32 %s29, 2
      %s42 = sadd.s32 1, %s37
      %p43 = scmp.ge.s32.totalorder %s42, 2
      %s44 = scalar_select %p43, 0, %s42
      %s45 = sadd.s32 1, %s36
      %s46 = scalar_select %p43, %s45, %s36
      %p47 = scmp.ge.s32.totalorder %s46, 2
      %s48 = scalar_select %p47, 0, %s46
      %s49 = ssub.s32 %s36, %s48
      %p50 = scmp.eq.s32.totalorder %s49, 0
      %s52 = sadd.s32 %s51, 1
      %s53 = scalar_select %p50, %s51, %s52
      %p56 = pneg %p50
      %p57 = scmp.eq.s32.totalorder %s29, 3
      %p58 = por %p56, %p57
      %p59 = scmp.ne.s32.totalorder %s51, %s54
      %p60 = scmp.eq.s32.totalorder %s29, 0
      %p61 = por %p59, %p60
      %p62 = scmp.ne.s32.totalorder %s51, %s54
      %p63 = scmp.eq.s32.totalorder %s34, 3
      %p64 = por %p62, %p63
      %p65 = scmp.ne.s32.totalorder %s54, %s55
      %p66 = scmp.eq.s32.totalorder %s34, 0
      %p67 = por %p65, %p66
      %p68 = scmp.ne.s32.totalorder %s54, %s55
      %p69 = scmp.eq.s32.totalorder %s35, 3
      %p70 = por %p68, %p69
      %p72 = scmp.ne.s32.totalorder %s55, %s71
      %p73 = scmp.eq.s32.totalorder %s35, 0
      %p74 = por %p72, %p73
      %s75 = ssub.s32 %s37, %s44
      %p76 = scmp.eq.s32.totalorder %s75, 0
      %s78 = sadd.s32 %s77, 1
      %s79 = scalar_select %p76, %s77, %s78
      %p82 = pneg %p76
      %p83 = scmp.eq.s32.totalorder %s29, 3
      %p84 = por %p82, %p83
      %p85 = scmp.ne.s32.totalorder %s77, %s80
      %p86 = scmp.eq.s32.totalorder %s29, 0
      %p87 = por %p85, %p86
      %p88 = scmp.ne.s32.totalorder %s77, %s80
      %p89 = scmp.eq.s32.totalorder %s34, 3
      %p90 = por %p88, %p89
      %p91 = scmp.ne.s32.totalorder %s80, %s81
      %p92 = scmp.eq.s32.totalorder %s34, 0
      %p93 = por %p91, %p92
      %p94 = scmp.ne.s32.totalorder %s80, %s81
      %p95 = scmp.eq.s32.totalorder %s35, 3
      %p96 = por %p94, %p95
      %p98 = scmp.ne.s32.totalorder %s81, %s97
      %p99 = scmp.eq.s32.totalorder %s35, 0
      %p100 = por %p98, %p99
      %s102 = sadd.s32 %s101, 1
      %p105 = scmp.eq.s32.totalorder %s29, 3
      %p106 = scmp.ne.s32.totalorder %s101, %s103
      %p107 = scmp.eq.s32.totalorder %s29, 0
      %p108 = por %p106, %p107
      %p109 = scmp.ne.s32.totalorder %s101, %s103
      %p110 = scmp.eq.s32.totalorder %s34, 3
      %p111 = por %p109, %p110
      %p112 = scmp.ne.s32.totalorder %s103, %s104
      %p113 = scmp.eq.s32.totalorder %s34, 0
      %p114 = por %p112, %p113
      %p115 = scmp.ne.s32.totalorder %s103, %s104
      %p116 = scmp.eq.s32.totalorder %s35, 3
      %p117 = por %p115, %p116
      %p119 = scmp.ne.s32.totalorder %s104, %s118
      %p120 = scmp.eq.s32.totalorder %s35, 0
      %p121 = por %p119, %p120
      %s123 = sadd.s32 %s122, 1
      %p126 = scmp.eq.s32.totalorder %s29, 3
      %p127 = scmp.ne.s32.totalorder %s122, %s124
      %p128 = scmp.eq.s32.totalorder %s29, 0
      %p129 = por %p127, %p128
      %p130 = scmp.ne.s32.totalorder %s122, %s124
      %p131 = scmp.eq.s32.totalorder %s34, 3
      %p132 = por %p130, %p131
      %p133 = scmp.ne.s32.totalorder %s124, %s125
      %p134 = scmp.eq.s32.totalorder %s34, 0
      %p135 = por %p133, %p134
      %p136 = scmp.ne.s32.totalorder %s124, %s125
      %p137 = scmp.eq.s32.totalorder %s35, 3
      %p138 = por %p136, %p137
      %p140 = scmp.ne.s32.totalorder %s125, %s139
      %p141 = scmp.eq.s32.totalorder %s35, 0
      %p142 = por %p140, %p141
      %s144 = sadd.s32 %s143, 1
      %p147 = scmp.eq.s32.totalorder %s29, 3
      %p148 = scmp.ne.s32.totalorder %s143, %s145
      %p149 = scmp.eq.s32.totalorder %s29, 0
      %p150 = por %p148, %p149
      %p151 = scmp.ne.s32.totalorder %s143, %s145
      %p152 = scmp.eq.s32.totalorder %s34, 3
      %p153 = por %p151, %p152
      %p154 = scmp.ne.s32.totalorder %s145, %s146
      %p155 = scmp.eq.s32.totalorder %s34, 0
      %p156 = por %p154, %p155
      %p157 = scmp.ne.s32.totalorder %s145, %s146
      %p158 = scmp.eq.s32.totalorder %s35, 3
      %p159 = por %p157, %p158
      %p161 = scmp.ne.s32.totalorder %s146, %s160
      %p162 = scmp.eq.s32.totalorder %s35, 0
      %p163 = por %p161, %p162
      %s165 = sadd.s32 %s164, 1
      %p168 = scmp.eq.s32.totalorder %s29, 3
      %p169 = scmp.ne.s32.totalorder %s164, %s166
      %p170 = scmp.eq.s32.totalorder %s29, 0
      %p171 = por %p169, %p170
      %p172 = scmp.ne.s32.totalorder %s164, %s166
      %p173 = scmp.eq.s32.totalorder %s34, 3
      %p174 = por %p172, %p173
      %p175 = scmp.ne.s32.totalorder %s166, %s167
      %p176 = scmp.eq.s32.totalorder %s34, 0
      %p177 = por %p175, %p176
      %p178 = scmp.ne.s32.totalorder %s166, %s167
      %p179 = scmp.eq.s32.totalorder %s35, 3
      %p180 = por %p178, %p179
      %p182 = scmp.ne.s32.totalorder %s167, %s181
      %p183 = scmp.eq.s32.totalorder %s35, 0
      %p184 = por %p182, %p183
      %s186 = sadd.s32 %s185, 1
      %p189 = scmp.eq.s32.totalorder %s29, 3
      %p190 = scmp.ne.s32.totalorder %s185, %s187
      %p191 = scmp.eq.s32.totalorder %s29, 0
      %p192 = por %p190, %p191
      %p193 = scmp.ne.s32.totalorder %s185, %s187
      %p194 = scmp.eq.s32.totalorder %s34, 3
      %p195 = por %p193, %p194
      %p196 = scmp.ne.s32.totalorder %s187, %s188
      %p197 = scmp.eq.s32.totalorder %s34, 0
      %p198 = por %p196, %p197
      %p199 = scmp.ne.s32.totalorder %s187, %s188
      %p200 = scmp.eq.s32.totalorder %s35, 3
      %p201 = por %p199, %p200
      %p203 = scmp.ne.s32.totalorder %s188, %s202
      %p204 = scmp.eq.s32.totalorder %s35, 0
      %p205 = por %p203, %p204
      %s207 = sadd.s32 %s206, 1
      %p210 = scmp.eq.s32.totalorder %s29, 3
      %p211 = scmp.ne.s32.totalorder %s206, %s208
      %p212 = scmp.eq.s32.totalorder %s29, 0
      %p213 = por %p211, %p212
      %p214 = scmp.ne.s32.totalorder %s206, %s208
      %p215 = scmp.eq.s32.totalorder %s34, 3
      %p216 = por %p214, %p215
      %p217 = scmp.ne.s32.totalorder %s208, %s209
      %p218 = scmp.eq.s32.totalorder %s34, 0
      %p219 = por %p217, %p218
      %p220 = scmp.ne.s32.totalorder %s208, %s209
      %p221 = scmp.eq.s32.totalorder %s35, 3
      %p222 = por %p220, %p221
      %p224 = scmp.ne.s32.totalorder %s209, %s223
      %p225 = scmp.eq.s32.totalorder %s35, 0
      %p226 = por %p224, %p225
      %s228 = sadd.s32 %s227, 1
      %p231 = scmp.eq.s32.totalorder %s29, 3
      %p232 = scmp.ne.s32.totalorder %s227, %s229
      %p233 = scmp.eq.s32.totalorder %s29, 0
      %p234 = por %p232, %p233
      %p235 = scmp.ne.s32.totalorder %s227, %s229
      %p236 = scmp.eq.s32.totalorder %s34, 3
      %p237 = por %p235, %p236
      %p238 = scmp.ne.s32.totalorder %s229, %s230
      %p239 = scmp.eq.s32.totalorder %s34, 0
      %p240 = por %p238, %p239
      %p241 = scmp.ne.s32.totalorder %s229, %s230
      %p242 = scmp.eq.s32.totalorder %s35, 3
      %p243 = por %p241, %p242
      %p245 = scmp.ne.s32.totalorder %s230, %s244
      %p246 = scmp.eq.s32.totalorder %s35, 0
      %p247 = por %p245, %p246
      %s249 = sadd.s32 %s248, 1
      %p252 = scmp.eq.s32.totalorder %s29, 3
      %p253 = scmp.ne.s32.totalorder %s248, %s250
      %p254 = scmp.eq.s32.totalorder %s29, 0
      %p255 = por %p253, %p254
      %p256 = scmp.ne.s32.totalorder %s248, %s250
      %p257 = scmp.eq.s32.totalorder %s34, 3
      %p258 = por %p256, %p257
      %p259 = scmp.ne.s32.totalorder %s250, %s251
      %p260 = scmp.eq.s32.totalorder %s34, 0
      %p261 = por %p259, %p260
      %p262 = scmp.ne.s32.totalorder %s250, %s251
      %p263 = scmp.eq.s32.totalorder %s35, 3
      %p264 = por %p262, %p263
      %p266 = scmp.ne.s32.totalorder %s251, %s265
      %p267 = scmp.eq.s32.totalorder %s35, 0
      %p268 = por %p266, %p267
      %s270 = sadd.s32 %s269, 1
      %p273 = scmp.eq.s32.totalorder %s29, 3
      %p274 = scmp.ne.s32.totalorder %s269, %s271
      %p275 = scmp.eq.s32.totalorder %s29, 0
      %p276 = por %p274, %p275
      %p277 = scmp.ne.s32.totalorder %s269, %s271
      %p278 = scmp.eq.s32.totalorder %s34, 3
      %p279 = por %p277, %p278
      %p280 = scmp.ne.s32.totalorder %s271, %s272
      %p281 = scmp.eq.s32.totalorder %s34, 0
      %p282 = por %p280, %p281
      %p283 = scmp.ne.s32.totalorder %s271, %s272
      %p284 = scmp.eq.s32.totalorder %s35, 3
      %p285 = por %p283, %p284
      %p287 = scmp.ne.s32.totalorder %s272, %s286
      %p288 = scmp.eq.s32.totalorder %s35, 0
      %p289 = por %p287, %p288
      %s291 = sadd.s32 %s290, 1
      %p294 = scmp.eq.s32.totalorder %s29, 3
      %p295 = scmp.ne.s32.totalorder %s290, %s292
      %p296 = scmp.eq.s32.totalorder %s29, 0
      %p297 = por %p295, %p296
      %p298 = scmp.ne.s32.totalorder %s290, %s292
      %p299 = scmp.eq.s32.totalorder %s34, 3
      %p300 = por %p298, %p299
      %p301 = scmp.ne.s32.totalorder %s292, %s293
      %p302 = scmp.eq.s32.totalorder %s34, 0
      %p303 = por %p301, %p302
      %p304 = scmp.ne.s32.totalorder %s292, %s293
      %p305 = scmp.eq.s32.totalorder %s35, 3
      %p306 = por %p304, %p305
      %p308 = scmp.ne.s32.totalorder %s293, %s307
      %p309 = scmp.eq.s32.totalorder %s35, 0
      %p310 = por %p308, %p309
      %s312 = sadd.s32 %s311, 1
      %p315 = scmp.eq.s32.totalorder %s29, 3
      %p316 = scmp.ne.s32.totalorder %s311, %s313
      %p317 = scmp.eq.s32.totalorder %s29, 0
      %p318 = por %p316, %p317
      %p319 = scmp.ne.s32.totalorder %s311, %s313
      %p320 = scmp.eq.s32.totalorder %s34, 3
      %p321 = por %p319, %p320
      %p322 = scmp.ne.s32.totalorder %s313, %s314
      %p323 = scmp.eq.s32.totalorder %s34, 0
      %p324 = por %p322, %p323
      %p325 = scmp.ne.s32.totalorder %s313, %s314
      %p326 = scmp.eq.s32.totalorder %s35, 3
      %p327 = por %p325, %p326
      %p329 = scmp.ne.s32.totalorder %s314, %s328
      %p330 = scmp.eq.s32.totalorder %s35, 0
      %p331 = por %p329, %p330
      %s333 = sadd.s32 %s332, 1
      %p336 = scmp.eq.s32.totalorder %s29, 3
      %p337 = scmp.ne.s32.totalorder %s332, %s334
      %p338 = scmp.eq.s32.totalorder %s29, 0
      %p339 = por %p337, %p338
      %p340 = scmp.ne.s32.totalorder %s332, %s334
      %p341 = scmp.eq.s32.totalorder %s34, 3
      %p342 = por %p340, %p341
      %p343 = scmp.ne.s32.totalorder %s334, %s335
      %p344 = scmp.eq.s32.totalorder %s34, 0
      %p345 = por %p343, %p344
      %p346 = scmp.ne.s32.totalorder %s334, %s335
      %p347 = scmp.eq.s32.totalorder %s35, 3
      %p348 = por %p346, %p347
      %p350 = scmp.ne.s32.totalorder %s335, %s349
      %p351 = scmp.eq.s32.totalorder %s35, 0
      %p352 = por %p350, %p351
      %s354 = sadd.s32 %s353, 1
      %p357 = scmp.eq.s32.totalorder %s29, 3
      %p358 = scmp.ne.s32.totalorder %s353, %s355
      %p359 = scmp.eq.s32.totalorder %s29, 0
      %p360 = por %p358, %p359
      %p361 = scmp.ne.s32.totalorder %s353, %s355
      %p362 = scmp.eq.s32.totalorder %s34, 3
      %p363 = por %p361, %p362
      %p364 = scmp.ne.s32.totalorder %s355, %s356
      %p365 = scmp.eq.s32.totalorder %s34, 0
      %p366 = por %p364, %p365
      %p367 = scmp.ne.s32.totalorder %s355, %s356
      %p368 = scmp.eq.s32.totalorder %s35, 3
      %p369 = por %p367, %p368
      %p371 = scmp.ne.s32.totalorder %s356, %s370
      %p372 = scmp.eq.s32.totalorder %s35, 0
      %p373 = por %p371, %p372
      %s375 = sadd.s32 %s374, 1
      %p378 = scmp.eq.s32.totalorder %s29, 3
      %p379 = scmp.ne.s32.totalorder %s374, %s376
      %p380 = scmp.eq.s32.totalorder %s29, 0
      %p381 = por %p379, %p380
      %p382 = scmp.ne.s32.totalorder %s374, %s376
      %p383 = scmp.eq.s32.totalorder %s34, 3
      %p384 = por %p382, %p383
      %p385 = scmp.ne.s32.totalorder %s376, %s377
      %p386 = scmp.eq.s32.totalorder %s34, 0
      %p387 = por %p385, %p386
      %p388 = scmp.ne.s32.totalorder %s376, %s377
      %p389 = scmp.eq.s32.totalorder %s35, 3
      %p390 = por %p388, %p389
      %p392 = scmp.ne.s32.totalorder %s377, %s391
      %p393 = scmp.eq.s32.totalorder %s35, 0
      %p394 = por %p392, %p393
      %s396 = sadd.s32 %s395, 1
      %p399 = scmp.eq.s32.totalorder %s29, 3
      %p400 = scmp.ne.s32.totalorder %s395, %s397
      %p401 = scmp.eq.s32.totalorder %s29, 0
      %p402 = por %p400, %p401
      %p403 = scmp.ne.s32.totalorder %s395, %s397
      %p404 = scmp.eq.s32.totalorder %s34, 3
      %p405 = por %p403, %p404
      %p406 = scmp.ne.s32.totalorder %s397, %s398
      %p407 = scmp.eq.s32.totalorder %s34, 0
      %p408 = por %p406, %p407
      %p409 = scmp.ne.s32.totalorder %s397, %s398
      %p410 = scmp.eq.s32.totalorder %s35, 3
      %p411 = por %p409, %p410
      %p413 = scmp.ne.s32.totalorder %s398, %s412
      %p414 = scmp.eq.s32.totalorder %s35, 0
      %p415 = por %p413, %p414
      %s417 = sadd.s32 %s416, 1
      %p420 = scmp.eq.s32.totalorder %s29, 3
      %p421 = scmp.ne.s32.totalorder %s416, %s418
      %p422 = scmp.eq.s32.totalorder %s29, 0
      %p423 = por %p421, %p422
      %p424 = scmp.ne.s32.totalorder %s416, %s418
      %p425 = scmp.eq.s32.totalorder %s34, 3
      %p426 = por %p424, %p425
      %p427 = scmp.ne.s32.totalorder %s418, %s419
      %p428 = scmp.eq.s32.totalorder %s34, 0
      %p429 = por %p427, %p428
      %p430 = scmp.ne.s32.totalorder %s418, %s419
      %p431 = scmp.eq.s32.totalorder %s35, 3
      %p432 = por %p430, %p431
      %p434 = scmp.ne.s32.totalorder %s419, %s433
      %p435 = scmp.eq.s32.totalorder %s35, 0
      %p436 = por %p434, %p435
      %s438 = sadd.s32 %s437, 1
      %p441 = scmp.eq.s32.totalorder %s29, 3
      %p442 = scmp.ne.s32.totalorder %s437, %s439
      %p443 = scmp.eq.s32.totalorder %s29, 0
      %p444 = por %p442, %p443
      %p445 = scmp.ne.s32.totalorder %s437, %s439
      %p446 = scmp.eq.s32.totalorder %s34, 3
      %p447 = por %p445, %p446
      %p448 = scmp.ne.s32.totalorder %s439, %s440
      %p449 = scmp.eq.s32.totalorder %s34, 0
      %p450 = por %p448, %p449
      %p451 = scmp.ne.s32.totalorder %s439, %s440
      %p452 = scmp.eq.s32.totalorder %s35, 3
      %p453 = por %p451, %p452
      %p455 = scmp.ne.s32.totalorder %s440, %s454
      %p456 = scmp.eq.s32.totalorder %s35, 0
      %p457 = por %p455, %p456
      %s459 = sadd.s32 %s458, 1
      %p462 = scmp.eq.s32.totalorder %s29, 3
      %p463 = scmp.ne.s32.totalorder %s458, %s460
      %p464 = scmp.eq.s32.totalorder %s29, 0
      %p465 = por %p463, %p464
      %p466 = scmp.ne.s32.totalorder %s458, %s460
      %p467 = scmp.eq.s32.totalorder %s34, 3
      %p468 = por %p466, %p467
      %p469 = scmp.ne.s32.totalorder %s460, %s461
      %p470 = scmp.eq.s32.totalorder %s34, 0
      %p471 = por %p469, %p470
      %p472 = scmp.ne.s32.totalorder %s460, %s461
      %p473 = scmp.eq.s32.totalorder %s35, 3
      %p474 = por %p472, %p473
      %p476 = scmp.ne.s32.totalorder %s461, %s475
      %p477 = scmp.eq.s32.totalorder %s35, 0
      %p478 = por %p476, %p477
      %s479 = ssub.s32 %s36, %s48
      %s480 = ssub.s32 %s37, %s44
      %s481 = sor.u32 %s479, %s480
      %p482 = scmp.eq.s32.totalorder %s481, 0
      %s484 = sadd.s32 %s483, 1
      %s485 = scalar_select %p482, %s483, %s484
      %p488 = pneg %p482
      %p489 = scmp.eq.s32.totalorder %s29, 3
      %p490 = por %p488, %p489
      %p491 = scmp.ne.s32.totalorder %s483, %s486
      %p492 = scmp.eq.s32.totalorder %s29, 0
      %p493 = por %p491, %p492
      %p494 = scmp.ne.s32.totalorder %s483, %s486
      %p495 = scmp.eq.s32.totalorder %s34, 3
      %p496 = por %p494, %p495
      %p497 = scmp.ne.s32.totalorder %s486, %s487
      %p498 = scmp.eq.s32.totalorder %s34, 0
      %p499 = por %p497, %p498
      %p500 = scmp.ne.s32.totalorder %s486, %s487
      %p501 = scmp.eq.s32.totalorder %s35, 3
      %p502 = por %p500, %p501
      %p504 = scmp.ne.s32.totalorder %s487, %s503
      %p505 = scmp.eq.s32.totalorder %s35, 0
      %p506 = por %p504, %p505
      %p507 = scmp.le.s32.totalorder 1, %s29
      %p508 = scmp.lt.s32.totalorder %s29, 5
      %p509 = pnand %p507, %p508
      %p510 = pneg %p509
      // Predicated region
      $region9: #{encoder_forward.3} parent=5 // pred_check
        _
      $region10: #{encoder_forward.3} parent=5 // pred_check_branch
        %512 = sbr.rel (%p509) target = $region12
      $region11: #{encoder_forward.3} parent=5 // pred_region
        %s513 = ssub.s32 %s29, 1
        // Predicated region
        $region13: #{encoder_forward.3} parent=11 // pred_check
          %p514 = pneg %p114
        $region14: #{encoder_forward.3} parent=11 // pred_check_branch
          %516 = sbr.rel (%p514) target = $region16
        $region15: #{encoder_forward.3} parent=11 // pred_region
          _
        $region16: #{encoder_forward.3} parent=11 // pred_fallthru
          _
        // Predicated region
        $region17: #{encoder_forward.3} parent=11 // pred_check
          %p517 = pneg %p135
        $region18: #{encoder_forward.3} parent=11 // pred_check_branch
          %519 = sbr.rel (%p517) target = $region20
        $region19: #{encoder_forward.3} parent=11 // pred_region
          _
        $region20: #{encoder_forward.3} parent=11 // pred_fallthru
          _
        // Predicated region
        $region21: #{encoder_forward.3} parent=11 // pred_check
          %p520 = pneg %p156
        $region22: #{encoder_forward.3} parent=11 // pred_check_branch
          %522 = sbr.rel (%p520) target = $region24
        $region23: #{encoder_forward.3} parent=11 // pred_region
          _
        $region24: #{encoder_forward.3} parent=11 // pred_fallthru
          _
        // Predicated region
        $region25: #{encoder_forward.3} parent=11 // pred_check
          %p523 = pneg %p177
        $region26: #{encoder_forward.3} parent=11 // pred_check_branch
          %525 = sbr.rel (%p523) target = $region28
        $region27: #{encoder_forward.3} parent=11 // pred_region
          _
        $region28: #{encoder_forward.3} parent=11 // pred_fallthru
          _
        // Predicated region
        $region29: #{encoder_forward.3} parent=11 // pred_check
          %p526 = pneg %p198
        $region30: #{encoder_forward.3} parent=11 // pred_check_branch
          %528 = sbr.rel (%p526) target = $region32
        $region31: #{encoder_forward.3} parent=11 // pred_region
          _
        $region32: #{encoder_forward.3} parent=11 // pred_fallthru
          _
        // Predicated region
        $region33: #{encoder_forward.3} parent=11 // pred_check
          %p529 = pneg %p219
        $region34: #{encoder_forward.3} parent=11 // pred_check_branch
          %531 = sbr.rel (%p529) target = $region36
        $region35: #{encoder_forward.3} parent=11 // pred_region
          _
        $region36: #{encoder_forward.3} parent=11 // pred_fallthru
          _
        // Predicated region
        $region37: #{encoder_forward.3} parent=11 // pred_check
          %p532 = pneg %p240
        $region38: #{encoder_forward.3} parent=11 // pred_check_branch
          %534 = sbr.rel (%p532) target = $region40
        $region39: #{encoder_forward.3} parent=11 // pred_region
          _
        $region40: #{encoder_forward.3} parent=11 // pred_fallthru
          _
        // Predicated region
        $region41: #{encoder_forward.3} parent=11 // pred_check
          %p535 = pneg %p261
        $region42: #{encoder_forward.3} parent=11 // pred_check_branch
          %537 = sbr.rel (%p535) target = $region44
        $region43: #{encoder_forward.3} parent=11 // pred_region
          _
        $region44: #{encoder_forward.3} parent=11 // pred_fallthru
          _
        // Predicated region
        $region45: #{encoder_forward.3} parent=11 // pred_check
          %p538 = pneg %p282
        $region46: #{encoder_forward.3} parent=11 // pred_check_branch
          %540 = sbr.rel (%p538) target = $region48
        $region47: #{encoder_forward.3} parent=11 // pred_region
          _
        $region48: #{encoder_forward.3} parent=11 // pred_fallthru
          _
        // Predicated region
        $region49: #{encoder_forward.3} parent=11 // pred_check
          %p541 = pneg %p303
        $region50: #{encoder_forward.3} parent=11 // pred_check_branch
          %543 = sbr.rel (%p541) target = $region52
        $region51: #{encoder_forward.3} parent=11 // pred_region
          _
        $region52: #{encoder_forward.3} parent=11 // pred_fallthru
          _
        // Predicated region
        $region53: #{encoder_forward.3} parent=11 // pred_check
          %p544 = pneg %p324
        $region54: #{encoder_forward.3} parent=11 // pred_check_branch
          %546 = sbr.rel (%p544) target = $region56
        $region55: #{encoder_forward.3} parent=11 // pred_region
          _
        $region56: #{encoder_forward.3} parent=11 // pred_fallthru
          _
        // Predicated region
        $region57: #{encoder_forward.3} parent=11 // pred_check
          %p547 = pneg %p345
        $region58: #{encoder_forward.3} parent=11 // pred_check_branch
          %549 = sbr.rel (%p547) target = $region60
        $region59: #{encoder_forward.3} parent=11 // pred_region
          _
        $region60: #{encoder_forward.3} parent=11 // pred_fallthru
          _
        // Predicated region
        $region61: #{encoder_forward.3} parent=11 // pred_check
          %p550 = pneg %p366
        $region62: #{encoder_forward.3} parent=11 // pred_check_branch
          %552 = sbr.rel (%p550) target = $region64
        $region63: #{encoder_forward.3} parent=11 // pred_region
          _
        $region64: #{encoder_forward.3} parent=11 // pred_fallthru
          _
        // Predicated region
        $region65: #{encoder_forward.3} parent=11 // pred_check
          %p553 = pneg %p387
        $region66: #{encoder_forward.3} parent=11 // pred_check_branch
          %555 = sbr.rel (%p553) target = $region68
        $region67: #{encoder_forward.3} parent=11 // pred_region
          _
        $region68: #{encoder_forward.3} parent=11 // pred_fallthru
          _
        // Predicated region
        $region69: #{encoder_forward.3} parent=11 // pred_check
          %p556 = pneg %p408
        $region70: #{encoder_forward.3} parent=11 // pred_check_branch
          %558 = sbr.rel (%p556) target = $region72
        $region71: #{encoder_forward.3} parent=11 // pred_region
          _
        $region72: #{encoder_forward.3} parent=11 // pred_fallthru
          _
        // Predicated region
        $region73: #{encoder_forward.3} parent=11 // pred_check
          %p559 = pneg %p429
        $region74: #{encoder_forward.3} parent=11 // pred_check_branch
          %561 = sbr.rel (%p559) target = $region76
        $region75: #{encoder_forward.3} parent=11 // pred_region
          _
        $region76: #{encoder_forward.3} parent=11 // pred_fallthru
          _
        // Predicated region
        $region77: #{encoder_forward.3} parent=11 // pred_check
          %p562 = pneg %p450
        $region78: #{encoder_forward.3} parent=11 // pred_check_branch
          %564 = sbr.rel (%p562) target = $region80
        $region79: #{encoder_forward.3} parent=11 // pred_region
          _
        $region80: #{encoder_forward.3} parent=11 // pred_fallthru
          _
        // Predicated region
        $region81: #{encoder_forward.3} parent=11 // pred_check
          %p565 = pneg %p471
        $region82: #{encoder_forward.3} parent=11 // pred_check_branch
          %567 = sbr.rel (%p565) target = $region84
        $region83: #{encoder_forward.3} parent=11 // pred_region
          _
        $region84: #{encoder_forward.3} parent=11 // pred_fallthru
          _
      $region12: #{encoder_forward.3} parent=5 // pred_fallthru
        _
      %p568 = scmp.lt.s32.totalorder %s29, 4
      // Predicated region
      $region85: #{encoder_forward.3} parent=5 // pred_check
        %p569 = pneg %p568
      $region86: #{encoder_forward.3} parent=5 // pred_check_branch
        %571 = sbr.rel (%p569) target = $region88
      $region87: #{encoder_forward.3} parent=5 // pred_region
        // Predicated region
        $region89: #{encoder_forward.3} parent=87 // pred_check
          %p572 = pneg %p61
        $region90: #{encoder_forward.3} parent=87 // pred_check_branch
          %574 = sbr.rel (%p572) target = $region92
        $region91: #{encoder_forward.3} parent=87 // pred_region
          %p575 = scmp.lt.s32.totalorder %s36, 1
          %s576 = scalar_select %p575, %s36, 1
          %s577 = smul.addr %s576, 2
          %s578 = smul.addr %s577, 4
          %s579 = scalar_lea.vmem %s0, %s578
        $region92: #{encoder_forward.3} parent=87 // pred_fallthru
          _
        // Predicated region
        $region93: #{encoder_forward.3} parent=87 // pred_check
          %p580 = pneg %p87
        $region94: #{encoder_forward.3} parent=87 // pred_check_branch
          %582 = sbr.rel (%p580) target = $region96
        $region95: #{encoder_forward.3} parent=87 // pred_region
          %p583 = scmp.lt.s32.totalorder %s37, 1
          %s584 = scalar_select %p583, %s37, 1
          %s585 = smul.addr %s584, 4
          %s586 = scalar_lea.vmem %s1, %s585
        $region96: #{encoder_forward.3} parent=87 // pred_fallthru
          _
      $region88: #{encoder_forward.3} parent=5 // pred_fallthru
        _
      %p587 = scmp.le.s32.totalorder 1, %s29
      %p588 = scmp.lt.s32.totalorder %s29, 5
      %p589 = pnand %p587, %p588
      %p590 = pneg %p589
      // Predicated region
      $region97: #{encoder_forward.3} parent=5 // pred_check
        _
      $region98: #{encoder_forward.3} parent=5 // pred_check_branch
        %592 = sbr.rel (%p589) target = $region100
      $region99: #{encoder_forward.3} parent=5 // pred_region
        %s593 = ssub.s32 %s29, 1
        %p594 = scmp.lt.s32.totalorder %s38, 1
        %s595 = scalar_select %p594, %s38, 1
        %s596 = smul.addr %s595, 2
        %s597 = smul.addr %s596, 4
        %s598 = scalar_lea.vmem %s0, %s597
        %p599 = pneg %p67
        %p600 = pneg %p64
        %p601 = scmp.lt.s32.totalorder %s39, 1
        %s602 = scalar_select %p601, %s39, 1
        %s603 = smul.addr %s602, 4
        %s604 = scalar_lea.vmem %s1, %s603
        %p605 = pneg %p93
        %p606 = pneg %p90
        %p607 = pneg %p114
        %p608 = pneg %p111
        %p609 = pneg %p135
        %p610 = pneg %p132
        %p611 = pneg %p156
        %p612 = pneg %p153
        %p613 = pneg %p177
        %p614 = pneg %p174
        %p615 = pneg %p198
        %p616 = pneg %p195
        %p617 = pneg %p219
        %p618 = pneg %p216
        %p619 = pneg %p240
        %p620 = pneg %p237
        %p621 = pneg %p261
        %p622 = pneg %p258
        %p623 = pneg %p282
        %p624 = pneg %p279
        %p625 = pneg %p303
        %p626 = pneg %p300
        %p627 = pneg %p324
        %p628 = pneg %p321
        %p629 = pneg %p345
        %p630 = pneg %p342
        %p631 = pneg %p366
        %p632 = pneg %p363
        %p633 = pneg %p387
        %p634 = pneg %p384
        %p635 = pneg %p408
        %p636 = pneg %p405
        %p637 = pneg %p429
        %p638 = pneg %p426
        %p639 = pneg %p450
        %p640 = pneg %p447
        %p641 = pneg %p471
        %p642 = pneg %p468
        %p643 = pneg %p499
        %p644 = pneg %p496
        %s645 = sand.u32 %s486, 1
        %s646 = scalar_lea.sflag [#allocation7], %s645
        %s647 = sand.u32 %s486, 1
        %s648 = smul.addr %s647, 8
        %s649 = scalar_lea.vmem [#allocation6], %s648
        %p650 = scmp.lt.s32.totalorder %s38, 1
        %s651 = scalar_select %p650, %s38, 1
        %s652 = smul.addr %s651, 2
        %s653 = smul.addr %s652, 4
        %s654 = scalar_lea.vmem %s0, %s653
        %p655 = scmp.lt.s32.totalorder %s39, 1
        %s656 = scalar_select %p655, %s39, 1
        %s657 = smul.addr %s656, 4
        %s658 = scalar_lea.vmem %s1, %s657
        %p660 = scmp.eq.s32.totalorder %s39, 0
        // Predicated region
        $region101: #{encoder_forward.3} parent=99 // pred_check
          %p661 = pneg %p660
        $region102: #{encoder_forward.3} parent=99 // pred_check_branch
          %663 = sbr.rel (%p661) target = $region104
        $region103: #{encoder_forward.3} parent=99 // pred_region
          %v664 = vld [vmem:[%s654] sm:$0xf]
          %v665 = vld [vmem:[%s654 + $0x4] sm:$0xf]
          %v666 = vunpack.c.l.bf16 %v664
          %v667 = vunpack.c.l.bf16 %v665
          %v668 = vld [vmem:[%s2] sm:$0x1]
          %v669 = vld [vmem:[%s3] sm:$0x1]
          %vm670 = vcmask 261120
          %v671 = vsel %vm670, %v666, 0.0
          %672 = vadd.xlane.f32.xlu0 %v671
          %v673 = vpop.xlane.xlu0 %672
          %v674 = vsel %vm670, %v667, 0.0
          %675 = vadd.xlane.f32.xlu0 %v674
          %v676 = vpop.xlane.xlu0 %675
          %v677 = vrcp.pop 32.0
          %v678 = vmul.f32 32.0, %v677
          %v679 = vsub.f32 1.0, %v678
          %v680 = vmul.f32 %v677, %v679
          %v681 = vadd.f32 %v677, %v680
          %vm682 = vweird.f32 %v677
          %v683 = vsel %vm682, %v677, %v681
          %v684 = vmul.f32 %v673, %v683
          %v685 = vmul.f32 %v676, %v683
          %v686 = vsub.f32 %v666, %v684
          %v687 = vsub.f32 %v667, %v685
          %v688 = vmul.f32 %v686, %v686
          %v689 = vmul.f32 %v687, %v687
          %v690 = vsel %vm670, %v688, 0.0
          %691 = vadd.xlane.f32.xlu0 %v690
          %v692 = vpop.xlane.xlu0 %691
          %v693 = vsel %vm670, %v689, 0.0
          %694 = vadd.xlane.f32.xlu0 %v693
          %v695 = vpop.xlane.xlu0 %694
          %v696 = vmul.f32 %v692, 0.032258064
          %v697 = vmul.f32 %v695, 0.032258064
          %v698 = vrsqrt.pop %v696
          %v699 = vmul.f32 %v698, %v696
          %v700 = vmul.f32 %v699, %v698
          %v701 = vmul.f32 0.5, %v700
          %v702 = vsub.f32 1.5, %v701
          %v703 = vmul.f32 %v698, %v702
          %v704 = vmul.f32 %v696, %v703
          %vm705 = vcmp.eq.f32.partialorder %v696, inf
          %v706 = vsel %vm705, %v696, %v704
          %vm707 = vcmp.eq.f32.partialorder %v696, 0.0
          %v708 = vand.u32 %v696, 2147483648
          %v709 = vsel %vm707, %v708, %v706
          %v710 = vrsqrt.pop %v697
          %v711 = vmul.f32 %v710, %v697
          %v712 = vmul.f32 %v711, %v710
          %v713 = vmul.f32 0.5, %v712
          %v714 = vsub.f32 1.5, %v713
          %v715 = vmul.f32 %v710, %v714
          %v716 = vmul.f32 %v697, %v715
          %vm717 = vcmp.eq.f32.partialorder %v697, inf
          %v718 = vsel %vm717, %v697, %v716
          %vm719 = vcmp.eq.f32.partialorder %v697, 0.0
          %v720 = vand.u32 %v697, 2147483648
          %v721 = vsel %vm719, %v720, %v718
          %v723 = vperm.slane %v668, 0
          %v725 = vmul.f32 %v723, %v686
          %v726 = vmul.f32 %v723, %v687
          %v727 = vadd.f32 %v709, 1e-06
          %v728 = vadd.f32 %v721, 1e-06
          %v729 = vrsqrt.pop %v727
          %v730 = vmul.f32 %v729, %v727
          %v731 = vmul.f32 %v730, %v729
          %v732 = vmul.f32 0.5, %v731
          %v733 = vsub.f32 1.5, %v732
          %v734 = vmul.f32 %v729, %v733
          %vm735 = vweird.f32 %v727
          %vm736 = vweird.f32 %v729
          %vm737 = vmor %vm735, %vm736
          %v738 = vsel %vm737, %v729, %v734
          %v739 = vrsqrt.pop %v728
          %v740 = vmul.f32 %v739, %v728
          %v741 = vmul.f32 %v740, %v739
          %v742 = vmul.f32 0.5, %v741
          %v743 = vsub.f32 1.5, %v742
          %v744 = vmul.f32 %v739, %v743
          %vm745 = vweird.f32 %v728
          %vm746 = vweird.f32 %v739
          %vm747 = vmor %vm745, %vm746
          %v748 = vsel %vm747, %v739, %v744
          %v749 = vmul.f32 %v725, %v738
          %v750 = vmul.f32 %v726, %v748
          %v752 = vperm.slane %v669, 0
          %v754 = vadd.f32 %v749, %v752
          %v755 = vadd.f32 %v750, %v752
          %v756 = vpack.c.bf16 %v754, %v754
          %v757 = vpack.c.bf16 %v755, %v755
          %vm758 = vcmask 257024
          %759 = vst.msk [vmem:[#allocation2] sm:$0xf] %vm758, %v756
          %760 = vst.msk [vmem:[#allocation2 + $0x4] sm:$0xf] %vm758, %v757
          %v761 = vld [vmem:[%s5] sm:$0xf]
          %v762 = vld [vmem:[%s5 + $0x4] sm:$0xf]
          %v763 = vld [vmem:[%s5 + $0x8] sm:$0xf]
          %v764 = vld [vmem:[%s5 + $0xc] sm:$0xf]
          %v765 = vld [vmem:[%s9] sm:$0x1]
          %v767 = vperm.slane %v765, 0
          %v771 = vunpack.c.l.b16 %v756
          %v772 = vunpack.c.l.b16 %v757
          %v773 = vpack.c.b16 %v772, %v771
          %v778 = vunpack.c.l.b16 %v761
          %v779 = vunpack.c.l.b16 %v762
          %v780 = vunpack.c.l.b16 %v763
          %v781 = vunpack.c.l.b16 %v764
          %v782 = vpack.c.b16 %v779, %v778
          %v783 = vpack.c.b16 %v781, %v780
          %v787 = vsel %vm670, %v773, 0
          %789 = vmatpush.bf16.msra.mxu0 0
          %790 = vmatpush.bf16.msra.mxu0 0
          %791 = vmatpush.bf16.msra.mxu0 0
          %792 = vmatpush.bf16.msra.mxu0 0
          %793 = vmatpush.bf16.msra.mxu0 0
          %794 = vmatpush.bf16.msra.mxu0 0
          %795 = vmatpush.bf16.msra.mxu0 %v783
          %796 = vmatpush.bf16.msra.mxu0 %v782
          %797 = vmatmul.bf16.gmra.mxu0 %v787
          %v798 = vpop.f32.mrf.mxu0
          %v799 = vadd.f32 %v767, %v798
          %v800 = vpop.f32.mrf.mxu0
          %v801 = vadd.f32 %v767, %v800
          %802 = vdwg.mxu0
          %v803 = vld [vmem:[%s6] sm:$0xf]
          %v804 = vld [vmem:[%s6 + $0x4] sm:$0xf]
          %v805 = vld [vmem:[%s6 + $0x8] sm:$0xf]
          %v806 = vld [vmem:[%s6 + $0xc] sm:$0xf]
          %v807 = vld [vmem:[%s10] sm:$0x1]
          %v809 = vperm.slane %v807, 0
          %v815 = vunpack.c.l.b16 %v803
          %v816 = vunpack.c.l.b16 %v804
          %v817 = vunpack.c.l.b16 %v805
          %v818 = vunpack.c.l.b16 %v806
          %v819 = vpack.c.b16 %v816, %v815
          %v820 = vpack.c.b16 %v818, %v817
          %823 = vmatpush.bf16.msra.mxu0 0
          %824 = vmatpush.bf16.msra.mxu0 0
          %825 = vmatpush.bf16.msra.mxu0 0
          %826 = vmatpush.bf16.msra.mxu0 0
          %827 = vmatpush.bf16.msra.mxu0 0
          %828 = vmatpush.bf16.msra.mxu0 0
          %829 = vmatpush.bf16.msra.mxu0 %v820
          %830 = vmatpush.bf16.msra.mxu0 %v819
          %831 = vmatmul.bf16.gmra.mxu0 %v787
          %v832 = vpop.f32.mrf.mxu0
          %v833 = vadd.f32 %v809, %v832
          %v834 = vpop.f32.mrf.mxu0
          %v835 = vadd.f32 %v809, %v834
          %836 = vdwg.mxu0
          %v837 = vpack.c.bf16 %v799, %v799
          %v838 = vpack.c.bf16 %v801, %v801
          %vm839 = vcmask 60416
          %840 = vst.msk [vmem:[#allocation3] sm:$0xf] %vm839, %v837
          %841 = vst.msk [vmem:[#allocation3 + $0x4] sm:$0xf] %vm839, %v838
          %v842 = vpack.c.bf16 %v833, %v833
          %v843 = vpack.c.bf16 %v835, %v835
          %844 = vst.msk [vmem:[#allocation4] sm:$0xf] %vm839, %v842
          %845 = vst.msk [vmem:[#allocation4 + $0x4] sm:$0xf] %vm839, %v843
          %s846 = scalar_lea.vmem %s5, 16
          %v847 = vld [vmem:[%s846] sm:$0xf]
          %v848 = vld [vmem:[%s846 + $0x4] sm:$0xf]
          %v849 = vld [vmem:[%s846 + $0x8] sm:$0xf]
          %v850 = vld [vmem:[%s846 + $0xc] sm:$0xf]
          %s851 = scalar_lea.vmem %s9, 1
          %v852 = vld [vmem:[%s851] sm:$0x1]
          %v854 = vperm.slane %v852, 0
          %v860 = vunpack.c.l.b16 %v847
          %v861 = vunpack.c.l.b16 %v848
          %v862 = vunpack.c.l.b16 %v849
          %v863 = vunpack.c.l.b16 %v850
          %v864 = vpack.c.b16 %v861, %v860
          %v865 = vpack.c.b16 %v863, %v862
          %868 = vmatpush.bf16.msra.mxu0 0
          %869 = vmatpush.bf16.msra.mxu0 0
          %870 = vmatpush.bf16.msra.mxu0 0
          %871 = vmatpush.bf16.msra.mxu0 0
          %872 = vmatpush.bf16.msra.mxu0 0
          %873 = vmatpush.bf16.msra.mxu0 0
          %874 = vmatpush.bf16.msra.mxu0 %v865
          %875 = vmatpush.bf16.msra.mxu0 %v864
          %876 = vmatmul.bf16.gmra.mxu0 %v787
          %v877 = vpop.f32.mrf.mxu0
          %v878 = vadd.f32 %v854, %v877
          %v879 = vpop.f32.mrf.mxu0
          %v880 = vadd.f32 %v854, %v879
          %881 = vdwg.mxu0
          %s882 = scalar_lea.vmem %s6, 16
          %v883 = vld [vmem:[%s882] sm:$0xf]
          %v884 = vld [vmem:[%s882 + $0x4] sm:$0xf]
          %v885 = vld [vmem:[%s882 + $0x8] sm:$0xf]
          %v886 = vld [vmem:[%s882 + $0xc] sm:$0xf]
          %s887 = scalar_lea.vmem %s10, 1
          %v888 = vld [vmem:[%s887] sm:$0x1]
          %v890 = vperm.slane %v888, 0
          %v896 = vunpack.c.l.b16 %v883
          %v897 = vunpack.c.l.b16 %v884
          %v898 = vunpack.c.l.b16 %v885
          %v899 = vunpack.c.l.b16 %v886
          %v900 = vpack.c.b16 %v897, %v896
          %v901 = vpack.c.b16 %v899, %v898
          %904 = vmatpush.bf16.msra.mxu0 0
          %905 = vmatpush.bf16.msra.mxu0 0
          %906 = vmatpush.bf16.msra.mxu0 0
          %907 = vmatpush.bf16.msra.mxu0 0
          %908 = vmatpush.bf16.msra.mxu0 0
          %909 = vmatpush.bf16.msra.mxu0 0
          %910 = vmatpush.bf16.msra.mxu0 %v901
          %911 = vmatpush.bf16.msra.mxu0 %v900
          %912 = vmatmul.bf16.gmra.mxu0 %v787
          %v913 = vpop.f32.mrf.mxu0
          %v914 = vadd.f32 %v890, %v913
          %v915 = vpop.f32.mrf.mxu0
          %v916 = vadd.f32 %v890, %v915
          %917 = vdwg.mxu0
          %v918 = vpack.c.bf16 %v878, %v878
          %v919 = vpack.c.bf16 %v880, %v880
          %s920 = scalar_lea.vmem [#allocation3], 8
          %921 = vst.msk [vmem:[%s920] sm:$0xf] %vm839, %v918
          %922 = vst.msk [vmem:[%s920 + $0x4] sm:$0xf] %vm839, %v919
          %v923 = vpack.c.bf16 %v914, %v914
          %v924 = vpack.c.bf16 %v916, %v916
          %s925 = scalar_lea.vmem [#allocation4], 8
          %926 = vst.msk [vmem:[%s925] sm:$0xf] %vm839, %v923
          %927 = vst.msk [vmem:[%s925 + $0x4] sm:$0xf] %vm839, %v924
          %s928 = scalar_lea.vmem %s5, 32
          %v929 = vld [vmem:[%s928] sm:$0xf]
          %v930 = vld [vmem:[%s928 + $0x4] sm:$0xf]
          %v931 = vld [vmem:[%s928 + $0x8] sm:$0xf]
          %v932 = vld [vmem:[%s928 + $0xc] sm:$0xf]
          %s933 = scalar_lea.vmem %s9, 2
          %v934 = vld [vmem:[%s933] sm:$0x1]
          %v936 = vperm.slane %v934, 0
          %v942 = vunpack.c.l.b16 %v929
          %v943 = vunpack.c.l.b16 %v930
          %v944 = vunpack.c.l.b16 %v931
          %v945 = vunpack.c.l.b16 %v932
          %v946 = vpack.c.b16 %v943, %v942
          %v947 = vpack.c.b16 %v945, %v944
          %950 = vmatpush.bf16.msra.mxu0 0
          %951 = vmatpush.bf16.msra.mxu0 0
          %952 = vmatpush.bf16.msra.mxu0 0
          %953 = vmatpush.bf16.msra.mxu0 0
          %954 = vmatpush.bf16.msra.mxu0 0
          %955 = vmatpush.bf16.msra.mxu0 0
          %956 = vmatpush.bf16.msra.mxu0 %v947
          %957 = vmatpush.bf16.msra.mxu0 %v946
          %958 = vmatmul.bf16.gmra.mxu0 %v787
          %v959 = vpop.f32.mrf.mxu0
          %v960 = vadd.f32 %v936, %v959
          %v961 = vpop.f32.mrf.mxu0
          %v962 = vadd.f32 %v936, %v961
          %963 = vdwg.mxu0
          %s964 = scalar_lea.vmem %s6, 32
          %v965 = vld [vmem:[%s964] sm:$0xf]
          %v966 = vld [vmem:[%s964 + $0x4] sm:$0xf]
          %v967 = vld [vmem:[%s964 + $0x8] sm:$0xf]
          %v968 = vld [vmem:[%s964 + $0xc] sm:$0xf]
          %s969 = scalar_lea.vmem %s10, 2
          %v970 = vld [vmem:[%s969] sm:$0x1]
          %v972 = vperm.slane %v970, 0
          %v978 = vunpack.c.l.b16 %v965
          %v979 = vunpack.c.l.b16 %v966
          %v980 = vunpack.c.l.b16 %v967
          %v981 = vunpack.c.l.b16 %v968
          %v982 = vpack.c.b16 %v979, %v978
          %v983 = vpack.c.b16 %v981, %v980
          %986 = vmatpush.bf16.msra.mxu0 0
          %987 = vmatpush.bf16.msra.mxu0 0
          %988 = vmatpush.bf16.msra.mxu0 0
          %989 = vmatpush.bf16.msra.mxu0 0
          %990 = vmatpush.bf16.msra.mxu0 0
          %991 = vmatpush.bf16.msra.mxu0 0
          %992 = vmatpush.bf16.msra.mxu0 %v983
          %993 = vmatpush.bf16.msra.mxu0 %v982
          %994 = vmatmul.bf16.gmra.mxu0 %v787
          %v995 = vpop.f32.mrf.mxu0
          %v996 = vadd.f32 %v972, %v995
          %v997 = vpop.f32.mrf.mxu0
          %v998 = vadd.f32 %v972, %v997
          %999 = vdwg.mxu0
          %v1000 = vpack.c.bf16 %v960, %v960
          %v1001 = vpack.c.bf16 %v962, %v962
          %s1002 = scalar_lea.vmem [#allocation3], 16
          %1003 = vst.msk [vmem:[%s1002] sm:$0xf] %vm839, %v1000
          %1004 = vst.msk [vmem:[%s1002 + $0x4] sm:$0xf] %vm839, %v1001
          %v1005 = vpack.c.bf16 %v996, %v996
          %v1006 = vpack.c.bf16 %v998, %v998
          %s1007 = scalar_lea.vmem [#allocation4], 16
          %1008 = vst.msk [vmem:[%s1007] sm:$0xf] %vm839, %v1005
          %1009 = vst.msk [vmem:[%s1007 + $0x4] sm:$0xf] %vm839, %v1006
          %s1010 = scalar_lea.vmem %s5, 48
          %v1011 = vld [vmem:[%s1010] sm:$0xf]
          %v1012 = vld [vmem:[%s1010 + $0x4] sm:$0xf]
          %v1013 = vld [vmem:[%s1010 + $0x8] sm:$0xf]
          %v1014 = vld [vmem:[%s1010 + $0xc] sm:$0xf]
          %s1015 = scalar_lea.vmem %s9, 3
          %v1016 = vld [vmem:[%s1015] sm:$0x1]
          %v1018 = vperm.slane %v1016, 0
          %v1024 = vunpack.c.l.b16 %v1011
          %v1025 = vunpack.c.l.b16 %v1012
          %v1026 = vunpack.c.l.b16 %v1013
          %v1027 = vunpack.c.l.b16 %v1014
          %v1028 = vpack.c.b16 %v1025, %v1024
          %v1029 = vpack.c.b16 %v1027, %v1026
          %1032 = vmatpush.bf16.msra.mxu0 0
          %1033 = vmatpush.bf16.msra.mxu0 0
          %1034 = vmatpush.bf16.msra.mxu0 0
          %1035 = vmatpush.bf16.msra.mxu0 0
          %1036 = vmatpush.bf16.msra.mxu0 0
          %1037 = vmatpush.bf16.msra.mxu0 0
          %1038 = vmatpush.bf16.msra.mxu0 %v1029
          %1039 = vmatpush.bf16.msra.mxu0 %v1028
          %1040 = vmatmul.bf16.gmra.mxu0 %v787
          %v1041 = vpop.f32.mrf.mxu0
          %v1042 = vadd.f32 %v1018, %v1041
          %v1043 = vpop.f32.mrf.mxu0
          %v1044 = vadd.f32 %v1018, %v1043
          %1045 = vdwg.mxu0
          %s1046 = scalar_lea.vmem %s6, 48
          %v1047 = vld [vmem:[%s1046] sm:$0xf]
          %v1048 = vld [vmem:[%s1046 + $0x4] sm:$0xf]
          %v1049 = vld [vmem:[%s1046 + $0x8] sm:$0xf]
          %v1050 = vld [vmem:[%s1046 + $0xc] sm:$0xf]
          %s1051 = scalar_lea.vmem %s10, 3
          %v1052 = vld [vmem:[%s1051] sm:$0x1]
          %v1054 = vperm.slane %v1052, 0
          %v1060 = vunpack.c.l.b16 %v1047
          %v1061 = vunpack.c.l.b16 %v1048
          %v1062 = vunpack.c.l.b16 %v1049
          %v1063 = vunpack.c.l.b16 %v1050
          %v1064 = vpack.c.b16 %v1061, %v1060
          %v1065 = vpack.c.b16 %v1063, %v1062
          %1068 = vmatpush.bf16.msra.mxu0 0
          %1069 = vmatpush.bf16.msra.mxu0 0
          %1070 = vmatpush.bf16.msra.mxu0 0
          %1071 = vmatpush.bf16.msra.mxu0 0
          %1072 = vmatpush.bf16.msra.mxu0 0
          %1073 = vmatpush.bf16.msra.mxu0 0
          %1074 = vmatpush.bf16.msra.mxu0 %v1065
          %1075 = vmatpush.bf16.msra.mxu0 %v1064
          %1076 = vmatmul.bf16.gmra.mxu0 %v787
          %v1077 = vpop.f32.mrf.mxu0
          %v1078 = vadd.f32 %v1054, %v1077
          %v1079 = vpop.f32.mrf.mxu0
          %v1080 = vadd.f32 %v1054, %v1079
          %1081 = vdwg.mxu0
          %v1082 = vpack.c.bf16 %v1042, %v1042
          %v1083 = vpack.c.bf16 %v1044, %v1044
          %s1084 = scalar_lea.vmem [#allocation3], 24
          %1085 = vst.msk [vmem:[%s1084] sm:$0xf] %vm839, %v1082
          %1086 = vst.msk [vmem:[%s1084 + $0x4] sm:$0xf] %vm839, %v1083
          %v1087 = vpack.c.bf16 %v1078, %v1078
          %v1088 = vpack.c.bf16 %v1080, %v1080
          %s1089 = scalar_lea.vmem [#allocation4], 24
          %1090 = vst.msk [vmem:[%s1089] sm:$0xf] %vm839, %v1087
          %1091 = vst.msk [vmem:[%s1089 + $0x4] sm:$0xf] %vm839, %v1088
        $region104: #{encoder_forward.3} parent=99 // pred_fallthru
          _
        %s1092 = smul.u32 %s39, 8
        %s1093 = sshra.s32 %s1092, 3
        %s1094 = sand.u32 %s1092, 7
        %s1095 = smul.addr %s1093, 4
        %s1096 = scalar_lea.vmem %s654, %s1095
        %v1097 = vld [vmem:[%s1096] sm:$0xf]
        %v1098 = vunpack.c.l.bf16 %v1097
        %s1099 = smul.addr %s1093, 4
        %s1100 = scalar_lea.vmem [#allocation2], %s1099
        %v1101 = vld [vmem:[%s1100] sm:$0xf]
        %v1102 = vld [vmem:[%s658] sm:$0xf]
        %v1103 = vunpack.c.l.bf16 %v1102
        %vm1104 = vcmask 261120
        %1105 = vst.msk [vmem:[#allocation5] sm:$0xff] %vm1104, 0.0
        %v1106 = vld [vmem:[%s4] sm:$0xf]
        %v1107 = vld [vmem:[%s4 + $0x4] sm:$0xf]
        %v1108 = vld [vmem:[%s4 + $0x8] sm:$0xf]
        %v1109 = vld [vmem:[%s4 + $0xc] sm:$0xf]
        %v1110 = vld [vmem:[%s8] sm:$0x1]
        %v1112 = vperm.slane %v1110, 0
        %v1118 = vunpack.c.l.b16 %v1106
        %v1119 = vunpack.c.l.b16 %v1107
        %v1120 = vunpack.c.l.b16 %v1108
        %v1121 = vunpack.c.l.b16 %v1109
        %v1122 = vpack.c.b16 %v1119, %v1118
        %v1123 = vpack.c.b16 %v1121, %v1120
        %v1127 = vsel %vm1104, %v1101, 0
        %1129 = vmatpush.bf16.msra.mxu0 0
        %1130 = vmatpush.bf16.msra.mxu0 0
        %1131 = vmatpush.bf16.msra.mxu0 0
        %1132 = vmatpush.bf16.msra.mxu0 0
        %1133 = vmatpush.bf16.msra.mxu0 0
        %1134 = vmatpush.bf16.msra.mxu0 0
        %1135 = vmatpush.bf16.msra.mxu0 %v1123
        %1136 = vmatpush.bf16.msra.mxu0 %v1122
        %1137 = vmatmul.bf16.gmra.mxu0 %v1127
        %v1138 = vpop.f32.mrf.mxu0
        %v1139 = vadd.f32 %v1112, %v1138
        %v1140 = vpop.f32.mrf.mxu0
        %1141 = vdwg.mxu0
        %v1142 = vpack.c.bf16 %v1139, %v1139
        %v1143 = vld [vmem:[#allocation3] sm:$0xf]
        %v1144 = vld [vmem:[#allocation3 + $0x4] sm:$0xf]
        %v1147 = vunpack.c.l.b16 %v1143
        %v1148 = vunpack.c.l.b16 %v1144
        %v1149 = vpack.c.b16 %v1148, %v1147
        %vm1150 = vcmask 64512
        %v1152 = vsel %vm1150, %v1142, 0
        %v1155 = vsel %vm1150, %v1149, 0
        %1157 = vmatpush.bf16.xpose.msra.mxu0 0
        %1158 = vmatpush.bf16.xpose.msra.mxu0 0
        %1159 = vmatpush.bf16.xpose.msra.mxu0 0
        %1160 = vmatpush.bf16.xpose.msra.mxu0 0
        %1161 = vmatpush.bf16.xpose.msra.mxu0 0
        %1162 = vmatpush.bf16.xpose.msra.mxu0 0
        %1163 = vmatpush.bf16.xpose.msra.mxu0 0
        %1164 = vmatpush.bf16.xpose.msra.mxu0 %v1155
        %1165 = vmatmul.bf16.gmra.mxu0 %v1152
        %v1166 = vpop.f32.mrf.mxu0
        %v1167 = vadd.f32 %v1103, %v1166
        %v1168 = vpop.f32.mrf.mxu0
        %1169 = vdwg.mxu0
        %vm1170 = vcmask 130048
        %v1171 = vsel %vm1170, %v1167, -inf
        %1172 = vmax.xlane.f32.xlu0 %v1171
        %v1173 = vpop.xlane.xlu0 %1172
        %v1174 = vsub.f32 %v1167, %v1173
        %v1175 = vmul.f32 %v1174, 1.442695
        %v1176 = vpow.pop %v1175
        %v1177 = vsel %vm1170, %v1176, 0.0
        %1178 = vadd.xlane.f32.xlu0 %v1177
        %v1179 = vpop.xlane.xlu0 %1178
        %v1180 = vrcp.pop %v1179
        %v1181 = vmul.f32 %v1179, %v1180
        %v1182 = vsub.f32 1.0, %v1181
        %v1183 = vmul.f32 %v1180, %v1182
        %v1184 = vadd.f32 %v1180, %v1183
        %vm1185 = vweird.f32 %v1179
        %vm1186 = vweird.f32 %v1180
        %vm1187 = vmor %vm1185, %vm1186
        %v1188 = vsel %vm1187, %v1180, %v1184
        %v1189 = vand.u32 2147483647, %v1179
        %vm1190 = vcmp.eq.f32.partialorder %v1189, 8.507059e+37
        %v1191 = vand.u32 %v1179, 2147483648
        %v1192 = vor.u32 1.1754944e-38, %v1191
        %v1193 = vsel %vm1190, %v1192, %v1188
        %v1194 = vmul.f32 %v1176, %v1193
        %v1195 = vpack.c.bf16 %v1194, %v1194
        %v1196 = vld [vmem:[#allocation4] sm:$0xf]
        %v1197 = vld [vmem:[#allocation4 + $0x4] sm:$0xf]
        %v1200 = vunpack.c.l.b16 %v1196
        %v1201 = vunpack.c.l.b16 %v1197
        %v1202 = vpack.c.b16 %v1201, %v1200
        %v1205 = vsel %vm1170, %v1195, 0
        %1207 = vmatpush.bf16.msra.mxu0 0
        %1208 = vmatpush.bf16.msra.mxu0 0
        %1209 = vmatpush.bf16.msra.mxu0 0
        %1210 = vmatpush.bf16.msra.mxu0 0
        %1211 = vmatpush.bf16.msra.mxu0 0
        %1212 = vmatpush.bf16.msra.mxu0 0
        %1213 = vmatpush.bf16.msra.mxu0 0
        %1214 = vmatpush.bf16.msra.mxu0 %v1202
        %1215 = vmatmul.bf16.gmra.mxu0 %v1205
        %v1216 = vpop.f32.mrf.mxu0
        %v1217 = vadd.f32 0.0, %v1216
        %v1218 = vpop.f32.mrf.mxu0
        %1219 = vdwg.mxu0
        %v1220 = vld [vmem:[#allocation5] sm:$0xff]
        %v1221 = vpack.c.bf16 %v1217, %v1217
        %v1222 = vld [vmem:[%s7] sm:$0xf]
        %v1224 = vsel %vm1150, %v1221, 0
        %vm1226 = vcmask 1043456
        %v1228 = vsel %vm1226, %v1222, 0
        %1230 = vmatpush.bf16.msra.mxu0 0
        %1231 = vmatpush.bf16.msra.mxu0 0
        %1232 = vmatpush.bf16.msra.mxu0 0
        %1233 = vmatpush.bf16.msra.mxu0 0
        %1234 = vmatpush.bf16.msra.mxu0 0
        %1235 = vmatpush.bf16.msra.mxu0 0
        %1236 = vmatpush.bf16.msra.mxu0 0
        %1237 = vmatpush.bf16.msra.mxu0 %v1228
        %1238 = vmatmul.bf16.gmra.mxu0 %v1224
        %v1239 = vpop.f32.mrf.mxu0
        %v1240 = vadd.f32 0.0, %v1239
        %v1241 = vpop.f32.mrf.mxu0
        %1242 = vdwg.mxu0
        %v1243 = vadd.f32 %v1220, %v1240
        %1244 = vst.msk [vmem:[#allocation5] sm:$0xff] %vm1104, %v1243
        %s1245 = scalar_lea.vmem %s4, 16
        %v1246 = vld [vmem:[%s1245] sm:$0xf]
        %v1247 = vld [vmem:[%s1245 + $0x4] sm:$0xf]
        %v1248 = vld [vmem:[%s1245 + $0x8] sm:$0xf]
        %v1249 = vld [vmem:[%s1245 + $0xc] sm:$0xf]
        %s1250 = scalar_lea.vmem %s8, 1
        %v1251 = vld [vmem:[%s1250] sm:$0x1]
        %v1253 = vperm.slane %v1251, 0
        %v1259 = vunpack.c.l.b16 %v1246
        %v1260 = vunpack.c.l.b16 %v1247
        %v1261 = vunpack.c.l.b16 %v1248
        %v1262 = vunpack.c.l.b16 %v1249
        %v1263 = vpack.c.b16 %v1260, %v1259
        %v1264 = vpack.c.b16 %v1262, %v1261
        %1267 = vmatpush.bf16.msra.mxu0 0
        %1268 = vmatpush.bf16.msra.mxu0 0
        %1269 = vmatpush.bf16.msra.mxu0 0
        %1270 = vmatpush.bf16.msra.mxu0 0
        %1271 = vmatpush.bf16.msra.mxu0 0
        %1272 = vmatpush.bf16.msra.mxu0 0
        %1273 = vmatpush.bf16.msra.mxu0 %v1264
        %1274 = vmatpush.bf16.msra.mxu0 %v1263
        %1275 = vmatmul.bf16.gmra.mxu0 %v1127
        %v1276 = vpop.f32.mrf.mxu0
        %v1277 = vadd.f32 %v1253, %v1276
        %v1278 = vpop.f32.mrf.mxu0
        %1279 = vdwg.mxu0
        %v1280 = vpack.c.bf16 %v1277, %v1277
        %s1281 = scalar_lea.vmem [#allocation3], 8
        %v1282 = vld [vmem:[%s1281] sm:$0xf]
        %v1283 = vld [vmem:[%s1281 + $0x4] sm:$0xf]
        %v1286 = vunpack.c.l.b16 %v1282
        %v1287 = vunpack.c.l.b16 %v1283
        %v1288 = vpack.c.b16 %v1287, %v1286
        %v1290 = vsel %vm1150, %v1280, 0
        %v1293 = vsel %vm1150, %v1288, 0
        %1295 = vmatpush.bf16.xpose.msra.mxu0 0
        %1296 = vmatpush.bf16.xpose.msra.mxu0 0
        %1297 = vmatpush.bf16.xpose.msra.mxu0 0
        %1298 = vmatpush.bf16.xpose.msra.mxu0 0
        %1299 = vmatpush.bf16.xpose.msra.mxu0 0
        %1300 = vmatpush.bf16.xpose.msra.mxu0 0
        %1301 = vmatpush.bf16.xpose.msra.mxu0 0
        %1302 = vmatpush.bf16.xpose.msra.mxu0 %v1293
        %1303 = vmatmul.bf16.gmra.mxu0 %v1290
        %v1304 = vpop.f32.mrf.mxu0
        %v1305 = vadd.f32 %v1103, %v1304
        %v1306 = vpop.f32.mrf.mxu0
        %1307 = vdwg.mxu0
        %v1308 = vsel %vm1170, %v1305, -inf
        %1309 = vmax.xlane.f32.xlu0 %v1308
        %v1310 = vpop.xlane.xlu0 %1309
        %v1311 = vsub.f32 %v1305, %v1310
        %v1312 = vmul.f32 %v1311, 1.442695
        %v1313 = vpow.pop %v1312
        %v1314 = vsel %vm1170, %v1313, 0.0
        %1315 = vadd.xlane.f32.xlu0 %v1314
        %v1316 = vpop.xlane.xlu0 %1315
        %v1317 = vrcp.pop %v1316
        %v1318 = vmul.f32 %v1316, %v1317
        %v1319 = vsub.f32 1.0, %v1318
        %v1320 = vmul.f32 %v1317, %v1319
        %v1321 = vadd.f32 %v1317, %v1320
        %vm1322 = vweird.f32 %v1316
        %vm1323 = vweird.f32 %v1317
        %vm1324 = vmor %vm1322, %vm1323
        %v1325 = vsel %vm1324, %v1317, %v1321
        %v1326 = vand.u32 2147483647, %v1316
        %vm1327 = vcmp.eq.f32.partialorder %v1326, 8.507059e+37
        %v1328 = vand.u32 %v1316, 2147483648
        %v1329 = vor.u32 1.1754944e-38, %v1328
        %v1330 = vsel %vm1327, %v1329, %v1325
        %v1331 = vmul.f32 %v1313, %v1330
        %v1332 = vpack.c.bf16 %v1331, %v1331
        %s1333 = scalar_lea.vmem [#allocation4], 8
        %v1334 = vld [vmem:[%s1333] sm:$0xf]
        %v1335 = vld [vmem:[%s1333 + $0x4] sm:$0xf]
        %v1338 = vunpack.c.l.b16 %v1334
        %v1339 = vunpack.c.l.b16 %v1335
        %v1340 = vpack.c.b16 %v1339, %v1338
        %v1343 = vsel %vm1170, %v1332, 0
        %1345 = vmatpush.bf16.msra.mxu0 0
        %1346 = vmatpush.bf16.msra.mxu0 0
        %1347 = vmatpush.bf16.msra.mxu0 0
        %1348 = vmatpush.bf16.msra.mxu0 0
        %1349 = vmatpush.bf16.msra.mxu0 0
        %1350 = vmatpush.bf16.msra.mxu0 0
        %1351 = vmatpush.bf16.msra.mxu0 0
        %1352 = vmatpush.bf16.msra.mxu0 %v1340
        %1353 = vmatmul.bf16.gmra.mxu0 %v1343
        %v1354 = vpop.f32.mrf.mxu0
        %v1355 = vadd.f32 0.0, %v1354
        %v1356 = vpop.f32.mrf.mxu0
        %1357 = vdwg.mxu0
        %v1358 = vld [vmem:[#allocation5] sm:$0xff]
        %v1359 = vpack.c.bf16 %v1355, %v1355
        %s1360 = scalar_lea.vmem %s7, 4
        %v1361 = vld [vmem:[%s1360] sm:$0xf]
        %v1363 = vsel %vm1150, %v1359, 0
        %v1366 = vsel %vm1226, %v1361, 0
        %1368 = vmatpush.bf16.msra.mxu0 0
        %1369 = vmatpush.bf16.msra.mxu0 0
        %1370 = vmatpush.bf16.msra.mxu0 0
        %1371 = vmatpush.bf16.msra.mxu0 0
        %1372 = vmatpush.bf16.msra.mxu0 0
        %1373 = vmatpush.bf16.msra.mxu0 0
        %1374 = vmatpush.bf16.msra.mxu0 0
        %1375 = vmatpush.bf16.msra.mxu0 %v1366
        %1376 = vmatmul.bf16.gmra.mxu0 %v1363
        %v1377 = vpop.f32.mrf.mxu0
        %v1378 = vadd.f32 0.0, %v1377
        %v1379 = vpop.f32.mrf.mxu0
        %1380 = vdwg.mxu0
        %v1381 = vadd.f32 %v1358, %v1378
        %1382 = vst.msk [vmem:[#allocation5] sm:$0xff] %vm1104, %v1381
        %s1383 = scalar_lea.vmem %s4, 32
        %v1384 = vld [vmem:[%s1383] sm:$0xf]
        %v1385 = vld [vmem:[%s1383 + $0x4] sm:$0xf]
        %v1386 = vld [vmem:[%s1383 + $0x8] sm:$0xf]
        %v1387 = vld [vmem:[%s1383 + $0xc] sm:$0xf]
        %s1388 = scalar_lea.vmem %s8, 2
        %v1389 = vld [vmem:[%s1388] sm:$0x1]
        %v1391 = vperm.slane %v1389, 0
        %v1397 = vunpack.c.l.b16 %v1384
        %v1398 = vunpack.c.l.b16 %v1385
        %v1399 = vunpack.c.l.b16 %v1386
        %v1400 = vunpack.c.l.b16 %v1387
        %v1401 = vpack.c.b16 %v1398, %v1397
        %v1402 = vpack.c.b16 %v1400, %v1399
        %1405 = vmatpush.bf16.msra.mxu0 0
        %1406 = vmatpush.bf16.msra.mxu0 0
        %1407 = vmatpush.bf16.msra.mxu0 0
        %1408 = vmatpush.bf16.msra.mxu0 0
        %1409 = vmatpush.bf16.msra.mxu0 0
        %1410 = vmatpush.bf16.msra.mxu0 0
        %1411 = vmatpush.bf16.msra.mxu0 %v1402
        %1412 = vmatpush.bf16.msra.mxu0 %v1401
        %1413 = vmatmul.bf16.gmra.mxu0 %v1127
        %v1414 = vpop.f32.mrf.mxu0
        %v1415 = vadd.f32 %v1391, %v1414
        %v1416 = vpop.f32.mrf.mxu0
        %1417 = vdwg.mxu0
        %v1418 = vpack.c.bf16 %v1415, %v1415
        %s1419 = scalar_lea.vmem [#allocation3], 16
        %v1420 = vld [vmem:[%s1419] sm:$0xf]
        %v1421 = vld [vmem:[%s1419 + $0x4] sm:$0xf]
        %v1424 = vunpack.c.l.b16 %v1420
        %v1425 = vunpack.c.l.b16 %v1421
        %v1426 = vpack.c.b16 %v1425, %v1424
        %v1428 = vsel %vm1150, %v1418, 0
        %v1431 = vsel %vm1150, %v1426, 0
        %1433 = vmatpush.bf16.xpose.msra.mxu0 0
        %1434 = vmatpush.bf16.xpose.msra.mxu0 0
        %1435 = vmatpush.bf16.xpose.msra.mxu0 0
        %1436 = vmatpush.bf16.xpose.msra.mxu0 0
        %1437 = vmatpush.bf16.xpose.msra.mxu0 0
        %1438 = vmatpush.bf16.xpose.msra.mxu0 0
        %1439 = vmatpush.bf16.xpose.msra.mxu0 0
        %1440 = vmatpush.bf16.xpose.msra.mxu0 %v1431
        %1441 = vmatmul.bf16.gmra.mxu0 %v1428
        %v1442 = vpop.f32.mrf.mxu0
        %v1443 = vadd.f32 %v1103, %v1442
        %v1444 = vpop.f32.mrf.mxu0
        %1445 = vdwg.mxu0
        %v1446 = vsel %vm1170, %v1443, -inf
        %1447 = vmax.xlane.f32.xlu0 %v1446
        %v1448 = vpop.xlane.xlu0 %1447
        %v1449 = vsub.f32 %v1443, %v1448
        %v1450 = vmul.f32 %v1449, 1.442695
        %v1451 = vpow.pop %v1450
        %v1452 = vsel %vm1170, %v1451, 0.0
        %1453 = vadd.xlane.f32.xlu0 %v1452
        %v1454 = vpop.xlane.xlu0 %1453
        %v1455 = vrcp.pop %v1454
        %v1456 = vmul.f32 %v1454, %v1455
        %v1457 = vsub.f32 1.0, %v1456
        %v1458 = vmul.f32 %v1455, %v1457
        %v1459 = vadd.f32 %v1455, %v1458
        %vm1460 = vweird.f32 %v1454
        %vm1461 = vweird.f32 %v1455
        %vm1462 = vmor %vm1460, %vm1461
        %v1463 = vsel %vm1462, %v1455, %v1459
        %v1464 = vand.u32 2147483647, %v1454
        %vm1465 = vcmp.eq.f32.partialorder %v1464, 8.507059e+37
        %v1466 = vand.u32 %v1454, 2147483648
        %v1467 = vor.u32 1.1754944e-38, %v1466
        %v1468 = vsel %vm1465, %v1467, %v1463
        %v1469 = vmul.f32 %v1451, %v1468
        %v1470 = vpack.c.bf16 %v1469, %v1469
        %s1471 = scalar_lea.vmem [#allocation4], 16
        %v1472 = vld [vmem:[%s1471] sm:$0xf]
        %v1473 = vld [vmem:[%s1471 + $0x4] sm:$0xf]
        %v1476 = vunpack.c.l.b16 %v1472
        %v1477 = vunpack.c.l.b16 %v1473
        %v1478 = vpack.c.b16 %v1477, %v1476
        %v1481 = vsel %vm1170, %v1470, 0
        %1483 = vmatpush.bf16.msra.mxu0 0
        %1484 = vmatpush.bf16.msra.mxu0 0
        %1485 = vmatpush.bf16.msra.mxu0 0
        %1486 = vmatpush.bf16.msra.mxu0 0
        %1487 = vmatpush.bf16.msra.mxu0 0
        %1488 = vmatpush.bf16.msra.mxu0 0
        %1489 = vmatpush.bf16.msra.mxu0 0
        %1490 = vmatpush.bf16.msra.mxu0 %v1478
        %1491 = vmatmul.bf16.gmra.mxu0 %v1481
        %v1492 = vpop.f32.mrf.mxu0
        %v1493 = vadd.f32 0.0, %v1492
        %v1494 = vpop.f32.mrf.mxu0
        %1495 = vdwg.mxu0
        %v1496 = vld [vmem:[#allocation5] sm:$0xff]
        %v1497 = vpack.c.bf16 %v1493, %v1493
        %s1498 = scalar_lea.vmem %s7, 8
        %v1499 = vld [vmem:[%s1498] sm:$0xf]
        %v1501 = vsel %vm1150, %v1497, 0
        %v1504 = vsel %vm1226, %v1499, 0
        %1506 = vmatpush.bf16.msra.mxu0 0
        %1507 = vmatpush.bf16.msra.mxu0 0
        %1508 = vmatpush.bf16.msra.mxu0 0
        %1509 = vmatpush.bf16.msra.mxu0 0
        %1510 = vmatpush.bf16.msra.mxu0 0
        %1511 = vmatpush.bf16.msra.mxu0 0
        %1512 = vmatpush.bf16.msra.mxu0 0
        %1513 = vmatpush.bf16.msra.mxu0 %v1504
        %1514 = vmatmul.bf16.gmra.mxu0 %v1501
        %v1515 = vpop.f32.mrf.mxu0
        %v1516 = vadd.f32 0.0, %v1515
        %v1517 = vpop.f32.mrf.mxu0
        %1518 = vdwg.mxu0
        %v1519 = vadd.f32 %v1496, %v1516
        %1520 = vst.msk [vmem:[#allocation5] sm:$0xff] %vm1104, %v1519
        %s1521 = scalar_lea.vmem %s4, 48
        %v1522 = vld [vmem:[%s1521] sm:$0xf]
        %v1523 = vld [vmem:[%s1521 + $0x4] sm:$0xf]
        %v1524 = vld [vmem:[%s1521 + $0x8] sm:$0xf]
        %v1525 = vld [vmem:[%s1521 + $0xc] sm:$0xf]
        %s1526 = scalar_lea.vmem %s8, 3
        %v1527 = vld [vmem:[%s1526] sm:$0x1]
        %v1529 = vperm.slane %v1527, 0
        %v1535 = vunpack.c.l.b16 %v1522
        %v1536 = vunpack.c.l.b16 %v1523
        %v1537 = vunpack.c.l.b16 %v1524
        %v1538 = vunpack.c.l.b16 %v1525
        %v1539 = vpack.c.b16 %v1536, %v1535
        %v1540 = vpack.c.b16 %v1538, %v1537
        %1543 = vmatpush.bf16.msra.mxu0 0
        %1544 = vmatpush.bf16.msra.mxu0 0
        %1545 = vmatpush.bf16.msra.mxu0 0
        %1546 = vmatpush.bf16.msra.mxu0 0
        %1547 = vmatpush.bf16.msra.mxu0 0
        %1548 = vmatpush.bf16.msra.mxu0 0
        %1549 = vmatpush.bf16.msra.mxu0 %v1540
        %1550 = vmatpush.bf16.msra.mxu0 %v1539
        %1551 = vmatmul.bf16.gmra.mxu0 %v1127
        %v1552 = vpop.f32.mrf.mxu0
        %v1553 = vadd.f32 %v1529, %v1552
        %v1554 = vpop.f32.mrf.mxu0
        %1555 = vdwg.mxu0
        %v1556 = vpack.c.bf16 %v1553, %v1553
        %s1557 = scalar_lea.vmem [#allocation3], 24
        %v1558 = vld [vmem:[%s1557] sm:$0xf]
        %v1559 = vld [vmem:[%s1557 + $0x4] sm:$0xf]
        %v1562 = vunpack.c.l.b16 %v1558
        %v1563 = vunpack.c.l.b16 %v1559
        %v1564 = vpack.c.b16 %v1563, %v1562
        %v1566 = vsel %vm1150, %v1556, 0
        %v1569 = vsel %vm1150, %v1564, 0
        %1571 = vmatpush.bf16.xpose.msra.mxu0 0
        %1572 = vmatpush.bf16.xpose.msra.mxu0 0
        %1573 = vmatpush.bf16.xpose.msra.mxu0 0
        %1574 = vmatpush.bf16.xpose.msra.mxu0 0
        %1575 = vmatpush.bf16.xpose.msra.mxu0 0
        %1576 = vmatpush.bf16.xpose.msra.mxu0 0
        %1577 = vmatpush.bf16.xpose.msra.mxu0 0
        %1578 = vmatpush.bf16.xpose.msra.mxu0 %v1569
        %1579 = vmatmul.bf16.gmra.mxu0 %v1566
        %v1580 = vpop.f32.mrf.mxu0
        %v1581 = vadd.f32 %v1103, %v1580
        %v1582 = vpop.f32.mrf.mxu0
        %1583 = vdwg.mxu0
        %v1584 = vsel %vm1170, %v1581, -inf
        %1585 = vmax.xlane.f32.xlu0 %v1584
        %v1586 = vpop.xlane.xlu0 %1585
        %v1587 = vsub.f32 %v1581, %v1586
        %v1588 = vmul.f32 %v1587, 1.442695
        %v1589 = vpow.pop %v1588
        %v1590 = vsel %vm1170, %v1589, 0.0
        %1591 = vadd.xlane.f32.xlu0 %v1590
        %v1592 = vpop.xlane.xlu0 %1591
        %v1593 = vrcp.pop %v1592
        %v1594 = vmul.f32 %v1592, %v1593
        %v1595 = vsub.f32 1.0, %v1594
        %v1596 = vmul.f32 %v1593, %v1595
        %v1597 = vadd.f32 %v1593, %v1596
        %vm1598 = vweird.f32 %v1592
        %vm1599 = vweird.f32 %v1593
        %vm1600 = vmor %vm1598, %vm1599
        %v1601 = vsel %vm1600, %v1593, %v1597
        %v1602 = vand.u32 2147483647, %v1592
        %vm1603 = vcmp.eq.f32.partialorder %v1602, 8.507059e+37
        %v1604 = vand.u32 %v1592, 2147483648
        %v1605 = vor.u32 1.1754944e-38, %v1604
        %v1606 = vsel %vm1603, %v1605, %v1601
        %v1607 = vmul.f32 %v1589, %v1606
        %v1608 = vpack.c.bf16 %v1607, %v1607
        %s1609 = scalar_lea.vmem [#allocation4], 24
        %v1610 = vld [vmem:[%s1609] sm:$0xf]
        %v1611 = vld [vmem:[%s1609 + $0x4] sm:$0xf]
        %v1614 = vunpack.c.l.b16 %v1610
        %v1615 = vunpack.c.l.b16 %v1611
        %v1616 = vpack.c.b16 %v1615, %v1614
        %v1619 = vsel %vm1170, %v1608, 0
        %1621 = vmatpush.bf16.msra.mxu0 0
        %1622 = vmatpush.bf16.msra.mxu0 0
        %1623 = vmatpush.bf16.msra.mxu0 0
        %1624 = vmatpush.bf16.msra.mxu0 0
        %1625 = vmatpush.bf16.msra.mxu0 0
        %1626 = vmatpush.bf16.msra.mxu0 0
        %1627 = vmatpush.bf16.msra.mxu0 0
        %1628 = vmatpush.bf16.msra.mxu0 %v1616
        %1629 = vmatmul.bf16.gmra.mxu0 %v1619
        %v1630 = vpop.f32.mrf.mxu0
        %v1631 = vadd.f32 0.0, %v1630
        %v1632 = vpop.f32.mrf.mxu0
        %1633 = vdwg.mxu0
        %v1634 = vld [vmem:[#allocation5] sm:$0xff]
        %v1635 = vpack.c.bf16 %v1631, %v1631
        %s1636 = scalar_lea.vmem %s7, 12
        %v1637 = vld [vmem:[%s1636] sm:$0xf]
        %v1639 = vsel %vm1150, %v1635, 0
        %v1642 = vsel %vm1226, %v1637, 0
        %1644 = vmatpush.bf16.msra.mxu0 0
        %1645 = vmatpush.bf16.msra.mxu0 0
        %1646 = vmatpush.bf16.msra.mxu0 0
        %1647 = vmatpush.bf16.msra.mxu0 0
        %1648 = vmatpush.bf16.msra.mxu0 0
        %1649 = vmatpush.bf16.msra.mxu0 0
        %1650 = vmatpush.bf16.msra.mxu0 0
        %1651 = vmatpush.bf16.msra.mxu0 %v1642
        %1652 = vmatmul.bf16.gmra.mxu0 %v1639
        %v1653 = vpop.f32.mrf.mxu0
        %v1654 = vadd.f32 0.0, %v1653
        %v1655 = vpop.f32.mrf.mxu0
        %1656 = vdwg.mxu0
        %v1657 = vadd.f32 %v1634, %v1654
        %1658 = vst.msk [vmem:[#allocation5] sm:$0xff] %vm1104, %v1657
        %v1659 = vld [vmem:[#allocation5] sm:$0xff]
        %v1660 = vadd.f32 %v1098, %v1659
        %v1661 = vld [vmem:[%s11] sm:$0x1]
        %v1663 = vperm.slane %v1661, 0
        %v1665 = vadd.f32 %v1660, %v1663
        %v1666 = vld [vmem:[%s12] sm:$0x1]
        %v1667 = vld [vmem:[%s13] sm:$0x1]
        %v1668 = vsel %vm1104, %v1665, 0.0
        %1669 = vadd.xlane.f32.xlu0 %v1668
        %v1670 = vpop.xlane.xlu0 %1669
        %v1671 = vrcp.pop 32.0
        %v1672 = vmul.f32 32.0, %v1671
        %v1673 = vsub.f32 1.0, %v1672
        %v1674 = vmul.f32 %v1671, %v1673
        %v1675 = vadd.f32 %v1671, %v1674
        %vm1676 = vweird.f32 %v1671
        %v1677 = vsel %vm1676, %v1671, %v1675
        %v1678 = vmul.f32 %v1670, %v1677
        %v1679 = vsub.f32 %v1665, %v1678
        %v1680 = vmul.f32 %v1679, %v1679
        %v1681 = vsel %vm1104, %v1680, 0.0
        %1682 = vadd.xlane.f32.xlu0 %v1681
        %v1683 = vpop.xlane.xlu0 %1682
        %v1684 = vmul.f32 %v1683, 0.032258064
        %v1685 = vrsqrt.pop %v1684
        %v1686 = vmul.f32 %v1685, %v1684
        %v1687 = vmul.f32 %v1686, %v1685
        %v1688 = vmul.f32 0.5, %v1687
        %v1689 = vsub.f32 1.5, %v1688
        %v1690 = vmul.f32 %v1685, %v1689
        %v1691 = vmul.f32 %v1684, %v1690
        %vm1692 = vcmp.eq.f32.partialorder %v1684, inf
        %v1693 = vsel %vm1692, %v1684, %v1691
        %vm1694 = vcmp.eq.f32.partialorder %v1684, 0.0
        %v1695 = vand.u32 %v1684, 2147483648
        %v1696 = vsel %vm1694, %v1695, %v1693
        %v1698 = vperm.slane %v1666, 0
        %v1700 = vmul.f32 %v1698, %v1679
        %v1701 = vadd.f32 %v1696, 1e-06
        %v1702 = vrsqrt.pop %v1701
        %v1703 = vmul.f32 %v1702, %v1701
        %v1704 = vmul.f32 %v1703, %v1702
        %v1705 = vmul.f32 0.5, %v1704
        %v1706 = vsub.f32 1.5, %v1705
        %v1707 = vmul.f32 %v1702, %v1706
        %vm1708 = vweird.f32 %v1701
        %vm1709 = vweird.f32 %v1702
        %vm1710 = vmor %vm1708, %vm1709
        %v1711 = vsel %vm1710, %v1702, %v1707
        %v1712 = vmul.f32 %v1700, %v1711
        %v1714 = vperm.slane %v1667, 0
        %v1716 = vadd.f32 %v1712, %v1714
        %v1717 = vpack.c.bf16 %v1716, %v1716
        %v1718 = vld [vmem:[%s14] sm:$0xf]
        %v1719 = vld [vmem:[%s14 + $0x4] sm:$0xf]
        %v1720 = vld [vmem:[%s14 + $0x8] sm:$0xf]
        %v1721 = vld [vmem:[%s14 + $0xc] sm:$0xf]
        %v1722 = vld [vmem:[%s15] sm:$0x1]
        %v1724 = vperm.slane %v1722, 0
        %v1730 = vunpack.c.l.b16 %v1718
        %v1731 = vunpack.c.l.b16 %v1719
        %v1732 = vunpack.c.l.b16 %v1720
        %v1733 = vunpack.c.l.b16 %v1721
        %v1734 = vpack.c.b16 %v1731, %v1730
        %v1735 = vpack.c.b16 %v1733, %v1732
        %v1739 = vsel %vm1104, %v1717, 0
        %1741 = vmatpush.bf16.msra.mxu0 0
        %1742 = vmatpush.bf16.msra.mxu0 0
        %1743 = vmatpush.bf16.msra.mxu0 0
        %1744 = vmatpush.bf16.msra.mxu0 0
        %1745 = vmatpush.bf16.msra.mxu0 0
        %1746 = vmatpush.bf16.msra.mxu0 0
        %1747 = vmatpush.bf16.msra.mxu0 %v1735
        %1748 = vmatpush.bf16.msra.mxu0 %v1734
        %1749 = vmatmul.bf16.gmra.mxu0 %v1739
        %v1750 = vpop.f32.mrf.mxu0
        %v1751 = vadd.f32 %v1724, %v1750
        %v1752 = vpop.f32.mrf.mxu0
        %1753 = vdwg.mxu0
        %v1754 = vpack.c.bf16 %v1751, %v1751
        %v1755 = vld [vmem:[%s16] sm:$0xf]
        %v1756 = vld [vmem:[%s16 + $0x4] sm:$0xf]
        %v1757 = vld [vmem:[%s16 + $0x8] sm:$0xf]
        %v1758 = vld [vmem:[%s16 + $0xc] sm:$0xf]
        %v1759 = vld [vmem:[%s16 + $0x10] sm:$0xf]
        %v1760 = vld [vmem:[%s16 + $0x14] sm:$0xf]
        %v1761 = vld [vmem:[%s16 + $0x18] sm:$0xf]
        %v1762 = vld [vmem:[%s16 + $0x1c] sm:$0xf]
        %v1763 = vld [vmem:[%s17] sm:$0x1]
        %v1765 = vperm.slane %v1763, 0
        %v1775 = vunpack.c.l.b16 %v1755
        %v1776 = vunpack.c.l.b16 %v1756
        %v1777 = vunpack.c.l.b16 %v1757
        %v1778 = vunpack.c.l.b16 %v1758
        %v1779 = vunpack.c.l.b16 %v1759
        %v1780 = vunpack.c.l.b16 %v1760
        %v1781 = vunpack.c.l.b16 %v1761
        %v1782 = vunpack.c.l.b16 %v1762
        %v1783 = vpack.c.b16 %v1776, %v1775
        %v1784 = vpack.c.b16 %v1778, %v1777
        %v1785 = vpack.c.b16 %v1780, %v1779
        %v1786 = vpack.c.b16 %v1782, %v1781
        %vm1791 = vcmask 523264
        %v1793 = vsel %vm1791, %v1754, 0
        %1795 = vmatpush.bf16.msra.mxu0 0
        %1796 = vmatpush.bf16.msra.mxu0 0
        %1797 = vmatpush.bf16.msra.mxu0 0
        %1798 = vmatpush.bf16.msra.mxu0 0
        %1799 = vmatpush.bf16.msra.mxu0 %v1786
        %1800 = vmatpush.bf16.msra.mxu0 %v1785
        %1801 = vmatpush.bf16.msra.mxu0 %v1784
        %1802 = vmatpush.bf16.msra.mxu0 %v1783
        %1803 = vmatmul.bf16.gmra.mxu0 %v1793
        %v1804 = vpop.f32.mrf.mxu0
        %v1805 = vadd.f32 %v1765, %v1804
        %v1806 = vpop.f32.mrf.mxu0
        %1807 = vdwg.mxu0
        %v1808 = vadd.f32 %v1665, %v1805
        %v1809 = vld [vmem:[%s18] sm:$0x1]
        %v1810 = vld [vmem:[%s19] sm:$0x1]
        %v1811 = vsel %vm1104, %v1808, 0.0
        %1812 = vadd.xlane.f32.xlu0 %v1811
        %v1813 = vpop.xlane.xlu0 %1812
        %v1814 = vmul.f32 %v1813, %v1677
        %v1815 = vsub.f32 %v1808, %v1814
        %v1816 = vmul.f32 %v1815, %v1815
        %v1817 = vsel %vm1104, %v1816, 0.0
        %1818 = vadd.xlane.f32.xlu0 %v1817
        %v1819 = vpop.xlane.xlu0 %1818
        %v1820 = vmul.f32 %v1819, 0.032258064
        %v1821 = vrsqrt.pop %v1820
        %v1822 = vmul.f32 %v1821, %v1820
        %v1823 = vmul.f32 %v1822, %v1821
        %v1824 = vmul.f32 0.5, %v1823
        %v1825 = vsub.f32 1.5, %v1824
        %v1826 = vmul.f32 %v1821, %v1825
        %v1827 = vmul.f32 %v1820, %v1826
        %vm1828 = vcmp.eq.f32.partialorder %v1820, inf
        %v1829 = vsel %vm1828, %v1820, %v1827
        %vm1830 = vcmp.eq.f32.partialorder %v1820, 0.0
        %v1831 = vand.u32 %v1820, 2147483648
        %v1832 = vsel %vm1830, %v1831, %v1829
        %v1834 = vperm.slane %v1809, 0
        %v1836 = vmul.f32 %v1834, %v1815
        %v1837 = vadd.f32 %v1832, 1e-06
        %v1838 = vrsqrt.pop %v1837
        %v1839 = vmul.f32 %v1838, %v1837
        %v1840 = vmul.f32 %v1839, %v1838
        %v1841 = vmul.f32 0.5, %v1840
        %v1842 = vsub.f32 1.5, %v1841
        %v1843 = vmul.f32 %v1838, %v1842
        %vm1844 = vweird.f32 %v1837
        %vm1845 = vweird.f32 %v1838
        %vm1846 = vmor %vm1844, %vm1845
        %v1847 = vsel %vm1846, %v1838, %v1843
        %v1848 = vmul.f32 %v1836, %v1847
        %v1850 = vperm.slane %v1810, 0
        %v1852 = vadd.f32 %v1848, %v1850
        %1853 = vst.msk [vmem:[%s649] sm:$0xff] %vm1104, %v1852
        %s1854 = sand.u32 %s486, 1
        %s1855 = scalar_lea.sflag [#allocation7], %s1854
        %s1856 = sand.u32 %s486, 1
        %s1857 = smul.addr %s1856, 8
        %s1858 = scalar_lea.vmem [#allocation6], %s1857
        // Predicated region
        $region105: #{encoder_forward.3} parent=99 // pred_check
          %p1859 = pneg %p496
        $region106: #{encoder_forward.3} parent=99 // pred_check_branch
          %1861 = sbr.rel (%p1859) target = $region108
        $region107: #{encoder_forward.3} parent=99 // pred_region
          %1863 = vsyncadd %s1855, 0
          %s1864 = smul.addr %s38, 2
          %s1865 = sadd.s32 %s39, %s1864
          %s1866 = smul.addr %s1865, 8
          %s1867 = scalar_lea.hbm %s20, %s1866
          %s1869 = sshll.u32 %s1858, 4
          %s1870 = int_to_ptr.vmem [resolvable:$true] %s1869
          %s1871 = sshll.u32 %s1867, 4
          %s1872 = int_to_ptr.hbm [resolvable:$true] %s1871
          %1874 = dma.vmem_to_hbm [thread:$0]  %s1870, 128, %s1872, %s1855
        $region108: #{encoder_forward.3} parent=99 // pred_fallthru
          _
      $region100: #{encoder_forward.3} parent=5 // pred_fallthru
        _
      %p1875 = scmp.le.s32.totalorder 2, %s29
      // Predicated region
      $region109: #{encoder_forward.3} parent=5 // pred_check
        %p1876 = pneg %p1875
      $region110: #{encoder_forward.3} parent=5 // pred_check_branch
        %1878 = sbr.rel (%p1876) target = $region112
      $region111: #{encoder_forward.3} parent=5 // pred_region
        %s1879 = ssub.s32 %s29, 2
        // Predicated region
        $region113: #{encoder_forward.3} parent=111 // pred_check
          %p1880 = pneg %p502
        $region114: #{encoder_forward.3} parent=111 // pred_check_branch
          %1882 = sbr.rel (%p1880) target = $region116
        $region115: #{encoder_forward.3} parent=111 // pred_region
          %s1883 = sand.u32 %s487, 1
          %s1884 = scalar_lea.sflag [#allocation7], %s1883
          %s1885 = sand.u32 %s487, 1
          %s1886 = smul.addr %s1885, 8
          %s1887 = scalar_lea.vmem [#allocation6], %s1886
          %1889 = dma.done %s1884, 128
        $region116: #{encoder_forward.3} parent=111 // pred_fallthru
          _
      $region112: #{encoder_forward.3} parent=5 // pred_fallthru
        _
    $region6: #{encoder_forward.3} parent=1 // loop_footer
      %s33 = sadd.s32 1, %s29
    $region7: #{encoder_forward.3} parent=1 // loop_footer_branch
      %28 = sbr.rel target = $region3
    $region8: #{encoder_forward.3} parent=1 // loop_exit
      _
    %1890 = vsyncpa [#allocation7], 1
    %s1891 = scalar_lea.sflag [#allocation7], 1
    %1892 = vsyncpa %s1891, 1

// kernel: encoder_forward.2
$region0: #{encoder_forward.2}
  #allocation0 [shape = 'u32[]', space=smem, size = 0x4, offset = 0x4, fixed_abs, tag = 'smem constant byte address 0x4 - core index']
  #allocation1 [shape = 'u32[72,128]{1,0:T(1,128)}', space=vmem, size = 0x9000, scoped, tag = 'internal scratch']
  #allocation2 [shape = 'bf16[16,32]{1,0:T(8,128)(2,1)}', space=vmem, size = 0x1000, scoped, tag = 'scratch operand']
  #allocation3 [shape = 'bf16[4,16,8]{2,1,0:T(8,128)(2,1)}', space=vmem, size = 0x4000, scoped, tag = 'scratch operand']
  #allocation4 [shape = 'bf16[4,16,8]{2,1,0:T(8,128)(2,1)}', space=vmem, size = 0x4000, scoped, tag = 'scratch operand']
  #allocation5 [shape = 'f32[8,32]{1,0:T(8,128)}', space=vmem, size = 0x1000, scoped, tag = 'scratch operand']
  %s0 = inlined_call_operand.vmem [shape: f32[2,16,32], index: 0, kind: input, shape index: {}]
  %s1 = inlined_call_operand.vmem [shape: bf16[16,16], index: 1, kind: input, shape index: {}]
  %s2 = inlined_call_operand.vmem [shape: f32[1,32], index: 2, kind: input, shape index: {}]
  %s3 = inlined_call_operand.vmem [shape: f32[1,32], index: 3, kind: input, shape index: {}]
  %s4 = inlined_call_operand.vmem [shape: bf16[4,32,8], index: 4, kind: input, shape index: {}]
  %s5 = inlined_call_operand.vmem [shape: bf16[4,32,8], index: 5, kind: input, shape index: {}]
  %s6 = inlined_call_operand.vmem [shape: bf16[4,32,8], index: 6, kind: input, shape index: {}]
  %s7 = inlined_call_operand.vmem [shape: bf16[4,8,32], index: 7, kind: input, shape index: {}]
  %s8 = inlined_call_operand.vmem [shape: f32[4,1,8], index: 8, kind: input, shape index: {}]
  %s9 = inlined_call_operand.vmem [shape: f32[4,1,8], index: 9, kind: input, shape index: {}]
  %s10 = inlined_call_operand.vmem [shape: f32[4,1,8], index: 10, kind: input, shape index: {}]
  %s11 = inlined_call_operand.vmem [shape: f32[1,32], index: 11, kind: input, shape index: {}]
  %s12 = inlined_call_operand.vmem [shape: f32[1,32], index: 12, kind: input, shape index: {}]
  %s13 = inlined_call_operand.vmem [shape: f32[1,32], index: 13, kind: input, shape index: {}]
  %s14 = inlined_call_operand.vmem [shape: bf16[32,64], index: 14, kind: input, shape index: {}]
  %s15 = inlined_call_operand.vmem [shape: f32[1,64], index: 15, kind: input, shape index: {}]
  %s16 = inlined_call_operand.vmem [shape: bf16[64,32], index: 16, kind: input, shape index: {}]
  %s17 = inlined_call_operand.vmem [shape: f32[1,32], index: 17, kind: input, shape index: {}]
  %s18 = inlined_call_operand.vmem [shape: f32[1,32], index: 18, kind: input, shape index: {}]
  %s19 = inlined_call_operand.vmem [shape: f32[1,32], index: 19, kind: input, shape index: {}]
  %s20 = inlined_call_operand.vmem [shape: bf16[2,16,32], index: 20, kind: output, shape index: {}]
  %s21 = sld [smem:[#allocation0]]
  $region117: #{encoder_forward.2} parent=0
    _
  %s23 = ssub.s32 1, %s21
  %s24 = scalar_select 0, %s23, %s21
  loop: start=0, step=1, limit=6
  $region2: #{encoder_forward.2} parent=0 // loop_pre_header
    _
  $region3: #{encoder_forward.2} parent=0 // loop_header
    %s26 = sphi 0, %s30
    %p27 = scmp.ge.s32.totalorder %s26, 6
    %s33 = sphi 0, %s45
    %s34 = sphi 0, %s41
    %s35 = sphi 0, %s33
    %s36 = sphi 0, %s34
    %s37 = sphi 0, %s35
    %s38 = sphi 0, %s36
    %s48 = sphi 0, %s50
    %s51 = sphi 0, %s48
    %s52 = sphi 0, %s51
    %s68 = sphi 0, %s52
    %s74 = sphi 0, %s76
    %s77 = sphi 0, %s74
    %s78 = sphi 0, %s77
    %s94 = sphi 0, %s78
    %s98 = sphi 0, %s98
    %s100 = sphi 0, %s98
    %s101 = sphi 0, %s100
    %s115 = sphi 0, %s101
    %s119 = sphi 0, %s119
    %s121 = sphi 0, %s119
    %s122 = sphi 0, %s121
    %s136 = sphi 0, %s122
    %s140 = sphi 0, %s140
    %s142 = sphi 0, %s140
    %s143 = sphi 0, %s142
    %s157 = sphi 0, %s143
    %s161 = sphi 0, %s161
    %s163 = sphi 0, %s161
    %s164 = sphi 0, %s163
    %s178 = sphi 0, %s164
    %s182 = sphi 0, %s182
    %s184 = sphi 0, %s182
    %s185 = sphi 0, %s184
    %s199 = sphi 0, %s185
    %s203 = sphi 0, %s203
    %s205 = sphi 0, %s203
    %s206 = sphi 0, %s205
    %s220 = sphi 0, %s206
    %s224 = sphi 0, %s224
    %s226 = sphi 0, %s224
    %s227 = sphi 0, %s226
    %s241 = sphi 0, %s227
    %s245 = sphi 0, %s245
    %s247 = sphi 0, %s245
    %s248 = sphi 0, %s247
    %s262 = sphi 0, %s248
    %s266 = sphi 0, %s266
    %s268 = sphi 0, %s266
    %s269 = sphi 0, %s268
    %s283 = sphi 0, %s269
    %s287 = sphi 0, %s287
    %s289 = sphi 0, %s287
    %s290 = sphi 0, %s289
    %s304 = sphi 0, %s290
    %s308 = sphi 0, %s308
    %s310 = sphi 0, %s308
    %s311 = sphi 0, %s310
    %s325 = sphi 0, %s311
    %s329 = sphi 0, %s329
    %s331 = sphi 0, %s329
    %s332 = sphi 0, %s331
    %s346 = sphi 0, %s332
    %s350 = sphi 0, %s350
    %s352 = sphi 0, %s350
    %s353 = sphi 0, %s352
    %s367 = sphi 0, %s353
    %s371 = sphi 0, %s371
    %s373 = sphi 0, %s371
    %s374 = sphi 0, %s373
    %s388 = sphi 0, %s374
    %s392 = sphi 0, %s392
    %s394 = sphi 0, %s392
    %s395 = sphi 0, %s394
    %s409 = sphi 0, %s395
    %s413 = sphi 0, %s413
    %s415 = sphi 0, %s413
    %s416 = sphi 0, %s415
    %s430 = sphi 0, %s416
    %s434 = sphi 0, %s434
    %s436 = sphi 0, %s434
    %s437 = sphi 0, %s436
    %s451 = sphi 0, %s437
    %s455 = sphi 0, %s455
    %s457 = sphi 0, %s455
    %s458 = sphi 0, %s457
    %s472 = sphi 0, %s458
    %s480 = sphi 0, %s482
    %s483 = sphi 0, %s480
    %s484 = sphi 0, %s483
    %s500 = sphi 0, %s484
  $region4: #{encoder_forward.2} parent=0 // loop_header_branch
    %29 = sbr.rel (%p27) target = $region8
  $region5: #{encoder_forward.2} parent=0 // loop_body
    %s31 = ssub.s32 %s26, 1
    %s32 = ssub.s32 %s26, 2
    %s39 = sadd.s32 1, %s34
    %p40 = scmp.ge.s32.totalorder %s39, 2
    %s41 = scalar_select %p40, 0, %s39
    %s42 = sadd.s32 1, %s33
    %s43 = scalar_select %p40, %s42, %s33
    %p44 = scmp.ge.s32.totalorder %s43, 2
    %s45 = scalar_select %p44, 0, %s43
    %s46 = ssub.s32 %s33, %s45
    %p47 = scmp.eq.s32.totalorder %s46, 0
    %s49 = sadd.s32 %s48, 1
    %s50 = scalar_select %p47, %s48, %s49
    %p53 = pneg %p47
    %p54 = scmp.eq.s32.totalorder %s26, 3
    %p55 = por %p53, %p54
    %p56 = scmp.ne.s32.totalorder %s48, %s51
    %p57 = scmp.eq.s32.totalorder %s26, 0
    %p58 = por %p56, %p57
    %p59 = scmp.ne.s32.totalorder %s48, %s51
    %p60 = scmp.eq.s32.totalorder %s31, 3
    %p61 = por %p59, %p60
    %p62 = scmp.ne.s32.totalorder %s51, %s52
    %p63 = scmp.eq.s32.totalorder %s31, 0
    %p64 = por %p62, %p63
    %p65 = scmp.ne.s32.totalorder %s51, %s52
    %p66 = scmp.eq.s32.totalorder %s32, 3
    %p67 = por %p65, %p66
    %p69 = scmp.ne.s32.totalorder %s52, %s68
    %p70 = scmp.eq.s32.totalorder %s32, 0
    %p71 = por %p69, %p70
    %s72 = ssub.s32 %s34, %s41
    %p73 = scmp.eq.s32.totalorder %s72, 0
    %s75 = sadd.s32 %s74, 1
    %s76 = scalar_select %p73, %s74, %s75
    %p79 = pneg %p73
    %p80 = scmp.eq.s32.totalorder %s26, 3
    %p81 = por %p79, %p80
    %p82 = scmp.ne.s32.totalorder %s74, %s77
    %p83 = scmp.eq.s32.totalorder %s26, 0
    %p84 = por %p82, %p83
    %p85 = scmp.ne.s32.totalorder %s74, %s77
    %p86 = scmp.eq.s32.totalorder %s31, 3
    %p87 = por %p85, %p86
    %p88 = scmp.ne.s32.totalorder %s77, %s78
    %p89 = scmp.eq.s32.totalorder %s31, 0
    %p90 = por %p88, %p89
    %p91 = scmp.ne.s32.totalorder %s77, %s78
    %p92 = scmp.eq.s32.totalorder %s32, 3
    %p93 = por %p91, %p92
    %p95 = scmp.ne.s32.totalorder %s78, %s94
    %p96 = scmp.eq.s32.totalorder %s32, 0
    %p97 = por %p95, %p96
    %s99 = sadd.s32 %s98, 1
    %p102 = scmp.eq.s32.totalorder %s26, 3
    %p103 = scmp.ne.s32.totalorder %s98, %s100
    %p104 = scmp.eq.s32.totalorder %s26, 0
    %p105 = por %p103, %p104
    %p106 = scmp.ne.s32.totalorder %s98, %s100
    %p107 = scmp.eq.s32.totalorder %s31, 3
    %p108 = por %p106, %p107
    %p109 = scmp.ne.s32.totalorder %s100, %s101
    %p110 = scmp.eq.s32.totalorder %s31, 0
    %p111 = por %p109, %p110
    %p112 = scmp.ne.s32.totalorder %s100, %s101
    %p113 = scmp.eq.s32.totalorder %s32, 3
    %p114 = por %p112, %p113
    %p116 = scmp.ne.s32.totalorder %s101, %s115
    %p117 = scmp.eq.s32.totalorder %s32, 0
    %p118 = por %p116, %p117
    %s120 = sadd.s32 %s119, 1
    %p123 = scmp.eq.s32.totalorder %s26, 3
    %p124 = scmp.ne.s32.totalorder %s119, %s121
    %p125 = scmp.eq.s32.totalorder %s26, 0
    %p126 = por %p124, %p125
    %p127 = scmp.ne.s32.totalorder %s119, %s121
    %p128 = scmp.eq.s32.totalorder %s31, 3
    %p129 = por %p127, %p128
    %p130 = scmp.ne.s32.totalorder %s121, %s122
    %p131 = scmp.eq.s32.totalorder %s31, 0
    %p132 = por %p130, %p131
    %p133 = scmp.ne.s32.totalorder %s121, %s122
    %p134 = scmp.eq.s32.totalorder %s32, 3
    %p135 = por %p133, %p134
    %p137 = scmp.ne.s32.totalorder %s122, %s136
    %p138 = scmp.eq.s32.totalorder %s32, 0
    %p139 = por %p137, %p138
    %s141 = sadd.s32 %s140, 1
    %p144 = scmp.eq.s32.totalorder %s26, 3
    %p145 = scmp.ne.s32.totalorder %s140, %s142
    %p146 = scmp.eq.s32.totalorder %s26, 0
    %p147 = por %p145, %p146
    %p148 = scmp.ne.s32.totalorder %s140, %s142
    %p149 = scmp.eq.s32.totalorder %s31, 3
    %p150 = por %p148, %p149
    %p151 = scmp.ne.s32.totalorder %s142, %s143
    %p152 = scmp.eq.s32.totalorder %s31, 0
    %p153 = por %p151, %p152
    %p154 = scmp.ne.s32.totalorder %s142, %s143
    %p155 = scmp.eq.s32.totalorder %s32, 3
    %p156 = por %p154, %p155
    %p158 = scmp.ne.s32.totalorder %s143, %s157
    %p159 = scmp.eq.s32.totalorder %s32, 0
    %p160 = por %p158, %p159
    %s162 = sadd.s32 %s161, 1
    %p165 = scmp.eq.s32.totalorder %s26, 3
    %p166 = scmp.ne.s32.totalorder %s161, %s163
    %p167 = scmp.eq.s32.totalorder %s26, 0
    %p168 = por %p166, %p167
    %p169 = scmp.ne.s32.totalorder %s161, %s163
    %p170 = scmp.eq.s32.totalorder %s31, 3
    %p171 = por %p169, %p170
    %p172 = scmp.ne.s32.totalorder %s163, %s164
    %p173 = scmp.eq.s32.totalorder %s31, 0
    %p174 = por %p172, %p173
    %p175 = scmp.ne.s32.totalorder %s163, %s164
    %p176 = scmp.eq.s32.totalorder %s32, 3
    %p177 = por %p175, %p176
    %p179 = scmp.ne.s32.totalorder %s164, %s178
    %p180 = scmp.eq.s32.totalorder %s32, 0
    %p181 = por %p179, %p180
    %s183 = sadd.s32 %s182, 1
    %p186 = scmp.eq.s32.totalorder %s26, 3
    %p187 = scmp.ne.s32.totalorder %s182, %s184
    %p188 = scmp.eq.s32.totalorder %s26, 0
    %p189 = por %p187, %p188
    %p190 = scmp.ne.s32.totalorder %s182, %s184
    %p191 = scmp.eq.s32.totalorder %s31, 3
    %p192 = por %p190, %p191
    %p193 = scmp.ne.s32.totalorder %s184, %s185
    %p194 = scmp.eq.s32.totalorder %s31, 0
    %p195 = por %p193, %p194
    %p196 = scmp.ne.s32.totalorder %s184, %s185
    %p197 = scmp.eq.s32.totalorder %s32, 3
    %p198 = por %p196, %p197
    %p200 = scmp.ne.s32.totalorder %s185, %s199
    %p201 = scmp.eq.s32.totalorder %s32, 0
    %p202 = por %p200, %p201
    %s204 = sadd.s32 %s203, 1
    %p207 = scmp.eq.s32.totalorder %s26, 3
    %p208 = scmp.ne.s32.totalorder %s203, %s205
    %p209 = scmp.eq.s32.totalorder %s26, 0
    %p210 = por %p208, %p209
    %p211 = scmp.ne.s32.totalorder %s203, %s205
    %p212 = scmp.eq.s32.totalorder %s31, 3
    %p213 = por %p211, %p212
    %p214 = scmp.ne.s32.totalorder %s205, %s206
    %p215 = scmp.eq.s32.totalorder %s31, 0
    %p216 = por %p214, %p215
    %p217 = scmp.ne.s32.totalorder %s205, %s206
    %p218 = scmp.eq.s32.totalorder %s32, 3
    %p219 = por %p217, %p218
    %p221 = scmp.ne.s32.totalorder %s206, %s220
    %p222 = scmp.eq.s32.totalorder %s32, 0
    %p223 = por %p221, %p222
    %s225 = sadd.s32 %s224, 1
    %p228 = scmp.eq.s32.totalorder %s26, 3
    %p229 = scmp.ne.s32.totalorder %s224, %s226
    %p230 = scmp.eq.s32.totalorder %s26, 0
    %p231 = por %p229, %p230
    %p232 = scmp.ne.s32.totalorder %s224, %s226
    %p233 = scmp.eq.s32.totalorder %s31, 3
    %p234 = por %p232, %p233
    %p235 = scmp.ne.s32.totalorder %s226, %s227
    %p236 = scmp.eq.s32.totalorder %s31, 0
    %p237 = por %p235, %p236
    %p238 = scmp.ne.s32.totalorder %s226, %s227
    %p239 = scmp.eq.s32.totalorder %s32, 3
    %p240 = por %p238, %p239
    %p242 = scmp.ne.s32.totalorder %s227, %s241
    %p243 = scmp.eq.s32.totalorder %s32, 0
    %p244 = por %p242, %p243
    %s246 = sadd.s32 %s245, 1
    %p249 = scmp.eq.s32.totalorder %s26, 3
    %p250 = scmp.ne.s32.totalorder %s245, %s247
    %p251 = scmp.eq.s32.totalorder %s26, 0
    %p252 = por %p250, %p251
    %p253 = scmp.ne.s32.totalorder %s245, %s247
    %p254 = scmp.eq.s32.totalorder %s31, 3
    %p255 = por %p253, %p254
    %p256 = scmp.ne.s32.totalorder %s247, %s248
    %p257 = scmp.eq.s32.totalorder %s31, 0
    %p258 = por %p256, %p257
    %p259 = scmp.ne.s32.totalorder %s247, %s248
    %p260 = scmp.eq.s32.totalorder %s32, 3
    %p261 = por %p259, %p260
    %p263 = scmp.ne.s32.totalorder %s248, %s262
    %p264 = scmp.eq.s32.totalorder %s32, 0
    %p265 = por %p263, %p264
    %s267 = sadd.s32 %s266, 1
    %p270 = scmp.eq.s32.totalorder %s26, 3
    %p271 = scmp.ne.s32.totalorder %s266, %s268
    %p272 = scmp.eq.s32.totalorder %s26, 0
    %p273 = por %p271, %p272
    %p274 = scmp.ne.s32.totalorder %s266, %s268
    %p275 = scmp.eq.s32.totalorder %s31, 3
    %p276 = por %p274, %p275
    %p277 = scmp.ne.s32.totalorder %s268, %s269
    %p278 = scmp.eq.s32.totalorder %s31, 0
    %p279 = por %p277, %p278
    %p280 = scmp.ne.s32.totalorder %s268, %s269
    %p281 = scmp.eq.s32.totalorder %s32, 3
    %p282 = por %p280, %p281
    %p284 = scmp.ne.s32.totalorder %s269, %s283
    %p285 = scmp.eq.s32.totalorder %s32, 0
    %p286 = por %p284, %p285
    %s288 = sadd.s32 %s287, 1
    %p291 = scmp.eq.s32.totalorder %s26, 3
    %p292 = scmp.ne.s32.totalorder %s287, %s289
    %p293 = scmp.eq.s32.totalorder %s26, 0
    %p294 = por %p292, %p293
    %p295 = scmp.ne.s32.totalorder %s287, %s289
    %p296 = scmp.eq.s32.totalorder %s31, 3
    %p297 = por %p295, %p296
    %p298 = scmp.ne.s32.totalorder %s289, %s290
    %p299 = scmp.eq.s32.totalorder %s31, 0
    %p300 = por %p298, %p299
    %p301 = scmp.ne.s32.totalorder %s289, %s290
    %p302 = scmp.eq.s32.totalorder %s32, 3
    %p303 = por %p301, %p302
    %p305 = scmp.ne.s32.totalorder %s290, %s304
    %p306 = scmp.eq.s32.totalorder %s32, 0
    %p307 = por %p305, %p306
    %s309 = sadd.s32 %s308, 1
    %p312 = scmp.eq.s32.totalorder %s26, 3
    %p313 = scmp.ne.s32.totalorder %s308, %s310
    %p314 = scmp.eq.s32.totalorder %s26, 0
    %p315 = por %p313, %p314
    %p316 = scmp.ne.s32.totalorder %s308, %s310
    %p317 = scmp.eq.s32.totalorder %s31, 3
    %p318 = por %p316, %p317
    %p319 = scmp.ne.s32.totalorder %s310, %s311
    %p320 = scmp.eq.s32.totalorder %s31, 0
    %p321 = por %p319, %p320
    %p322 = scmp.ne.s32.totalorder %s310, %s311
    %p323 = scmp.eq.s32.totalorder %s32, 3
    %p324 = por %p322, %p323
    %p326 = scmp.ne.s32.totalorder %s311, %s325
    %p327 = scmp.eq.s32.totalorder %s32, 0
    %p328 = por %p326, %p327
    %s330 = sadd.s32 %s329, 1
    %p333 = scmp.eq.s32.totalorder %s26, 3
    %p334 = scmp.ne.s32.totalorder %s329, %s331
    %p335 = scmp.eq.s32.totalorder %s26, 0
    %p336 = por %p334, %p335
    %p337 = scmp.ne.s32.totalorder %s329, %s331
    %p338 = scmp.eq.s32.totalorder %s31, 3
    %p339 = por %p337, %p338
    %p340 = scmp.ne.s32.totalorder %s331, %s332
    %p341 = scmp.eq.s32.totalorder %s31, 0
    %p342 = por %p340, %p341
    %p343 = scmp.ne.s32.totalorder %s331, %s332
    %p344 = scmp.eq.s32.totalorder %s32, 3
    %p345 = por %p343, %p344
    %p347 = scmp.ne.s32.totalorder %s332, %s346
    %p348 = scmp.eq.s32.totalorder %s32, 0
    %p349 = por %p347, %p348
    %s351 = sadd.s32 %s350, 1
    %p354 = scmp.eq.s32.totalorder %s26, 3
    %p355 = scmp.ne.s32.totalorder %s350, %s352
    %p356 = scmp.eq.s32.totalorder %s26, 0
    %p357 = por %p355, %p356
    %p358 = scmp.ne.s32.totalorder %s350, %s352
    %p359 = scmp.eq.s32.totalorder %s31, 3
    %p360 = por %p358, %p359
    %p361 = scmp.ne.s32.totalorder %s352, %s353
    %p362 = scmp.eq.s32.totalorder %s31, 0
    %p363 = por %p361, %p362
    %p364 = scmp.ne.s32.totalorder %s352, %s353
    %p365 = scmp.eq.s32.totalorder %s32, 3
    %p366 = por %p364, %p365
    %p368 = scmp.ne.s32.totalorder %s353, %s367
    %p369 = scmp.eq.s32.totalorder %s32, 0
    %p370 = por %p368, %p369
    %s372 = sadd.s32 %s371, 1
    %p375 = scmp.eq.s32.totalorder %s26, 3
    %p376 = scmp.ne.s32.totalorder %s371, %s373
    %p377 = scmp.eq.s32.totalorder %s26, 0
    %p378 = por %p376, %p377
    %p379 = scmp.ne.s32.totalorder %s371, %s373
    %p380 = scmp.eq.s32.totalorder %s31, 3
    %p381 = por %p379, %p380
    %p382 = scmp.ne.s32.totalorder %s373, %s374
    %p383 = scmp.eq.s32.totalorder %s31, 0
    %p384 = por %p382, %p383
    %p385 = scmp.ne.s32.totalorder %s373, %s374
    %p386 = scmp.eq.s32.totalorder %s32, 3
    %p387 = por %p385, %p386
    %p389 = scmp.ne.s32.totalorder %s374, %s388
    %p390 = scmp.eq.s32.totalorder %s32, 0
    %p391 = por %p389, %p390
    %s393 = sadd.s32 %s392, 1
    %p396 = scmp.eq.s32.totalorder %s26, 3
    %p397 = scmp.ne.s32.totalorder %s392, %s394
    %p398 = scmp.eq.s32.totalorder %s26, 0
    %p399 = por %p397, %p398
    %p400 = scmp.ne.s32.totalorder %s392, %s394
    %p401 = scmp.eq.s32.totalorder %s31, 3
    %p402 = por %p400, %p401
    %p403 = scmp.ne.s32.totalorder %s394, %s395
    %p404 = scmp.eq.s32.totalorder %s31, 0
    %p405 = por %p403, %p404
    %p406 = scmp.ne.s32.totalorder %s394, %s395
    %p407 = scmp.eq.s32.totalorder %s32, 3
    %p408 = por %p406, %p407
    %p410 = scmp.ne.s32.totalorder %s395, %s409
    %p411 = scmp.eq.s32.totalorder %s32, 0
    %p412 = por %p410, %p411
    %s414 = sadd.s32 %s413, 1
    %p417 = scmp.eq.s32.totalorder %s26, 3
    %p418 = scmp.ne.s32.totalorder %s413, %s415
    %p419 = scmp.eq.s32.totalorder %s26, 0
    %p420 = por %p418, %p419
    %p421 = scmp.ne.s32.totalorder %s413, %s415
    %p422 = scmp.eq.s32.totalorder %s31, 3
    %p423 = por %p421, %p422
    %p424 = scmp.ne.s32.totalorder %s415, %s416
    %p425 = scmp.eq.s32.totalorder %s31, 0
    %p426 = por %p424, %p425
    %p427 = scmp.ne.s32.totalorder %s415, %s416
    %p428 = scmp.eq.s32.totalorder %s32, 3
    %p429 = por %p427, %p428
    %p431 = scmp.ne.s32.totalorder %s416, %s430
    %p432 = scmp.eq.s32.totalorder %s32, 0
    %p433 = por %p431, %p432
    %s435 = sadd.s32 %s434, 1
    %p438 = scmp.eq.s32.totalorder %s26, 3
    %p439 = scmp.ne.s32.totalorder %s434, %s436
    %p440 = scmp.eq.s32.totalorder %s26, 0
    %p441 = por %p439, %p440
    %p442 = scmp.ne.s32.totalorder %s434, %s436
    %p443 = scmp.eq.s32.totalorder %s31, 3
    %p444 = por %p442, %p443
    %p445 = scmp.ne.s32.totalorder %s436, %s437
    %p446 = scmp.eq.s32.totalorder %s31, 0
    %p447 = por %p445, %p446
    %p448 = scmp.ne.s32.totalorder %s436, %s437
    %p449 = scmp.eq.s32.totalorder %s32, 3
    %p450 = por %p448, %p449
    %p452 = scmp.ne.s32.totalorder %s437, %s451
    %p453 = scmp.eq.s32.totalorder %s32, 0
    %p454 = por %p452, %p453
    %s456 = sadd.s32 %s455, 1
    %p459 = scmp.eq.s32.totalorder %s26, 3
    %p460 = scmp.ne.s32.totalorder %s455, %s457
    %p461 = scmp.eq.s32.totalorder %s26, 0
    %p462 = por %p460, %p461
    %p463 = scmp.ne.s32.totalorder %s455, %s457
    %p464 = scmp.eq.s32.totalorder %s31, 3
    %p465 = por %p463, %p464
    %p466 = scmp.ne.s32.totalorder %s457, %s458
    %p467 = scmp.eq.s32.totalorder %s31, 0
    %p468 = por %p466, %p467
    %p469 = scmp.ne.s32.totalorder %s457, %s458
    %p470 = scmp.eq.s32.totalorder %s32, 3
    %p471 = por %p469, %p470
    %p473 = scmp.ne.s32.totalorder %s458, %s472
    %p474 = scmp.eq.s32.totalorder %s32, 0
    %p475 = por %p473, %p474
    %s476 = ssub.s32 %s33, %s45
    %s477 = ssub.s32 %s34, %s41
    %s478 = sor.u32 %s476, %s477
    %p479 = scmp.eq.s32.totalorder %s478, 0
    %s481 = sadd.s32 %s480, 1
    %s482 = scalar_select %p479, %s480, %s481
    %p485 = pneg %p479
    %p486 = scmp.eq.s32.totalorder %s26, 3
    %p487 = por %p485, %p486
    %p488 = scmp.ne.s32.totalorder %s480, %s483
    %p489 = scmp.eq.s32.totalorder %s26, 0
    %p490 = por %p488, %p489
    %p491 = scmp.ne.s32.totalorder %s480, %s483
    %p492 = scmp.eq.s32.totalorder %s31, 3
    %p493 = por %p491, %p492
    %p494 = scmp.ne.s32.totalorder %s483, %s484
    %p495 = scmp.eq.s32.totalorder %s31, 0
    %p496 = por %p494, %p495
    %p497 = scmp.ne.s32.totalorder %s483, %s484
    %p498 = scmp.eq.s32.totalorder %s32, 3
    %p499 = por %p497, %p498
    %p501 = scmp.ne.s32.totalorder %s484, %s500
    %p502 = scmp.eq.s32.totalorder %s32, 0
    %p503 = por %p501, %p502
    %p504 = scmp.le.s32.totalorder 1, %s26
    %p505 = scmp.lt.s32.totalorder %s26, 5
    %p506 = pnand %p504, %p505
    %p507 = pneg %p506
    // Predicated region
    $region9: #{encoder_forward.2} parent=5 // pred_check
      _
    $region10: #{encoder_forward.2} parent=5 // pred_check_branch
      %509 = sbr.rel (%p506) target = $region12
    $region11: #{encoder_forward.2} parent=5 // pred_region
      %s510 = ssub.s32 %s26, 1
      // Predicated region
      $region13: #{encoder_forward.2} parent=11 // pred_check
        %p511 = pneg %p111
      $region14: #{encoder_forward.2} parent=11 // pred_check_branch
        %513 = sbr.rel (%p511) target = $region16
      $region15: #{encoder_forward.2} parent=11 // pred_region
        _
      $region16: #{encoder_forward.2} parent=11 // pred_fallthru
        _
      // Predicated region
      $region17: #{encoder_forward.2} parent=11 // pred_check
        %p514 = pneg %p132
      $region18: #{encoder_forward.2} parent=11 // pred_check_branch
        %516 = sbr.rel (%p514) target = $region20
      $region19: #{encoder_forward.2} parent=11 // pred_region
        _
      $region20: #{encoder_forward.2} parent=11 // pred_fallthru
        _
      // Predicated region
      $region21: #{encoder_forward.2} parent=11 // pred_check
        %p517 = pneg %p153
      $region22: #{encoder_forward.2} parent=11 // pred_check_branch
        %519 = sbr.rel (%p517) target = $region24
      $region23: #{encoder_forward.2} parent=11 // pred_region
        _
      $region24: #{encoder_forward.2} parent=11 // pred_fallthru
        _
      // Predicated region
      $region25: #{encoder_forward.2} parent=11 // pred_check
        %p520 = pneg %p174
      $region26: #{encoder_forward.2} parent=11 // pred_check_branch
        %522 = sbr.rel (%p520) target = $region28
      $region27: #{encoder_forward.2} parent=11 // pred_region
        _
      $region28: #{encoder_forward.2} parent=11 // pred_fallthru
        _
      // Predicated region
      $region29: #{encoder_forward.2} parent=11 // pred_check
        %p523 = pneg %p195
      $region30: #{encoder_forward.2} parent=11 // pred_check_branch
        %525 = sbr.rel (%p523) target = $region32
      $region31: #{encoder_forward.2} parent=11 // pred_region
        _
      $region32: #{encoder_forward.2} parent=11 // pred_fallthru
        _
      // Predicated region
      $region33: #{encoder_forward.2} parent=11 // pred_check
        %p526 = pneg %p216
      $region34: #{encoder_forward.2} parent=11 // pred_check_branch
        %528 = sbr.rel (%p526) target = $region36
      $region35: #{encoder_forward.2} parent=11 // pred_region
        _
      $region36: #{encoder_forward.2} parent=11 // pred_fallthru
        _
      // Predicated region
      $region37: #{encoder_forward.2} parent=11 // pred_check
        %p529 = pneg %p237
      $region38: #{encoder_forward.2} parent=11 // pred_check_branch
        %531 = sbr.rel (%p529) target = $region40
      $region39: #{encoder_forward.2} parent=11 // pred_region
        _
      $region40: #{encoder_forward.2} parent=11 // pred_fallthru
        _
      // Predicated region
      $region41: #{encoder_forward.2} parent=11 // pred_check
        %p532 = pneg %p258
      $region42: #{encoder_forward.2} parent=11 // pred_check_branch
        %534 = sbr.rel (%p532) target = $region44
      $region43: #{encoder_forward.2} parent=11 // pred_region
        _
      $region44: #{encoder_forward.2} parent=11 // pred_fallthru
        _
      // Predicated region
      $region45: #{encoder_forward.2} parent=11 // pred_check
        %p535 = pneg %p279
      $region46: #{encoder_forward.2} parent=11 // pred_check_branch
        %537 = sbr.rel (%p535) target = $region48
      $region47: #{encoder_forward.2} parent=11 // pred_region
        _
      $region48: #{encoder_forward.2} parent=11 // pred_fallthru
        _
      // Predicated region
      $region49: #{encoder_forward.2} parent=11 // pred_check
        %p538 = pneg %p300
      $region50: #{encoder_forward.2} parent=11 // pred_check_branch
        %540 = sbr.rel (%p538) target = $region52
      $region51: #{encoder_forward.2} parent=11 // pred_region
        _
      $region52: #{encoder_forward.2} parent=11 // pred_fallthru
        _
      // Predicated region
      $region53: #{encoder_forward.2} parent=11 // pred_check
        %p541 = pneg %p321
      $region54: #{encoder_forward.2} parent=11 // pred_check_branch
        %543 = sbr.rel (%p541) target = $region56
      $region55: #{encoder_forward.2} parent=11 // pred_region
        _
      $region56: #{encoder_forward.2} parent=11 // pred_fallthru
        _
      // Predicated region
      $region57: #{encoder_forward.2} parent=11 // pred_check
        %p544 = pneg %p342
      $region58: #{encoder_forward.2} parent=11 // pred_check_branch
        %546 = sbr.rel (%p544) target = $region60
      $region59: #{encoder_forward.2} parent=11 // pred_region
        _
      $region60: #{encoder_forward.2} parent=11 // pred_fallthru
        _
      // Predicated region
      $region61: #{encoder_forward.2} parent=11 // pred_check
        %p547 = pneg %p363
      $region62: #{encoder_forward.2} parent=11 // pred_check_branch
        %549 = sbr.rel (%p547) target = $region64
      $region63: #{encoder_forward.2} parent=11 // pred_region
        _
      $region64: #{encoder_forward.2} parent=11 // pred_fallthru
        _
      // Predicated region
      $region65: #{encoder_forward.2} parent=11 // pred_check
        %p550 = pneg %p384
      $region66: #{encoder_forward.2} parent=11 // pred_check_branch
        %552 = sbr.rel (%p550) target = $region68
      $region67: #{encoder_forward.2} parent=11 // pred_region
        _
      $region68: #{encoder_forward.2} parent=11 // pred_fallthru
        _
      // Predicated region
      $region69: #{encoder_forward.2} parent=11 // pred_check
        %p553 = pneg %p405
      $region70: #{encoder_forward.2} parent=11 // pred_check_branch
        %555 = sbr.rel (%p553) target = $region72
      $region71: #{encoder_forward.2} parent=11 // pred_region
        _
      $region72: #{encoder_forward.2} parent=11 // pred_fallthru
        _
      // Predicated region
      $region73: #{encoder_forward.2} parent=11 // pred_check
        %p556 = pneg %p426
      $region74: #{encoder_forward.2} parent=11 // pred_check_branch
        %558 = sbr.rel (%p556) target = $region76
      $region75: #{encoder_forward.2} parent=11 // pred_region
        _
      $region76: #{encoder_forward.2} parent=11 // pred_fallthru
        _
      // Predicated region
      $region77: #{encoder_forward.2} parent=11 // pred_check
        %p559 = pneg %p447
      $region78: #{encoder_forward.2} parent=11 // pred_check_branch
        %561 = sbr.rel (%p559) target = $region80
      $region79: #{encoder_forward.2} parent=11 // pred_region
        _
      $region80: #{encoder_forward.2} parent=11 // pred_fallthru
        _
      // Predicated region
      $region81: #{encoder_forward.2} parent=11 // pred_check
        %p562 = pneg %p468
      $region82: #{encoder_forward.2} parent=11 // pred_check_branch
        %564 = sbr.rel (%p562) target = $region84
      $region83: #{encoder_forward.2} parent=11 // pred_region
        _
      $region84: #{encoder_forward.2} parent=11 // pred_fallthru
        _
    $region12: #{encoder_forward.2} parent=5 // pred_fallthru
      _
    %p565 = scmp.lt.s32.totalorder %s26, 4
    // Predicated region
    $region85: #{encoder_forward.2} parent=5 // pred_check
      %p566 = pneg %p565
    $region86: #{encoder_forward.2} parent=5 // pred_check_branch
      %568 = sbr.rel (%p566) target = $region88
    $region87: #{encoder_forward.2} parent=5 // pred_region
      // Predicated region
      $region89: #{encoder_forward.2} parent=87 // pred_check
        %p569 = pneg %p58
      $region90: #{encoder_forward.2} parent=87 // pred_check_branch
        %571 = sbr.rel (%p569) target = $region92
      $region91: #{encoder_forward.2} parent=87 // pred_region
        %p572 = scmp.lt.s32.totalorder %s33, 1
        %s573 = scalar_select %p572, %s33, 1
        %s574 = smul.addr %s573, 2
        %s575 = smul.addr %s574, 8
        %s576 = scalar_lea.vmem %s0, %s575
      $region92: #{encoder_forward.2} parent=87 // pred_fallthru
        _
      // Predicated region
      $region93: #{encoder_forward.2} parent=87 // pred_check
        %p577 = pneg %p84
      $region94: #{encoder_forward.2} parent=87 // pred_check_branch
        %579 = sbr.rel (%p577) target = $region96
      $region95: #{encoder_forward.2} parent=87 // pred_region
        %p580 = scmp.lt.s32.totalorder %s34, 1
        %s581 = scalar_select %p580, %s34, 1
        %s582 = smul.addr %s581, 4
        %s583 = scalar_lea.vmem %s1, %s582
      $region96: #{encoder_forward.2} parent=87 // pred_fallthru
        _
    $region88: #{encoder_forward.2} parent=5 // pred_fallthru
      _
    %p584 = scmp.le.s32.totalorder 1, %s26
    %p585 = scmp.lt.s32.totalorder %s26, 5
    %p586 = pnand %p584, %p585
    %p587 = pneg %p586
    // Predicated region
    $region97: #{encoder_forward.2} parent=5 // pred_check
      _
    $region98: #{encoder_forward.2} parent=5 // pred_check_branch
      %589 = sbr.rel (%p586) target = $region100
    $region99: #{encoder_forward.2} parent=5 // pred_region
      %s590 = ssub.s32 %s26, 1
      %p591 = scmp.lt.s32.totalorder %s35, 1
      %s592 = scalar_select %p591, %s35, 1
      %s593 = smul.addr %s592, 2
      %s594 = smul.addr %s593, 8
      %s595 = scalar_lea.vmem %s0, %s594
      %p596 = pneg %p64
      %p597 = pneg %p61
      %p598 = scmp.lt.s32.totalorder %s36, 1
      %s599 = scalar_select %p598, %s36, 1
      %s600 = smul.addr %s599, 4
      %s601 = scalar_lea.vmem %s1, %s600
      %p602 = pneg %p90
      %p603 = pneg %p87
      %p604 = pneg %p111
      %p605 = pneg %p108
      %p606 = pneg %p132
      %p607 = pneg %p129
      %p608 = pneg %p153
      %p609 = pneg %p150
      %p610 = pneg %p174
      %p611 = pneg %p171
      %p612 = pneg %p195
      %p613 = pneg %p192
      %p614 = pneg %p216
      %p615 = pneg %p213
      %p616 = pneg %p237
      %p617 = pneg %p234
      %p618 = pneg %p258
      %p619 = pneg %p255
      %p620 = pneg %p279
      %p621 = pneg %p276
      %p622 = pneg %p300
      %p623 = pneg %p297
      %p624 = pneg %p321
      %p625 = pneg %p318
      %p626 = pneg %p342
      %p627 = pneg %p339
      %p628 = pneg %p363
      %p629 = pneg %p360
      %p630 = pneg %p384
      %p631 = pneg %p381
      %p632 = pneg %p405
      %p633 = pneg %p402
      %p634 = pneg %p426
      %p635 = pneg %p423
      %p636 = pneg %p447
      %p637 = pneg %p444
      %p638 = pneg %p468
      %p639 = pneg %p465
      %p640 = pneg %p496
      %p641 = pneg %p493
      %p642 = scmp.lt.s32.totalorder %s35, 1
      %s643 = scalar_select %p642, %s35, 1
      %p644 = scmp.lt.s32.totalorder %s36, 1
      %s645 = scalar_select %p644, %s36, 1
      %s646 = smul.addr %s643, 2
      %s647 = sadd.s32 %s645, %s646
      %s648 = smul.addr %s647, 4
      %s649 = scalar_lea.vmem %s20, %s648
      %p650 = scmp.lt.s32.totalorder %s35, 1
      %s651 = scalar_select %p650, %s35, 1
      %s652 = smul.addr %s651, 2
      %s653 = smul.addr %s652, 8
      %s654 = scalar_lea.vmem %s0, %s653
      %p655 = scmp.lt.s32.totalorder %s36, 1
      %s656 = scalar_select %p655, %s36, 1
      %s657 = smul.addr %s656, 4
      %s658 = scalar_lea.vmem %s1, %s657
      %p659 = scmp.lt.s32.totalorder %s35, 1
      %s660 = scalar_select %p659, %s35, 1
      %p661 = scmp.lt.s32.totalorder %s36, 1
      %s662 = scalar_select %p661, %s36, 1
      %s663 = smul.addr %s660, 2
      %s664 = sadd.s32 %s662, %s663
      %s665 = smul.addr %s664, 4
      %s666 = scalar_lea.vmem %s20, %s665
      %p668 = scmp.eq.s32.totalorder %s36, 0
      // Predicated region
      $region101: #{encoder_forward.2} parent=99 // pred_check
        %p669 = pneg %p668
      $region102: #{encoder_forward.2} parent=99 // pred_check_branch
        %671 = sbr.rel (%p669) target = $region104
      $region103: #{encoder_forward.2} parent=99 // pred_region
        %v672 = vld [vmem:[%s654] sm:$0xff]
        %v673 = vld [vmem:[%s654 + $0x8] sm:$0xff]
        %v674 = vld [vmem:[%s2] sm:$0x1]
        %v675 = vld [vmem:[%s3] sm:$0x1]
        %vm676 = vcmask 261120
        %v677 = vsel %vm676, %v672, 0.0
        %678 = vadd.xlane.f32.xlu0 %v677
        %v679 = vpop.xlane.xlu0 %678
        %v680 = vsel %vm676, %v673, 0.0
        %681 = vadd.xlane.f32.xlu0 %v680
        %v682 = vpop.xlane.xlu0 %681
        %v683 = vrcp.pop 32.0
        %v684 = vmul.f32 32.0, %v683
        %v685 = vsub.f32 1.0, %v684
        %v686 = vmul.f32 %v683, %v685
        %v687 = vadd.f32 %v683, %v686
        %vm688 = vweird.f32 %v683
        %v689 = vsel %vm688, %v683, %v687
        %v690 = vmul.f32 %v679, %v689
        %v691 = vmul.f32 %v682, %v689
        %v692 = vsub.f32 %v672, %v690
        %v693 = vsub.f32 %v673, %v691
        %v694 = vmul.f32 %v692, %v692
        %v695 = vmul.f32 %v693, %v693
        %v696 = vsel %vm676, %v694, 0.0
        %697 = vadd.xlane.f32.xlu0 %v696
        %v698 = vpop.xlane.xlu0 %697
        %v699 = vsel %vm676, %v695, 0.0
        %700 = vadd.xlane.f32.xlu0 %v699
        %v701 = vpop.xlane.xlu0 %700
        %v702 = vmul.f32 %v698, 0.032258064
        %v703 = vmul.f32 %v701, 0.032258064
        %v704 = vrsqrt.pop %v702
        %v705 = vmul.f32 %v704, %v702
        %v706 = vmul.f32 %v705, %v704
        %v707 = vmul.f32 0.5, %v706
        %v708 = vsub.f32 1.5, %v707
        %v709 = vmul.f32 %v704, %v708
        %v710 = vmul.f32 %v702, %v709
        %vm711 = vcmp.eq.f32.partialorder %v702, inf
        %v712 = vsel %vm711, %v702, %v710
        %vm713 = vcmp.eq.f32.partialorder %v702, 0.0
        %v714 = vand.u32 %v702, 2147483648
        %v715 = vsel %vm713, %v714, %v712
        %v716 = vrsqrt.pop %v703
        %v717 = vmul.f32 %v716, %v703
        %v718 = vmul.f32 %v717, %v716
        %v719 = vmul.f32 0.5, %v718
        %v720 = vsub.f32 1.5, %v719
        %v721 = vmul.f32 %v716, %v720
        %v722 = vmul.f32 %v703, %v721
        %vm723 = vcmp.eq.f32.partialorder %v703, inf
        %v724 = vsel %vm723, %v703, %v722
        %vm725 = vcmp.eq.f32.partialorder %v703, 0.0
        %v726 = vand.u32 %v703, 2147483648
        %v727 = vsel %vm725, %v726, %v724
        %v729 = vperm.slane %v674, 0
        %v731 = vmul.f32 %v729, %v692
        %v732 = vmul.f32 %v729, %v693
        %v733 = vadd.f32 %v715, 1e-06
        %v734 = vadd.f32 %v727, 1e-06
        %v735 = vrsqrt.pop %v733
        %v736 = vmul.f32 %v735, %v733
        %v737 = vmul.f32 %v736, %v735
        %v738 = vmul.f32 0.5, %v737
        %v739 = vsub.f32 1.5, %v738
        %v740 = vmul.f32 %v735, %v739
        %vm741 = vweird.f32 %v733
        %vm742 = vweird.f32 %v735
        %vm743 = vmor %vm741, %vm742
        %v744 = vsel %vm743, %v735, %v740
        %v745 = vrsqrt.pop %v734
        %v746 = vmul.f32 %v745, %v734
        %v747 = vmul.f32 %v746, %v745
        %v748 = vmul.f32 0.5, %v747
        %v749 = vsub.f32 1.5, %v748
        %v750 = vmul.f32 %v745, %v749
        %vm751 = vweird.f32 %v734
        %vm752 = vweird.f32 %v745
        %vm753 = vmor %vm751, %vm752
        %v754 = vsel %vm753, %v745, %v750
        %v755 = vmul.f32 %v731, %v744
        %v756 = vmul.f32 %v732, %v754
        %v758 = vperm.slane %v675, 0
        %v760 = vadd.f32 %v755, %v758
        %v761 = vadd.f32 %v756, %v758
        %v762 = vpack.c.bf16 %v760, %v760
        %v763 = vpack.c.bf16 %v761, %v761
        %vm764 = vcmask 257024
        %765 = vst.msk [vmem:[#allocation2] sm:$0xf] %vm764, %v762
        %766 = vst.msk [vmem:[#allocation2 + $0x4] sm:$0xf] %vm764, %v763
        %v767 = vld [vmem:[%s5] sm:$0xf]
        %v768 = vld [vmem:[%s5 + $0x4] sm:$0xf]
        %v769 = vld [vmem:[%s5 + $0x8] sm:$0xf]
        %v770 = vld [vmem:[%s5 + $0xc] sm:$0xf]
        %v771 = vld [vmem:[%s9] sm:$0x1]
        %v773 = vperm.slane %v771, 0
        %v777 = vunpack.c.l.b16 %v762
        %v778 = vunpack.c.l.b16 %v763
        %v779 = vpack.c.b16 %v778, %v777
        %v784 = vunpack.c.l.b16 %v767
        %v785 = vunpack.c.l.b16 %v768
        %v786 = vunpack.c.l.b16 %v769
        %v787 = vunpack.c.l.b16 %v770
        %v788 = vpack.c.b16 %v785, %v784
        %v789 = vpack.c.b16 %v787, %v786
        %v793 = vsel %vm676, %v779, 0
        %795 = vmatpush.bf16.msra.mxu0 0
        %796 = vmatpush.bf16.msra.mxu0 0
        %797 = vmatpush.bf16.msra.mxu0 0
        %798 = vmatpush.bf16.msra.mxu0 0
        %799 = vmatpush.bf16.msra.mxu0 0
        %800 = vmatpush.bf16.msra.mxu0 0
        %801 = vmatpush.bf16.msra.mxu0 %v789
        %802 = vmatpush.bf16.msra.mxu0 %v788
        %803 = vmatmul.bf16.gmra.mxu0 %v793
        %v804 = vpop.f32.mrf.mxu0
        %v805 = vadd.f32 %v773, %v804
        %v806 = vpop.f32.mrf.mxu0
        %v807 = vadd.f32 %v773, %v806
        %808 = vdwg.mxu0
        %v809 = vld [vmem:[%s6] sm:$0xf]
        %v810 = vld [vmem:[%s6 + $0x4] sm:$0xf]
        %v811 = vld [vmem:[%s6 + $0x8] sm:$0xf]
        %v812 = vld [vmem:[%s6 + $0xc] sm:$0xf]
        %v813 = vld [vmem:[%s10] sm:$0x1]
        %v815 = vperm.slane %v813, 0
        %v821 = vunpack.c.l.b16 %v809
        %v822 = vunpack.c.l.b16 %v810
        %v823 = vunpack.c.l.b16 %v811
        %v824 = vunpack.c.l.b16 %v812
        %v825 = vpack.c.b16 %v822, %v821
        %v826 = vpack.c.b16 %v824, %v823
        %829 = vmatpush.bf16.msra.mxu0 0
        %830 = vmatpush.bf16.msra.mxu0 0
        %831 = vmatpush.bf16.msra.mxu0 0
        %832 = vmatpush.bf16.msra.mxu0 0
        %833 = vmatpush.bf16.msra.mxu0 0
        %834 = vmatpush.bf16.msra.mxu0 0
        %835 = vmatpush.bf16.msra.mxu0 %v826
        %836 = vmatpush.bf16.msra.mxu0 %v825
        %837 = vmatmul.bf16.gmra.mxu0 %v793
        %v838 = vpop.f32.mrf.mxu0
        %v839 = vadd.f32 %v815, %v838
        %v840 = vpop.f32.mrf.mxu0
        %v841 = vadd.f32 %v815, %v840
        %842 = vdwg.mxu0
        %v843 = vpack.c.bf16 %v805, %v805
        %v844 = vpack.c.bf16 %v807, %v807
        %vm845 = vcmask 60416
        %846 = vst.msk [vmem:[#allocation3] sm:$0xf] %vm845, %v843
        %847 = vst.msk [vmem:[#allocation3 + $0x4] sm:$0xf] %vm845, %v844
        %v848 = vpack.c.bf16 %v839, %v839
        %v849 = vpack.c.bf16 %v841, %v841
        %850 = vst.msk [vmem:[#allocation4] sm:$0xf] %vm845, %v848
        %851 = vst.msk [vmem:[#allocation4 + $0x4] sm:$0xf] %vm845, %v849
        %s852 = scalar_lea.vmem %s5, 16
        %v853 = vld [vmem:[%s852] sm:$0xf]
        %v854 = vld [vmem:[%s852 + $0x4] sm:$0xf]
        %v855 = vld [vmem:[%s852 + $0x8] sm:$0xf]
        %v856 = vld [vmem:[%s852 + $0xc] sm:$0xf]
        %s857 = scalar_lea.vmem %s9, 1
        %v858 = vld [vmem:[%s857] sm:$0x1]
        %v860 = vperm.slane %v858, 0
        %v866 = vunpack.c.l.b16 %v853
        %v867 = vunpack.c.l.b16 %v854
        %v868 = vunpack.c.l.b16 %v855
        %v869 = vunpack.c.l.b16 %v856
        %v870 = vpack.c.b16 %v867, %v866
        %v871 = vpack.c.b16 %v869, %v868
        %874 = vmatpush.bf16.msra.mxu0 0
        %875 = vmatpush.bf16.msra.mxu0 0
        %876 = vmatpush.bf16.msra.mxu0 0
        %877 = vmatpush.bf16.msra.mxu0 0
        %878 = vmatpush.bf16.msra.mxu0 0
        %879 = vmatpush.bf16.msra.mxu0 0
        %880 = vmatpush.bf16.msra.mxu0 %v871
        %881 = vmatpush.bf16.msra.mxu0 %v870
        %882 = vmatmul.bf16.gmra.mxu0 %v793
        %v883 = vpop.f32.mrf.mxu0
        %v884 = vadd.f32 %v860, %v883
        %v885 = vpop.f32.mrf.mxu0
        %v886 = vadd.f32 %v860, %v885
        %887 = vdwg.mxu0
        %s888 = scalar_lea.vmem %s6, 16
        %v889 = vld [vmem:[%s888] sm:$0xf]
        %v890 = vld [vmem:[%s888 + $0x4] sm:$0xf]
        %v891 = vld [vmem:[%s888 + $0x8] sm:$0xf]
        %v892 = vld [vmem:[%s888 + $0xc] sm:$0xf]
        %s893 = scalar_lea.vmem %s10, 1
        %v894 = vld [vmem:[%s893] sm:$0x1]
        %v896 = vperm.slane %v894, 0
        %v902 = vunpack.c.l.b16 %v889
        %v903 = vunpack.c.l.b16 %v890
        %v904 = vunpack.c.l.b16 %v891
        %v905 = vunpack.c.l.b16 %v892
        %v906 = vpack.c.b16 %v903, %v902
        %v907 = vpack.c.b16 %v905, %v904
        %910 = vmatpush.bf16.msra.mxu0 0
        %911 = vmatpush.bf16.msra.mxu0 0
        %912 = vmatpush.bf16.msra.mxu0 0
        %913 = vmatpush.bf16.msra.mxu0 0
        %914 = vmatpush.bf16.msra.mxu0 0
        %915 = vmatpush.bf16.msra.mxu0 0
        %916 = vmatpush.bf16.msra.mxu0 %v907
        %917 = vmatpush.bf16.msra.mxu0 %v906
        %918 = vmatmul.bf16.gmra.mxu0 %v793
        %v919 = vpop.f32.mrf.mxu0
        %v920 = vadd.f32 %v896, %v919
        %v921 = vpop.f32.mrf.mxu0
        %v922 = vadd.f32 %v896, %v921
        %923 = vdwg.mxu0
        %v924 = vpack.c.bf16 %v884, %v884
        %v925 = vpack.c.bf16 %v886, %v886
        %s926 = scalar_lea.vmem [#allocation3], 8
        %927 = vst.msk [vmem:[%s926] sm:$0xf] %vm845, %v924
        %928 = vst.msk [vmem:[%s926 + $0x4] sm:$0xf] %vm845, %v925
        %v929 = vpack.c.bf16 %v920, %v920
        %v930 = vpack.c.bf16 %v922, %v922
        %s931 = scalar_lea.vmem [#allocation4], 8
        %932 = vst.msk [vmem:[%s931] sm:$0xf] %vm845, %v929
        %933 = vst.msk [vmem:[%s931 + $0x4] sm:$0xf] %vm845, %v930
        %s934 = scalar_lea.vmem %s5, 32
        %v935 = vld [vmem:[%s934] sm:$0xf]
        %v936 = vld [vmem:[%s934 + $0x4] sm:$0xf]
        %v937 = vld [vmem:[%s934 + $0x8] sm:$0xf]
        %v938 = vld [vmem:[%s934 + $0xc] sm:$0xf]
        %s939 = scalar_lea.vmem %s9, 2
        %v940 = vld [vmem:[%s939] sm:$0x1]
        %v942 = vperm.slane %v940, 0
        %v948 = vunpack.c.l.b16 %v935
        %v949 = vunpack.c.l.b16 %v936
        %v950 = vunpack.c.l.b16 %v937
        %v951 = vunpack.c.l.b16 %v938
        %v952 = vpack.c.b16 %v949, %v948
        %v953 = vpack.c.b16 %v951, %v950
        %956 = vmatpush.bf16.msra.mxu0 0
        %957 = vmatpush.bf16.msra.mxu0 0
        %958 = vmatpush.bf16.msra.mxu0 0
        %959 = vmatpush.bf16.msra.mxu0 0
        %960 = vmatpush.bf16.msra.mxu0 0
        %961 = vmatpush.bf16.msra.mxu0 0
        %962 = vmatpush.bf16.msra.mxu0 %v953
        %963 = vmatpush.bf16.msra.mxu0 %v952
        %964 = vmatmul.bf16.gmra.mxu0 %v793
        %v965 = vpop.f32.mrf.mxu0
        %v966 = vadd.f32 %v942, %v965
        %v967 = vpop.f32.mrf.mxu0
        %v968 = vadd.f32 %v942, %v967
        %969 = vdwg.mxu0
        %s970 = scalar_lea.vmem %s6, 32
        %v971 = vld [vmem:[%s970] sm:$0xf]
        %v972 = vld [vmem:[%s970 + $0x4] sm:$0xf]
        %v973 = vld [vmem:[%s970 + $0x8] sm:$0xf]
        %v974 = vld [vmem:[%s970 + $0xc] sm:$0xf]
        %s975 = scalar_lea.vmem %s10, 2
        %v976 = vld [vmem:[%s975] sm:$0x1]
        %v978 = vperm.slane %v976, 0
        %v984 = vunpack.c.l.b16 %v971
        %v985 = vunpack.c.l.b16 %v972
        %v986 = vunpack.c.l.b16 %v973
        %v987 = vunpack.c.l.b16 %v974
        %v988 = vpack.c.b16 %v985, %v984
        %v989 = vpack.c.b16 %v987, %v986
        %992 = vmatpush.bf16.msra.mxu0 0
        %993 = vmatpush.bf16.msra.mxu0 0
        %994 = vmatpush.bf16.msra.mxu0 0
        %995 = vmatpush.bf16.msra.mxu0 0
        %996 = vmatpush.bf16.msra.mxu0 0
        %997 = vmatpush.bf16.msra.mxu0 0
        %998 = vmatpush.bf16.msra.mxu0 %v989
        %999 = vmatpush.bf16.msra.mxu0 %v988
        %1000 = vmatmul.bf16.gmra.mxu0 %v793
        %v1001 = vpop.f32.mrf.mxu0
        %v1002 = vadd.f32 %v978, %v1001
        %v1003 = vpop.f32.mrf.mxu0
        %v1004 = vadd.f32 %v978, %v1003
        %1005 = vdwg.mxu0
        %v1006 = vpack.c.bf16 %v966, %v966
        %v1007 = vpack.c.bf16 %v968, %v968
        %s1008 = scalar_lea.vmem [#allocation3], 16
        %1009 = vst.msk [vmem:[%s1008] sm:$0xf] %vm845, %v1006
        %1010 = vst.msk [vmem:[%s1008 + $0x4] sm:$0xf] %vm845, %v1007
        %v1011 = vpack.c.bf16 %v1002, %v1002
        %v1012 = vpack.c.bf16 %v1004, %v1004
        %s1013 = scalar_lea.vmem [#allocation4], 16
        %1014 = vst.msk [vmem:[%s1013] sm:$0xf] %vm845, %v1011
        %1015 = vst.msk [vmem:[%s1013 + $0x4] sm:$0xf] %vm845, %v1012
        %s1016 = scalar_lea.vmem %s5, 48
        %v1017 = vld [vmem:[%s1016] sm:$0xf]
        %v1018 = vld [vmem:[%s1016 + $0x4] sm:$0xf]
        %v1019 = vld [vmem:[%s1016 + $0x8] sm:$0xf]
        %v1020 = vld [vmem:[%s1016 + $0xc] sm:$0xf]
        %s1021 = scalar_lea.vmem %s9, 3
        %v1022 = vld [vmem:[%s1021] sm:$0x1]
        %v1024 = vperm.slane %v1022, 0
        %v1030 = vunpack.c.l.b16 %v1017
        %v1031 = vunpack.c.l.b16 %v1018
        %v1032 = vunpack.c.l.b16 %v1019
        %v1033 = vunpack.c.l.b16 %v1020
        %v1034 = vpack.c.b16 %v1031, %v1030
        %v1035 = vpack.c.b16 %v1033, %v1032
        %1038 = vmatpush.bf16.msra.mxu0 0
        %1039 = vmatpush.bf16.msra.mxu0 0
        %1040 = vmatpush.bf16.msra.mxu0 0
        %1041 = vmatpush.bf16.msra.mxu0 0
        %1042 = vmatpush.bf16.msra.mxu0 0
        %1043 = vmatpush.bf16.msra.mxu0 0
        %1044 = vmatpush.bf16.msra.mxu0 %v1035
        %1045 = vmatpush.bf16.msra.mxu0 %v1034
        %1046 = vmatmul.bf16.gmra.mxu0 %v793
        %v1047 = vpop.f32.mrf.mxu0
        %v1048 = vadd.f32 %v1024, %v1047
        %v1049 = vpop.f32.mrf.mxu0
        %v1050 = vadd.f32 %v1024, %v1049
        %1051 = vdwg.mxu0
        %s1052 = scalar_lea.vmem %s6, 48
        %v1053 = vld [vmem:[%s1052] sm:$0xf]
        %v1054 = vld [vmem:[%s1052 + $0x4] sm:$0xf]
        %v1055 = vld [vmem:[%s1052 + $0x8] sm:$0xf]
        %v1056 = vld [vmem:[%s1052 + $0xc] sm:$0xf]
        %s1057 = scalar_lea.vmem %s10, 3
        %v1058 = vld [vmem:[%s1057] sm:$0x1]
        %v1060 = vperm.slane %v1058, 0
        %v1066 = vunpack.c.l.b16 %v1053
        %v1067 = vunpack.c.l.b16 %v1054
        %v1068 = vunpack.c.l.b16 %v1055
        %v1069 = vunpack.c.l.b16 %v1056
        %v1070 = vpack.c.b16 %v1067, %v1066
        %v1071 = vpack.c.b16 %v1069, %v1068
        %1074 = vmatpush.bf16.msra.mxu0 0
        %1075 = vmatpush.bf16.msra.mxu0 0
        %1076 = vmatpush.bf16.msra.mxu0 0
        %1077 = vmatpush.bf16.msra.mxu0 0
        %1078 = vmatpush.bf16.msra.mxu0 0
        %1079 = vmatpush.bf16.msra.mxu0 0
        %1080 = vmatpush.bf16.msra.mxu0 %v1071
        %1081 = vmatpush.bf16.msra.mxu0 %v1070
        %1082 = vmatmul.bf16.gmra.mxu0 %v793
        %v1083 = vpop.f32.mrf.mxu0
        %v1084 = vadd.f32 %v1060, %v1083
        %v1085 = vpop.f32.mrf.mxu0
        %v1086 = vadd.f32 %v1060, %v1085
        %1087 = vdwg.mxu0
        %v1088 = vpack.c.bf16 %v1048, %v1048
        %v1089 = vpack.c.bf16 %v1050, %v1050
        %s1090 = scalar_lea.vmem [#allocation3], 24
        %1091 = vst.msk [vmem:[%s1090] sm:$0xf] %vm845, %v1088
        %1092 = vst.msk [vmem:[%s1090 + $0x4] sm:$0xf] %vm845, %v1089
        %v1093 = vpack.c.bf16 %v1084, %v1084
        %v1094 = vpack.c.bf16 %v1086, %v1086
        %s1095 = scalar_lea.vmem [#allocation4], 24
        %1096 = vst.msk [vmem:[%s1095] sm:$0xf] %vm845, %v1093
        %1097 = vst.msk [vmem:[%s1095 + $0x4] sm:$0xf] %vm845, %v1094
      $region104: #{encoder_forward.2} parent=99 // pred_fallthru
        _
      %s1098 = smul.u32 %s36, 8
      %s1099 = scalar_lea.vmem %s654, %s1098
      %v1100 = vld [vmem:[%s1099] sm:$0xff]
      %s1101 = sshra.s32 %s1098, 3
      %s1102 = sand.u32 %s1098, 7
      %s1103 = smul.addr %s1101, 4
      %s1104 = scalar_lea.vmem [#allocation2], %s1103
      %v1105 = vld [vmem:[%s1104] sm:$0xf]
      %v1106 = vld [vmem:[%s658] sm:$0xf]
      %v1107 = vunpack.c.l.bf16 %v1106
      %vm1108 = vcmask 261120
      %1109 = vst.msk [vmem:[#allocation5] sm:$0xff] %vm1108, 0.0
      %v1110 = vld [vmem:[%s4] sm:$0xf]
      %v1111 = vld [vmem:[%s4 + $0x4] sm:$0xf]
      %v1112 = vld [vmem:[%s4 + $0x8] sm:$0xf]
      %v1113 = vld [vmem:[%s4 + $0xc] sm:$0xf]
      %v1114 = vld [vmem:[%s8] sm:$0x1]
      %v1116 = vperm.slane %v1114, 0
      %v1122 = vunpack.c.l.b16 %v1110
      %v1123 = vunpack.c.l.b16 %v1111
      %v1124 = vunpack.c.l.b16 %v1112
      %v1125 = vunpack.c.l.b16 %v1113
      %v1126 = vpack.c.b16 %v1123, %v1122
      %v1127 = vpack.c.b16 %v1125, %v1124
      %v1131 = vsel %vm1108, %v1105, 0
      %1133 = vmatpush.bf16.msra.mxu0 0
      %1134 = vmatpush.bf16.msra.mxu0 0
      %1135 = vmatpush.bf16.msra.mxu0 0
      %1136 = vmatpush.bf16.msra.mxu0 0
      %1137 = vmatpush.bf16.msra.mxu0 0
      %1138 = vmatpush.bf16.msra.mxu0 0
      %1139 = vmatpush.bf16.msra.mxu0 %v1127
      %1140 = vmatpush.bf16.msra.mxu0 %v1126
      %1141 = vmatmul.bf16.gmra.mxu0 %v1131
      %v1142 = vpop.f32.mrf.mxu0
      %v1143 = vadd.f32 %v1116, %v1142
      %v1144 = vpop.f32.mrf.mxu0
      %1145 = vdwg.mxu0
      %v1146 = vpack.c.bf16 %v1143, %v1143
      %v1147 = vld [vmem:[#allocation3] sm:$0xf]
      %v1148 = vld [vmem:[#allocation3 + $0x4] sm:$0xf]
      %v1151 = vunpack.c.l.b16 %v1147
      %v1152 = vunpack.c.l.b16 %v1148
      %v1153 = vpack.c.b16 %v1152, %v1151
      %vm1154 = vcmask 64512
      %v1156 = vsel %vm1154, %v1146, 0
      %v1159 = vsel %vm1154, %v1153, 0
      %1161 = vmatpush.bf16.xpose.msra.mxu0 0
      %1162 = vmatpush.bf16.xpose.msra.mxu0 0
      %1163 = vmatpush.bf16.xpose.msra.mxu0 0
      %1164 = vmatpush.bf16.xpose.msra.mxu0 0
      %1165 = vmatpush.bf16.xpose.msra.mxu0 0
      %1166 = vmatpush.bf16.xpose.msra.mxu0 0
      %1167 = vmatpush.bf16.xpose.msra.mxu0 0
      %1168 = vmatpush.bf16.xpose.msra.mxu0 %v1159
      %1169 = vmatmul.bf16.gmra.mxu0 %v1156
      %v1170 = vpop.f32.mrf.mxu0
      %v1171 = vadd.f32 %v1107, %v1170
      %v1172 = vpop.f32.mrf.mxu0
      %1173 = vdwg.mxu0
      %vm1174 = vcmask 130048
      %v1175 = vsel %vm1174, %v1171, -inf
      %1176 = vmax.xlane.f32.xlu0 %v1175
      %v1177 = vpop.xlane.xlu0 %1176
      %v1178 = vsub.f32 %v1171, %v1177
      %v1179 = vmul.f32 %v1178, 1.442695
      %v1180 = vpow.pop %v1179
      %v1181 = vsel %vm1174, %v1180, 0.0
      %1182 = vadd.xlane.f32.xlu0 %v1181
      %v1183 = vpop.xlane.xlu0 %1182
      %v1184 = vrcp.pop %v1183
      %v1185 = vmul.f32 %v1183, %v1184
      %v1186 = vsub.f32 1.0, %v1185
      %v1187 = vmul.f32 %v1184, %v1186
      %v1188 = vadd.f32 %v1184, %v1187
      %vm1189 = vweird.f32 %v1183
      %vm1190 = vweird.f32 %v1184
      %vm1191 = vmor %vm1189, %vm1190
      %v1192 = vsel %vm1191, %v1184, %v1188
      %v1193 = vand.u32 2147483647, %v1183
      %vm1194 = vcmp.eq.f32.partialorder %v1193, 8.507059e+37
      %v1195 = vand.u32 %v1183, 2147483648
      %v1196 = vor.u32 1.1754944e-38, %v1195
      %v1197 = vsel %vm1194, %v1196, %v1192
      %v1198 = vmul.f32 %v1180, %v1197
      %v1199 = vpack.c.bf16 %v1198, %v1198
      %v1200 = vld [vmem:[#allocation4] sm:$0xf]
      %v1201 = vld [vmem:[#allocation4 + $0x4] sm:$0xf]
      %v1204 = vunpack.c.l.b16 %v1200
      %v1205 = vunpack.c.l.b16 %v1201
      %v1206 = vpack.c.b16 %v1205, %v1204
      %v1209 = vsel %vm1174, %v1199, 0
      %1211 = vmatpush.bf16.msra.mxu0 0
      %1212 = vmatpush.bf16.msra.mxu0 0
      %1213 = vmatpush.bf16.msra.mxu0 0
      %1214 = vmatpush.bf16.msra.mxu0 0
      %1215 = vmatpush.bf16.msra.mxu0 0
      %1216 = vmatpush.bf16.msra.mxu0 0
      %1217 = vmatpush.bf16.msra.mxu0 0
      %1218 = vmatpush.bf16.msra.mxu0 %v1206
      %1219 = vmatmul.bf16.gmra.mxu0 %v1209
      %v1220 = vpop.f32.mrf.mxu0
      %v1221 = vadd.f32 0.0, %v1220
      %v1222 = vpop.f32.mrf.mxu0
      %1223 = vdwg.mxu0
      %v1224 = vld [vmem:[#allocation5] sm:$0xff]
      %v1225 = vpack.c.bf16 %v1221, %v1221
      %v1226 = vld [vmem:[%s7] sm:$0xf]
      %v1228 = vsel %vm1154, %v1225, 0
      %vm1230 = vcmask 1043456
      %v1232 = vsel %vm1230, %v1226, 0
      %1234 = vmatpush.bf16.msra.mxu0 0
      %1235 = vmatpush.bf16.msra.mxu0 0
      %1236 = vmatpush.bf16.msra.mxu0 0
      %1237 = vmatpush.bf16.msra.mxu0 0
      %1238 = vmatpush.bf16.msra.mxu0 0
      %1239 = vmatpush.bf16.msra.mxu0 0
      %1240 = vmatpush.bf16.msra.mxu0 0
      %1241 = vmatpush.bf16.msra.mxu0 %v1232
      %1242 = vmatmul.bf16.gmra.mxu0 %v1228
      %v1243 = vpop.f32.mrf.mxu0
      %v1244 = vadd.f32 0.0, %v1243
      %v1245 = vpop.f32.mrf.mxu0
      %1246 = vdwg.mxu0
      %v1247 = vadd.f32 %v1224, %v1244
      %1248 = vst.msk [vmem:[#allocation5] sm:$0xff] %vm1108, %v1247
      %s1249 = scalar_lea.vmem %s4, 16
      %v1250 = vld [vmem:[%s1249] sm:$0xf]
      %v1251 = vld [vmem:[%s1249 + $0x4] sm:$0xf]
      %v1252 = vld [vmem:[%s1249 + $0x8] sm:$0xf]
      %v1253 = vld [vmem:[%s1249 + $0xc] sm:$0xf]
      %s1254 = scalar_lea.vmem %s8, 1
      %v1255 = vld [vmem:[%s1254] sm:$0x1]
      %v1257 = vperm.slane %v1255, 0
      %v1263 = vunpack.c.l.b16 %v1250
      %v1264 = vunpack.c.l.b16 %v1251
      %v1265 = vunpack.c.l.b16 %v1252
      %v1266 = vunpack.c.l.b16 %v1253
      %v1267 = vpack.c.b16 %v1264, %v1263
      %v1268 = vpack.c.b16 %v1266, %v1265
      %1271 = vmatpush.bf16.msra.mxu0 0
      %1272 = vmatpush.bf16.msra.mxu0 0
      %1273 = vmatpush.bf16.msra.mxu0 0
      %1274 = vmatpush.bf16.msra.mxu0 0
      %1275 = vmatpush.bf16.msra.mxu0 0
      %1276 = vmatpush.bf16.msra.mxu0 0
      %1277 = vmatpush.bf16.msra.mxu0 %v1268
      %1278 = vmatpush.bf16.msra.mxu0 %v1267
      %1279 = vmatmul.bf16.gmra.mxu0 %v1131
      %v1280 = vpop.f32.mrf.mxu0
      %v1281 = vadd.f32 %v1257, %v1280
      %v1282 = vpop.f32.mrf.mxu0
      %1283 = vdwg.mxu0
      %v1284 = vpack.c.bf16 %v1281, %v1281
      %s1285 = scalar_lea.vmem [#allocation3], 8
      %v1286 = vld [vmem:[%s1285] sm:$0xf]
      %v1287 = vld [vmem:[%s1285 + $0x4] sm:$0xf]
      %v1290 = vunpack.c.l.b16 %v1286
      %v1291 = vunpack.c.l.b16 %v1287
      %v1292 = vpack.c.b16 %v1291, %v1290
      %v1294 = vsel %vm1154, %v1284, 0
      %v1297 = vsel %vm1154, %v1292, 0
      %1299 = vmatpush.bf16.xpose.msra.mxu0 0
      %1300 = vmatpush.bf16.xpose.msra.mxu0 0
      %1301 = vmatpush.bf16.xpose.msra.mxu0 0
      %1302 = vmatpush.bf16.xpose.msra.mxu0 0
      %1303 = vmatpush.bf16.xpose.msra.mxu0 0
      %1304 = vmatpush.bf16.xpose.msra.mxu0 0
      %1305 = vmatpush.bf16.xpose.msra.mxu0 0
      %1306 = vmatpush.bf16.xpose.msra.mxu0 %v1297
      %1307 = vmatmul.bf16.gmra.mxu0 %v1294
      %v1308 = vpop.f32.mrf.mxu0
      %v1309 = vadd.f32 %v1107, %v1308
      %v1310 = vpop.f32.mrf.mxu0
      %1311 = vdwg.mxu0
      %v1312 = vsel %vm1174, %v1309, -inf
      %1313 = vmax.xlane.f32.xlu0 %v1312
      %v1314 = vpop.xlane.xlu0 %1313
      %v1315 = vsub.f32 %v1309, %v1314
      %v1316 = vmul.f32 %v1315, 1.442695
      %v1317 = vpow.pop %v1316
      %v1318 = vsel %vm1174, %v1317, 0.0
      %1319 = vadd.xlane.f32.xlu0 %v1318
      %v1320 = vpop.xlane.xlu0 %1319
      %v1321 = vrcp.pop %v1320
      %v1322 = vmul.f32 %v1320, %v1321
      %v1323 = vsub.f32 1.0, %v1322
      %v1324 = vmul.f32 %v1321, %v1323
      %v1325 = vadd.f32 %v1321, %v1324
      %vm1326 = vweird.f32 %v1320
      %vm1327 = vweird.f32 %v1321
      %vm1328 = vmor %vm1326, %vm1327
      %v1329 = vsel %vm1328, %v1321, %v1325
      %v1330 = vand.u32 2147483647, %v1320
      %vm1331 = vcmp.eq.f32.partialorder %v1330, 8.507059e+37
      %v1332 = vand.u32 %v1320, 2147483648
      %v1333 = vor.u32 1.1754944e-38, %v1332
      %v1334 = vsel %vm1331, %v1333, %v1329
      %v1335 = vmul.f32 %v1317, %v1334
      %v1336 = vpack.c.bf16 %v1335, %v1335
      %s1337 = scalar_lea.vmem [#allocation4], 8
      %v1338 = vld [vmem:[%s1337] sm:$0xf]
      %v1339 = vld [vmem:[%s1337 + $0x4] sm:$0xf]
      %v1342 = vunpack.c.l.b16 %v1338
      %v1343 = vunpack.c.l.b16 %v1339
      %v1344 = vpack.c.b16 %v1343, %v1342
      %v1347 = vsel %vm1174, %v1336, 0
      %1349 = vmatpush.bf16.msra.mxu0 0
      %1350 = vmatpush.bf16.msra.mxu0 0
      %1351 = vmatpush.bf16.msra.mxu0 0
      %1352 = vmatpush.bf16.msra.mxu0 0
      %1353 = vmatpush.bf16.msra.mxu0 0
      %1354 = vmatpush.bf16.msra.mxu0 0
      %1355 = vmatpush.bf16.msra.mxu0 0
      %1356 = vmatpush.bf16.msra.mxu0 %v1344
      %1357 = vmatmul.bf16.gmra.mxu0 %v1347
      %v1358 = vpop.f32.mrf.mxu0
      %v1359 = vadd.f32 0.0, %v1358
      %v1360 = vpop.f32.mrf.mxu0
      %1361 = vdwg.mxu0
      %v1362 = vld [vmem:[#allocation5] sm:$0xff]
      %v1363 = vpack.c.bf16 %v1359, %v1359
      %s1364 = scalar_lea.vmem %s7, 4
      %v1365 = vld [vmem:[%s1364] sm:$0xf]
      %v1367 = vsel %vm1154, %v1363, 0
      %v1370 = vsel %vm1230, %v1365, 0
      %1372 = vmatpush.bf16.msra.mxu0 0
      %1373 = vmatpush.bf16.msra.mxu0 0
      %1374 = vmatpush.bf16.msra.mxu0 0
      %1375 = vmatpush.bf16.msra.mxu0 0
      %1376 = vmatpush.bf16.msra.mxu0 0
      %1377 = vmatpush.bf16.msra.mxu0 0
      %1378 = vmatpush.bf16.msra.mxu0 0
      %1379 = vmatpush.bf16.msra.mxu0 %v1370
      %1380 = vmatmul.bf16.gmra.mxu0 %v1367
      %v1381 = vpop.f32.mrf.mxu0
      %v1382 = vadd.f32 0.0, %v1381
      %v1383 = vpop.f32.mrf.mxu0
      %1384 = vdwg.mxu0
      %v1385 = vadd.f32 %v1362, %v1382
      %1386 = vst.msk [vmem:[#allocation5] sm:$0xff] %vm1108, %v1385
      %s1387 = scalar_lea.vmem %s4, 32
      %v1388 = vld [vmem:[%s1387] sm:$0xf]
      %v1389 = vld [vmem:[%s1387 + $0x4] sm:$0xf]
      %v1390 = vld [vmem:[%s1387 + $0x8] sm:$0xf]
      %v1391 = vld [vmem:[%s1387 + $0xc] sm:$0xf]
      %s1392 = scalar_lea.vmem %s8, 2
      %v1393 = vld [vmem:[%s1392] sm:$0x1]
      %v1395 = vperm.slane %v1393, 0
      %v1401 = vunpack.c.l.b16 %v1388
      %v1402 = vunpack.c.l.b16 %v1389
      %v1403 = vunpack.c.l.b16 %v1390
      %v1404 = vunpack.c.l.b16 %v1391
      %v1405 = vpack.c.b16 %v1402, %v1401
      %v1406 = vpack.c.b16 %v1404, %v1403
      %1409 = vmatpush.bf16.msra.mxu0 0
      %1410 = vmatpush.bf16.msra.mxu0 0
      %1411 = vmatpush.bf16.msra.mxu0 0
      %1412 = vmatpush.bf16.msra.mxu0 0
      %1413 = vmatpush.bf16.msra.mxu0 0
      %1414 = vmatpush.bf16.msra.mxu0 0
      %1415 = vmatpush.bf16.msra.mxu0 %v1406
      %1416 = vmatpush.bf16.msra.mxu0 %v1405
      %1417 = vmatmul.bf16.gmra.mxu0 %v1131
      %v1418 = vpop.f32.mrf.mxu0
      %v1419 = vadd.f32 %v1395, %v1418
      %v1420 = vpop.f32.mrf.mxu0
      %1421 = vdwg.mxu0
      %v1422 = vpack.c.bf16 %v1419, %v1419
      %s1423 = scalar_lea.vmem [#allocation3], 16
      %v1424 = vld [vmem:[%s1423] sm:$0xf]
      %v1425 = vld [vmem:[%s1423 + $0x4] sm:$0xf]
      %v1428 = vunpack.c.l.b16 %v1424
      %v1429 = vunpack.c.l.b16 %v1425
      %v1430 = vpack.c.b16 %v1429, %v1428
      %v1432 = vsel %vm1154, %v1422, 0
      %v1435 = vsel %vm1154, %v1430, 0
      %1437 = vmatpush.bf16.xpose.msra.mxu0 0
      %1438 = vmatpush.bf16.xpose.msra.mxu0 0
      %1439 = vmatpush.bf16.xpose.msra.mxu0 0
      %1440 = vmatpush.bf16.xpose.msra.mxu0 0
      %1441 = vmatpush.bf16.xpose.msra.mxu0 0
      %1442 = vmatpush.bf16.xpose.msra.mxu0 0
      %1443 = vmatpush.bf16.xpose.msra.mxu0 0
      %1444 = vmatpush.bf16.xpose.msra.mxu0 %v1435
      %1445 = vmatmul.bf16.gmra.mxu0 %v1432
      %v1446 = vpop.f32.mrf.mxu0
      %v1447 = vadd.f32 %v1107, %v1446
      %v1448 = vpop.f32.mrf.mxu0
      %1449 = vdwg.mxu0
      %v1450 = vsel %vm1174, %v1447, -inf
      %1451 = vmax.xlane.f32.xlu0 %v1450
      %v1452 = vpop.xlane.xlu0 %1451
      %v1453 = vsub.f32 %v1447, %v1452
      %v1454 = vmul.f32 %v1453, 1.442695
      %v1455 = vpow.pop %v1454
      %v1456 = vsel %vm1174, %v1455, 0.0
      %1457 = vadd.xlane.f32.xlu0 %v1456
      %v1458 = vpop.xlane.xlu0 %1457
      %v1459 = vrcp.pop %v1458
      %v1460 = vmul.f32 %v1458, %v1459
      %v1461 = vsub.f32 1.0, %v1460
      %v1462 = vmul.f32 %v1459, %v1461
      %v1463 = vadd.f32 %v1459, %v1462
      %vm1464 = vweird.f32 %v1458
      %vm1465 = vweird.f32 %v1459
      %vm1466 = vmor %vm1464, %vm1465
      %v1467 = vsel %vm1466, %v1459, %v1463
      %v1468 = vand.u32 2147483647, %v1458
      %vm1469 = vcmp.eq.f32.partialorder %v1468, 8.507059e+37
      %v1470 = vand.u32 %v1458, 2147483648
      %v1471 = vor.u32 1.1754944e-38, %v1470
      %v1472 = vsel %vm1469, %v1471, %v1467
      %v1473 = vmul.f32 %v1455, %v1472
      %v1474 = vpack.c.bf16 %v1473, %v1473
      %s1475 = scalar_lea.vmem [#allocation4], 16
      %v1476 = vld [vmem:[%s1475] sm:$0xf]
      %v1477 = vld [vmem:[%s1475 + $0x4] sm:$0xf]
      %v1480 = vunpack.c.l.b16 %v1476
      %v1481 = vunpack.c.l.b16 %v1477
      %v1482 = vpack.c.b16 %v1481, %v1480
      %v1485 = vsel %vm1174, %v1474, 0
      %1487 = vmatpush.bf16.msra.mxu0 0
      %1488 = vmatpush.bf16.msra.mxu0 0
      %1489 = vmatpush.bf16.msra.mxu0 0
      %1490 = vmatpush.bf16.msra.mxu0 0
      %1491 = vmatpush.bf16.msra.mxu0 0
      %1492 = vmatpush.bf16.msra.mxu0 0
      %1493 = vmatpush.bf16.msra.mxu0 0
      %1494 = vmatpush.bf16.msra.mxu0 %v1482
      %1495 = vmatmul.bf16.gmra.mxu0 %v1485
      %v1496 = vpop.f32.mrf.mxu0
      %v1497 = vadd.f32 0.0, %v1496
      %v1498 = vpop.f32.mrf.mxu0
      %1499 = vdwg.mxu0
      %v1500 = vld [vmem:[#allocation5] sm:$0xff]
      %v1501 = vpack.c.bf16 %v1497, %v1497
      %s1502 = scalar_lea.vmem %s7, 8
      %v1503 = vld [vmem:[%s1502] sm:$0xf]
      %v1505 = vsel %vm1154, %v1501, 0
      %v1508 = vsel %vm1230, %v1503, 0
      %1510 = vmatpush.bf16.msra.mxu0 0
      %1511 = vmatpush.bf16.msra.mxu0 0
      %1512 = vmatpush.bf16.msra.mxu0 0
      %1513 = vmatpush.bf16.msra.mxu0 0
      %1514 = vmatpush.bf16.msra.mxu0 0
      %1515 = vmatpush.bf16.msra.mxu0 0
      %1516 = vmatpush.bf16.msra.mxu0 0
      %1517 = vmatpush.bf16.msra.mxu0 %v1508
      %1518 = vmatmul.bf16.gmra.mxu0 %v1505
      %v1519 = vpop.f32.mrf.mxu0
      %v1520 = vadd.f32 0.0, %v1519
      %v1521 = vpop.f32.mrf.mxu0
      %1522 = vdwg.mxu0
      %v1523 = vadd.f32 %v1500, %v1520
      %1524 = vst.msk [vmem:[#allocation5] sm:$0xff] %vm1108, %v1523
      %s1525 = scalar_lea.vmem %s4, 48
      %v1526 = vld [vmem:[%s1525] sm:$0xf]
      %v1527 = vld [vmem:[%s1525 + $0x4] sm:$0xf]
      %v1528 = vld [vmem:[%s1525 + $0x8] sm:$0xf]
      %v1529 = vld [vmem:[%s1525 + $0xc] sm:$0xf]
      %s1530 = scalar_lea.vmem %s8, 3
      %v1531 = vld [vmem:[%s1530] sm:$0x1]
      %v1533 = vperm.slane %v1531, 0
      %v1539 = vunpack.c.l.b16 %v1526
      %v1540 = vunpack.c.l.b16 %v1527
      %v1541 = vunpack.c.l.b16 %v1528
      %v1542 = vunpack.c.l.b16 %v1529
      %v1543 = vpack.c.b16 %v1540, %v1539
      %v1544 = vpack.c.b16 %v1542, %v1541
      %1547 = vmatpush.bf16.msra.mxu0 0
      %1548 = vmatpush.bf16.msra.mxu0 0
      %1549 = vmatpush.bf16.msra.mxu0 0
      %1550 = vmatpush.bf16.msra.mxu0 0
      %1551 = vmatpush.bf16.msra.mxu0 0
      %1552 = vmatpush.bf16.msra.mxu0 0
      %1553 = vmatpush.bf16.msra.mxu0 %v1544
      %1554 = vmatpush.bf16.msra.mxu0 %v1543
      %1555 = vmatmul.bf16.gmra.mxu0 %v1131
      %v1556 = vpop.f32.mrf.mxu0
      %v1557 = vadd.f32 %v1533, %v1556
      %v1558 = vpop.f32.mrf.mxu0
      %1559 = vdwg.mxu0
      %v1560 = vpack.c.bf16 %v1557, %v1557
      %s1561 = scalar_lea.vmem [#allocation3], 24
      %v1562 = vld [vmem:[%s1561] sm:$0xf]
      %v1563 = vld [vmem:[%s1561 + $0x4] sm:$0xf]
      %v1566 = vunpack.c.l.b16 %v1562
      %v1567 = vunpack.c.l.b16 %v1563
      %v1568 = vpack.c.b16 %v1567, %v1566
      %v1570 = vsel %vm1154, %v1560, 0
      %v1573 = vsel %vm1154, %v1568, 0
      %1575 = vmatpush.bf16.xpose.msra.mxu0 0
      %1576 = vmatpush.bf16.xpose.msra.mxu0 0
      %1577 = vmatpush.bf16.xpose.msra.mxu0 0
      %1578 = vmatpush.bf16.xpose.msra.mxu0 0
      %1579 = vmatpush.bf16.xpose.msra.mxu0 0
      %1580 = vmatpush.bf16.xpose.msra.mxu0 0
      %1581 = vmatpush.bf16.xpose.msra.mxu0 0
      %1582 = vmatpush.bf16.xpose.msra.mxu0 %v1573
      %1583 = vmatmul.bf16.gmra.mxu0 %v1570
      %v1584 = vpop.f32.mrf.mxu0
      %v1585 = vadd.f32 %v1107, %v1584
      %v1586 = vpop.f32.mrf.mxu0
      %1587 = vdwg.mxu0
      %v1588 = vsel %vm1174, %v1585, -inf
      %1589 = vmax.xlane.f32.xlu0 %v1588
      %v1590 = vpop.xlane.xlu0 %1589
      %v1591 = vsub.f32 %v1585, %v1590
      %v1592 = vmul.f32 %v1591, 1.442695
      %v1593 = vpow.pop %v1592
      %v1594 = vsel %vm1174, %v1593, 0.0
      %1595 = vadd.xlane.f32.xlu0 %v1594
      %v1596 = vpop.xlane.xlu0 %1595
      %v1597 = vrcp.pop %v1596
      %v1598 = vmul.f32 %v1596, %v1597
      %v1599 = vsub.f32 1.0, %v1598
      %v1600 = vmul.f32 %v1597, %v1599
      %v1601 = vadd.f32 %v1597, %v1600
      %vm1602 = vweird.f32 %v1596
      %vm1603 = vweird.f32 %v1597
      %vm1604 = vmor %vm1602, %vm1603
      %v1605 = vsel %vm1604, %v1597, %v1601
      %v1606 = vand.u32 2147483647, %v1596
      %vm1607 = vcmp.eq.f32.partialorder %v1606, 8.507059e+37
      %v1608 = vand.u32 %v1596, 2147483648
      %v1609 = vor.u32 1.1754944e-38, %v1608
      %v1610 = vsel %vm1607, %v1609, %v1605
      %v1611 = vmul.f32 %v1593, %v1610
      %v1612 = vpack.c.bf16 %v1611, %v1611
      %s1613 = scalar_lea.vmem [#allocation4], 24
      %v1614 = vld [vmem:[%s1613] sm:$0xf]
      %v1615 = vld [vmem:[%s1613 + $0x4] sm:$0xf]
      %v1618 = vunpack.c.l.b16 %v1614
      %v1619 = vunpack.c.l.b16 %v1615
      %v1620 = vpack.c.b16 %v1619, %v1618
      %v1623 = vsel %vm1174, %v1612, 0
      %1625 = vmatpush.bf16.msra.mxu0 0
      %1626 = vmatpush.bf16.msra.mxu0 0
      %1627 = vmatpush.bf16.msra.mxu0 0
      %1628 = vmatpush.bf16.msra.mxu0 0
      %1629 = vmatpush.bf16.msra.mxu0 0
      %1630 = vmatpush.bf16.msra.mxu0 0
      %1631 = vmatpush.bf16.msra.mxu0 0
      %1632 = vmatpush.bf16.msra.mxu0 %v1620
      %1633 = vmatmul.bf16.gmra.mxu0 %v1623
      %v1634 = vpop.f32.mrf.mxu0
      %v1635 = vadd.f32 0.0, %v1634
      %v1636 = vpop.f32.mrf.mxu0
      %1637 = vdwg.mxu0
      %v1638 = vld [vmem:[#allocation5] sm:$0xff]
      %v1639 = vpack.c.bf16 %v1635, %v1635
      %s1640 = scalar_lea.vmem %s7, 12
      %v1641 = vld [vmem:[%s1640] sm:$0xf]
      %v1643 = vsel %vm1154, %v1639, 0
      %v1646 = vsel %vm1230, %v1641, 0
      %1648 = vmatpush.bf16.msra.mxu0 0
      %1649 = vmatpush.bf16.msra.mxu0 0
      %1650 = vmatpush.bf16.msra.mxu0 0
      %1651 = vmatpush.bf16.msra.mxu0 0
      %1652 = vmatpush.bf16.msra.mxu0 0
      %1653 = vmatpush.bf16.msra.mxu0 0
      %1654 = vmatpush.bf16.msra.mxu0 0
      %1655 = vmatpush.bf16.msra.mxu0 %v1646
      %1656 = vmatmul.bf16.gmra.mxu0 %v1643
      %v1657 = vpop.f32.mrf.mxu0
      %v1658 = vadd.f32 0.0, %v1657
      %v1659 = vpop.f32.mrf.mxu0
      %1660 = vdwg.mxu0
      %v1661 = vadd.f32 %v1638, %v1658
      %1662 = vst.msk [vmem:[#allocation5] sm:$0xff] %vm1108, %v1661
      %v1663 = vld [vmem:[#allocation5] sm:$0xff]
      %v1664 = vadd.f32 %v1100, %v1663
      %v1665 = vld [vmem:[%s11] sm:$0x1]
      %v1667 = vperm.slane %v1665, 0
      %v1669 = vadd.f32 %v1664, %v1667
      %v1670 = vld [vmem:[%s12] sm:$0x1]
      %v1671 = vld [vmem:[%s13] sm:$0x1]
      %v1672 = vsel %vm1108, %v1669, 0.0
      %1673 = vadd.xlane.f32.xlu0 %v1672
      %v1674 = vpop.xlane.xlu0 %1673
      %v1675 = vrcp.pop 32.0
      %v1676 = vmul.f32 32.0, %v1675
      %v1677 = vsub.f32 1.0, %v1676
      %v1678 = vmul.f32 %v1675, %v1677
      %v1679 = vadd.f32 %v1675, %v1678
      %vm1680 = vweird.f32 %v1675
      %v1681 = vsel %vm1680, %v1675, %v1679
      %v1682 = vmul.f32 %v1674, %v1681
      %v1683 = vsub.f32 %v1669, %v1682
      %v1684 = vmul.f32 %v1683, %v1683
      %v1685 = vsel %vm1108, %v1684, 0.0
      %1686 = vadd.xlane.f32.xlu0 %v1685
      %v1687 = vpop.xlane.xlu0 %1686
      %v1688 = vmul.f32 %v1687, 0.032258064
      %v1689 = vrsqrt.pop %v1688
      %v1690 = vmul.f32 %v1689, %v1688
      %v1691 = vmul.f32 %v1690, %v1689
      %v1692 = vmul.f32 0.5, %v1691
      %v1693 = vsub.f32 1.5, %v1692
      %v1694 = vmul.f32 %v1689, %v1693
      %v1695 = vmul.f32 %v1688, %v1694
      %vm1696 = vcmp.eq.f32.partialorder %v1688, inf
      %v1697 = vsel %vm1696, %v1688, %v1695
      %vm1698 = vcmp.eq.f32.partialorder %v1688, 0.0
      %v1699 = vand.u32 %v1688, 2147483648
      %v1700 = vsel %vm1698, %v1699, %v1697
      %v1702 = vperm.slane %v1670, 0
      %v1704 = vmul.f32 %v1702, %v1683
      %v1705 = vadd.f32 %v1700, 1e-06
      %v1706 = vrsqrt.pop %v1705
      %v1707 = vmul.f32 %v1706, %v1705
      %v1708 = vmul.f32 %v1707, %v1706
      %v1709 = vmul.f32 0.5, %v1708
      %v1710 = vsub.f32 1.5, %v1709
      %v1711 = vmul.f32 %v1706, %v1710
      %vm1712 = vweird.f32 %v1705
      %vm1713 = vweird.f32 %v1706
      %vm1714 = vmor %vm1712, %vm1713
      %v1715 = vsel %vm1714, %v1706, %v1711
      %v1716 = vmul.f32 %v1704, %v1715
      %v1718 = vperm.slane %v1671, 0
      %v1720 = vadd.f32 %v1716, %v1718
      %v1721 = vpack.c.bf16 %v1720, %v1720
      %v1722 = vld [vmem:[%s14] sm:$0xf]
      %v1723 = vld [vmem:[%s14 + $0x4] sm:$0xf]
      %v1724 = vld [vmem:[%s14 + $0x8] sm:$0xf]
      %v1725 = vld [vmem:[%s14 + $0xc] sm:$0xf]
      %v1726 = vld [vmem:[%s15] sm:$0x1]
      %v1728 = vperm.slane %v1726, 0
      %v1734 = vunpack.c.l.b16 %v1722
      %v1735 = vunpack.c.l.b16 %v1723
      %v1736 = vunpack.c.l.b16 %v1724
      %v1737 = vunpack.c.l.b16 %v1725
      %v1738 = vpack.c.b16 %v1735, %v1734
      %v1739 = vpack.c.b16 %v1737, %v1736
      %v1743 = vsel %vm1108, %v1721, 0
      %1745 = vmatpush.bf16.msra.mxu0 0
      %1746 = vmatpush.bf16.msra.mxu0 0
      %1747 = vmatpush.bf16.msra.mxu0 0
      %1748 = vmatpush.bf16.msra.mxu0 0
      %1749 = vmatpush.bf16.msra.mxu0 0
      %1750 = vmatpush.bf16.msra.mxu0 0
      %1751 = vmatpush.bf16.msra.mxu0 %v1739
      %1752 = vmatpush.bf16.msra.mxu0 %v1738
      %1753 = vmatmul.bf16.gmra.mxu0 %v1743
      %v1754 = vpop.f32.mrf.mxu0
      %v1755 = vadd.f32 %v1728, %v1754
      %v1756 = vpop.f32.mrf.mxu0
      %1757 = vdwg.mxu0
      %v1758 = vpack.c.bf16 %v1755, %v1755
      %v1759 = vld [vmem:[%s16] sm:$0xf]
      %v1760 = vld [vmem:[%s16 + $0x4] sm:$0xf]
      %v1761 = vld [vmem:[%s16 + $0x8] sm:$0xf]
      %v1762 = vld [vmem:[%s16 + $0xc] sm:$0xf]
      %v1763 = vld [vmem:[%s16 + $0x10] sm:$0xf]
      %v1764 = vld [vmem:[%s16 + $0x14] sm:$0xf]
      %v1765 = vld [vmem:[%s16 + $0x18] sm:$0xf]
      %v1766 = vld [vmem:[%s16 + $0x1c] sm:$0xf]
      %v1767 = vld [vmem:[%s17] sm:$0x1]
      %v1769 = vperm.slane %v1767, 0
      %v1779 = vunpack.c.l.b16 %v1759
      %v1780 = vunpack.c.l.b16 %v1760
      %v1781 = vunpack.c.l.b16 %v1761
      %v1782 = vunpack.c.l.b16 %v1762
      %v1783 = vunpack.c.l.b16 %v1763
      %v1784 = vunpack.c.l.b16 %v1764
      %v1785 = vunpack.c.l.b16 %v1765
      %v1786 = vunpack.c.l.b16 %v1766
      %v1787 = vpack.c.b16 %v1780, %v1779
      %v1788 = vpack.c.b16 %v1782, %v1781
      %v1789 = vpack.c.b16 %v1784, %v1783
      %v1790 = vpack.c.b16 %v1786, %v1785
      %vm1795 = vcmask 523264
      %v1797 = vsel %vm1795, %v1758, 0
      %1799 = vmatpush.bf16.msra.mxu0 0
      %1800 = vmatpush.bf16.msra.mxu0 0
      %1801 = vmatpush.bf16.msra.mxu0 0
      %1802 = vmatpush.bf16.msra.mxu0 0
      %1803 = vmatpush.bf16.msra.mxu0 %v1790
      %1804 = vmatpush.bf16.msra.mxu0 %v1789
      %1805 = vmatpush.bf16.msra.mxu0 %v1788
      %1806 = vmatpush.bf16.msra.mxu0 %v1787
      %1807 = vmatmul.bf16.gmra.mxu0 %v1797
      %v1808 = vpop.f32.mrf.mxu0
      %v1809 = vadd.f32 %v1769, %v1808
      %v1810 = vpop.f32.mrf.mxu0
      %1811 = vdwg.mxu0
      %v1812 = vadd.f32 %v1669, %v1809
      %v1813 = vpack.c.bf16 %v1812, %v1812
      %vm1814 = vcmask 257024
      %1815 = vst.msk [vmem:[%s666] sm:$0xf] %vm1814, %v1813
      %p1816 = scmp.lt.s32.totalorder %s35, 1
      %s1817 = scalar_select %p1816, %s35, 1
      %p1818 = scmp.lt.s32.totalorder %s36, 1
      %s1819 = scalar_select %p1818, %s36, 1
      %s1820 = smul.addr %s1817, 2
      %s1821 = sadd.s32 %s1819, %s1820
      %s1822 = smul.addr %s1821, 4
      %s1823 = scalar_lea.vmem %s20, %s1822
      // Predicated region
      $region105: #{encoder_forward.2} parent=99 // pred_check
        %p1824 = pneg %p493
      $region106: #{encoder_forward.2} parent=99 // pred_check_branch
        %1826 = sbr.rel (%p1824) target = $region108
      $region107: #{encoder_forward.2} parent=99 // pred_region
        _
      $region108: #{encoder_forward.2} parent=99 // pred_fallthru
        _
    $region100: #{encoder_forward.2} parent=5 // pred_fallthru
      _
    %p1827 = scmp.le.s32.totalorder 2, %s26
    // Predicated region
    $region109: #{encoder_forward.2} parent=5 // pred_check
      %p1828 = pneg %p1827
    $region110: #{encoder_forward.2} parent=5 // pred_check_branch
      %1830 = sbr.rel (%p1828) target = $region112
    $region111: #{encoder_forward.2} parent=5 // pred_region
      %s1831 = ssub.s32 %s26, 2
      // Predicated region
      $region113: #{encoder_forward.2} parent=111 // pred_check
        %p1832 = pneg %p499
      $region114: #{encoder_forward.2} parent=111 // pred_check_branch
        %1834 = sbr.rel (%p1832) target = $region116
      $region115: #{encoder_forward.2} parent=111 // pred_region
        %p1835 = scmp.lt.s32.totalorder %s37, 1
        %s1836 = scalar_select %p1835, %s37, 1
        %p1837 = scmp.lt.s32.totalorder %s38, 1
        %s1838 = scalar_select %p1837, %s38, 1
        %s1839 = smul.addr %s1836, 2
        %s1840 = sadd.s32 %s1838, %s1839
        %s1841 = smul.addr %s1840, 4
        %s1842 = scalar_lea.vmem %s20, %s1841
      $region116: #{encoder_forward.2} parent=111 // pred_fallthru
        _
    $region112: #{encoder_forward.2} parent=5 // pred_fallthru
      _
  $region6: #{encoder_forward.2} parent=0 // loop_footer
    %s30 = sadd.s32 1, %s26
  $region7: #{encoder_forward.2} parent=0 // loop_footer_branch
    %25 = sbr.rel target = $region3
  $region8: #{encoder_forward.2} parent=0 // loop_exit
    _

</llo_original>
